<compile_context>
chip_gen: v6e
topology: v6e:2x2x1
jax: 0.10.0
libtpu: 0.0.40
codegen_flags: <defaults>
</compile_context>

<pallas_src>
import jax
import jax.numpy as jnp
from jax.experimental import pallas as pl
from jax.experimental.pallas import tpu as pltpu

F_PAD = 128            # padded feature width (in/hidden/out -> lane-dense)
TM_LARGE = 512         # Â row tile for large graphs
TK_LARGE = 512         # Â reduction (column) tile for large graphs
SMALL_GRAPH_N = 2048   # <= this many padded nodes -> one block per layer


def _round_up(v, m):
    return ((v + m - 1) // m) * m


def _pick_tiles(n0):
    """Small graphs: whole problem in one block.  Large: 512x512 Â tiles."""
    if n0 <= SMALL_GRAPH_N:
        return n0, n0
    return TM_LARGE, TK_LARGE


# --------------------------------------------------------------------------- #
# Layer 1: XW2 = (relu(Â @ XW1 + b1)) @ W2
# grid = (row-tile i [parallel], col-tile k [reduction, last])
# --------------------------------------------------------------------------- #
def _gcn_layer1_kernel(adj_ref, xw1_ref, b1_ref, w2_ref, xw2_ref, acc_ref):
    k = pl.program_id(1)

    @pl.when(k == 0)
    def _init():
        acc_ref[...] = jnp.zeros_like(acc_ref)

    # Single bf16 MXU matmul per grid step, f32 accumulation.
    acc_ref[...] += jnp.dot(adj_ref[...], xw1_ref[...],
                            preferred_element_type=jnp.float32)

    @pl.when(k == pl.num_programs(1) - 1)
    def _finish():
        h = jnp.maximum(acc_ref[...] + b1_ref[...], 0.0)      # f32 bias + ReLU
        # Fold the next layer's feature transform into the epilogue so layer 2
        # only has to aggregate.
        xw2_ref[...] = jnp.dot(h.astype(jnp.bfloat16), w2_ref[...],
                               preferred_element_type=jnp.float32
                               ).astype(xw2_ref.dtype)


# --------------------------------------------------------------------------- #
# Layer 2: out = Â @ XW2 + b2
# --------------------------------------------------------------------------- #
def _gcn_layer2_kernel(adj_ref, xw2_ref, b2_ref, out_ref, acc_ref):
    k = pl.program_id(1)

    @pl.when(k == 0)
    def _init():
        acc_ref[...] = jnp.zeros_like(acc_ref)

    acc_ref[...] += jnp.dot(adj_ref[...], xw2_ref[...],
                            preferred_element_type=jnp.float32)

    @pl.when(k == pl.num_programs(1) - 1)
    def _finish():
        out_ref[...] = (acc_ref[...] + b2_ref[...]).astype(out_ref.dtype)


# --------------------------------------------------------------------------- #
# Plain-JAX glue: graph preprocessing (matches PyG add_self_loops / gcn_norm)
# --------------------------------------------------------------------------- #
def add_self_loops(edge_index, num_nodes):
    loops = jnp.arange(num_nodes, dtype=edge_index.dtype)
    return jnp.concatenate([edge_index, jnp.stack([loops, loops])], axis=1)


def gcn_norm_dense(edge_index_with_self_loops, num_nodes):
    """Dense D^{-1/2} (A + I) D^{-1/2} following GCNConv's gcn_norm."""
    src = edge_index_with_self_loops[0]
    tgt = edge_index_with_self_loops[1]
    ew = jnp.ones(src.shape[0], jnp.float32)
    deg = jnp.zeros(num_nodes, jnp.float32).at[tgt].add(ew)
    deg_inv_sqrt = jnp.where(deg > 0, 1.0 / jnp.sqrt(deg), 0.0)
    norm = deg_inv_sqrt[src] * deg_inv_sqrt[tgt]
    # adj[i, j] = norm of edge (src=j -> tgt=i): out[i] = sum_j adj[i,j] * xW[j]
    return jnp.zeros((num_nodes, num_nodes), jnp.float32).at[tgt, src].add(norm)


# --------------------------------------------------------------------------- #
# Wrapper: pad to lane-dense shapes, run both layer kernels, slice padding off.
# --------------------------------------------------------------------------- #
def gcn_forward(params, x, edge_index):
    num_nodes, fin = x.shape
    hid = params["w1"].shape[1]
    fout = params["w2"].shape[1]

    # Â built ONCE, reused by both layers (identical to rebuilding it from the
    # same edge_index, which is what the PyTorch module does).
    adj = gcn_norm_dense(add_self_loops(edge_index, num_nodes), num_nodes)

    n0 = _round_up(max(num_nodes, 128), 128)
    tm, tk = _pick_tiles(n0)
    n_pad = _round_up(n0, max(tm, tk))
    ni, nk = n_pad // tm, n_pad // tk
    vmem = pltpu.MemorySpace.VMEM

    # Pad + cast matmul operands to bf16 (f32 accumulation inside the kernels).
    adj_p = jnp.zeros((n_pad, n_pad), jnp.bfloat16
                      ).at[:num_nodes, :num_nodes].set(adj.astype(jnp.bfloat16))
    x_p = jnp.zeros((n_pad, F_PAD), jnp.bfloat16
                    ).at[:num_nodes, :fin].set(x.astype(jnp.bfloat16))
    w1_p = jnp.zeros((F_PAD, F_PAD), jnp.bfloat16
                     ).at[:fin, :hid].set(params["w1"].astype(jnp.bfloat16))
    b1_p = jnp.zeros((1, F_PAD), jnp.float32).at[:, :hid].set(params["b1"])
    w2_p = jnp.zeros((F_PAD, F_PAD), jnp.bfloat16
                     ).at[:hid, :fout].set(params["w2"].astype(jnp.bfloat16))
    b2_p = jnp.zeros((1, F_PAD), jnp.float32).at[:, :fout].set(params["b2"])

    # Layer-1 feature transform hoisted: computed ONCE (tiny XLA matmul)
    # instead of once per Â row tile inside the kernel.
    xw1_p = jnp.dot(x_p, w1_p,
                    preferred_element_type=jnp.float32).astype(jnp.bfloat16)

    bytes_adj = 2 * n_pad * n_pad                    # bf16 Â, streamed once/layer
    cost1 = pl.CostEstimate(
        flops=2 * n_pad * n_pad * F_PAD + 2 * n_pad * F_PAD * F_PAD,
        transcendentals=0,
        bytes_accessed=(bytes_adj
                        + ni * 2 * n_pad * F_PAD     # XW1 streamed once per row tile
                        + 2 * F_PAD * F_PAD          # W2
                        + 4 * F_PAD                  # b1
                        + 2 * n_pad * F_PAD),        # XW2 out (bf16)
    )
    cost2 = pl.CostEstimate(
        flops=2 * n_pad * n_pad * F_PAD,
        transcendentals=0,
        bytes_accessed=(bytes_adj
                        + ni * 2 * n_pad * F_PAD     # XW2 streamed once per row tile
                        + 4 * F_PAD                  # b2
                        + 4 * n_pad * F_PAD),        # out (f32)
    )

    compiler_params = pltpu.CompilerParams(
        # Row tiles are independent -> 'parallel' (megacore on v7x);
        # reduction axis last and 'arbitrary'.
        dimension_semantics=("parallel", "arbitrary"),
        vmem_limit_bytes=48 * 1024 * 1024,   # fits v7x's 64 MiB with headroom
    )

    # ---- Layer 1: XW2 = relu(Â @ XW1 + b1) @ W2 ---------------------------- #
    xw2 = pl.pallas_call(
        _gcn_layer1_kernel,
        out_shape=jax.ShapeDtypeStruct((n_pad, F_PAD), jnp.bfloat16),
        grid_spec=pltpu.PrefetchScalarGridSpec(
            num_scalar_prefetch=0,
            grid=(ni, nk),
            in_specs=[
                pl.BlockSpec((tm, tk), lambda i, k: (i, k),
                             memory_space=vmem),               # Â tile
                pl.BlockSpec((tk, F_PAD), lambda i, k: (k, 0),
                             memory_space=vmem),               # XW1 tile
                pl.BlockSpec((1, F_PAD), lambda i, k: (0, 0),
                             memory_space=vmem),               # b1
                pl.BlockSpec((F_PAD, F_PAD), lambda i, k: (0, 0),
                             memory_space=vmem),               # W2 (fetched once)
            ],
            out_specs=pl.BlockSpec((tm, F_PAD), lambda i, k: (i, 0),
                                   memory_space=vmem),
            scratch_shapes=[pltpu.VMEM((tm, F_PAD), jnp.float32)],  # f32 accumulator
        ),
        compiler_params=compiler_params,
        cost_estimate=cost1,
    )(adj_p, xw1_p, b1_p, w2_p)

    # ---- Layer 2: out = Â @ XW2 + b2 ---------------------------------------- #
    out = pl.pallas_call(
        _gcn_layer2_kernel,
        out_shape=jax.ShapeDtypeStruct((n_pad, F_PAD), jnp.float32),
        grid_spec=pltpu.PrefetchScalarGridSpec(
            num_scalar_prefetch=0,
            grid=(ni, nk),
            in_specs=[
                pl.BlockSpec((tm, tk), lambda i, k: (i, k),
                             memory_space=vmem),               # Â tile
                pl.BlockSpec((tk, F_PAD), lambda i, k: (k, 0),
                             memory_space=vmem),               # XW2 tile
                pl.BlockSpec((1, F_PAD), lambda i, k: (0, 0),
                             memory_space=vmem),               # b2
            ],
            out_specs=pl.BlockSpec((tm, F_PAD), lambda i, k: (i, 0),
                                   memory_space=vmem),
            scratch_shapes=[pltpu.VMEM((tm, F_PAD), jnp.float32)],  # f32 accumulator
        ),
        compiler_params=compiler_params,
        cost_estimate=cost2,
    )(adj_p, xw2, b2_p)

    return out[:num_nodes, :fout]


# --------------------------------------------------------------------------- #
# Parameter init (deterministic, Glorot-uniform like PyG GCNConv; bias zeros)
# --------------------------------------------------------------------------- #
def glorot(key, fan_in, fan_out):
    limit = jnp.sqrt(6.0 / (fan_in + fan_out))
    return jax.random.uniform(key, (fan_in, fan_out), jnp.float32,
                              minval=-limit, maxval=limit)


def init_gcn_params(key, in_channels, hidden, out_channels):
    k1, k2 = jax.random.split(key)
    return {
        "w1": glorot(k1, in_channels, hidden),
        "b1": jnp.zeros((1, hidden), jnp.float32),
        "w2": glorot(k2, hidden, out_channels),
        "b2": jnp.zeros((1, out_channels), jnp.float32),
    }


# --------------------------------------------------------------------------- #
if __name__ == "__main__":
    key = jax.random.PRNGKey(0)
    k_x, k_p = jax.random.split(key)

    num_nodes = 300       # pads to 384 -> small-graph fast path (single block/layer)
    in_channels = 4
    hidden = 16           # GCNConv(in_channels, 16)
    out_channels = 4      # GCNConv(16, out_channels)

    # Node features [N, F_in]
    x = jax.random.normal(k_x, (num_nodes, in_channels), jnp.float32)

    # Undirected ring graph: edge_index [2, 2N]
    idx = jnp.arange(num_nodes, dtype=jnp.int32)
    nxt = jnp.roll(idx, -1)
    edge_index = jnp.stack([jnp.concatenate([idx, nxt]),
                            jnp.concatenate([nxt, idx])])

    params = init_gcn_params(k_p, in_channels, hidden, out_channels)

    fwd = jax.jit(gcn_forward)
    out = fwd(params, x, edge_index)
    jax.block_until_ready(out)
    assert out.shape == (num_nodes, out_channels)

    # Plain-JAX f32 reference (kernel matmuls are bf16 -> loose tolerance).
    adj = gcn_norm_dense(add_self_loops(edge_index, num_nodes), num_nodes)
    h = jnp.maximum(adj @ (x @ params["w1"]) + params["b1"], 0.0)
    ref = adj @ (h @ params["w2"]) + params["b2"]
    err = float(jnp.max(jnp.abs(out - ref)))
    assert err < 5e-2, f"max abs err {err}"

    print("KERNEL_OK")
</pallas_src>

<mosaic_0001>
module attributes {stable_mosaic.version = 11 : i64} {
  func.func @_gcn_layer2_kernel(%arg0: i32, %arg1: i32, %arg2: memref<384x384xbf16, #tpu.memory_space<vmem>>, %arg3: memref<384x128xbf16, #tpu.memory_space<vmem>>, %arg4: memref<1x128xf32, #tpu.memory_space<vmem>>, %arg5: memref<384x128xf32, #tpu.memory_space<vmem>>, %arg6: memref<384x128xf32, #tpu.memory_space<vmem>>) attributes {dimension_semantics = [#tpu.dimension_semantics<parallel>, #tpu.dimension_semantics<arbitrary>], iteration_bounds = array<i64: 1, 1>, scalar_prefetch = 0 : i64, scratch_operands = 1 : i64, tpu.core_type = #tpu.core_type<tc>, window_params = [{transform_indices = @transform_0, window_bounds = array<i64: 384, 384>}, {transform_indices = @transform_1, window_bounds = array<i64: 384, 128>}, {pipeline_mode = #tpu.pipeline_mode<synchronous>, transform_indices = @transform_2, window_bounds = array<i64: 1, 128>}, {transform_indices = @transform_3, window_bounds = array<i64: 384, 128>}]} {
    %c0_i32 = arith.constant 0 : i32
    %0 = arith.cmpi eq, %arg1, %c0_i32 : i32
    %1 = arith.extui %0 : i1 to i32
    %c0_i32_0 = arith.constant 0 : i32
    %2 = arith.cmpi ne, %1, %c0_i32_0 : i32
    scf.if %2 {
      %cst_10 = arith.constant 0.000000e+00 : f32
      %12 = vector.broadcast %cst_10 : f32 to vector<384x128xf32>
      %c0_11 = arith.constant 0 : index
      %c0_12 = arith.constant 0 : index
      %13 = vector.load %arg6[%c0_11, %c0_12] : memref<384x128xf32, #tpu.memory_space<vmem>>, vector<384x128xf32>
      tpu.vector_store %arg6[%c0_11, %c0_12], %12 {strides = array<i32>} : memref<384x128xf32, #tpu.memory_space<vmem>>, vector<384x128xf32>,
    } else {
    }
    %c0 = arith.constant 0 : index
    %c0_1 = arith.constant 0 : index
    %3 = vector.load %arg6[%c0, %c0_1] : memref<384x128xf32, #tpu.memory_space<vmem>>, vector<384x128xf32>
    %c0_2 = arith.constant 0 : index
    %c0_3 = arith.constant 0 : index
    %4 = vector.load %arg2[%c0_2, %c0_3] : memref<384x384xbf16, #tpu.memory_space<vmem>>, vector<384x384xbf16>
    %c0_4 = arith.constant 0 : index
    %c0_5 = arith.constant 0 : index
    %5 = vector.load %arg3[%c0_4, %c0_5] : memref<384x128xbf16, #tpu.memory_space<vmem>>, vector<384x128xbf16>
    %cst = arith.constant dense<0.000000e+00> : vector<384x128xf32>
    %6 = tpu.matmul %4, %5, %cst {dimension_numbers = #tpu.dot_dimension_numbers<[1], [0], [0], [1], [0, 0, 1, 1], [], []>} : vector<384x384xbf16>, vector<384x128xbf16>, vector<384x128xf32> -> vector<384x128xf32>
    %7 = arith.addf %3, %6 : vector<384x128xf32>
    %c0_6 = arith.constant 0 : index
    %c0_7 = arith.constant 0 : index
    %8 = vector.load %arg6[%c0_6, %c0_7] : memref<384x128xf32, #tpu.memory_space<vmem>>, vector<384x128xf32>
    tpu.vector_store %arg6[%c0_6, %c0_7], %7 {strides = array<i32>} : memref<384x128xf32, #tpu.memory_space<vmem>>, vector<384x128xf32>,
    %c0_i32_8 = arith.constant 0 : i32
    %9 = arith.cmpi eq, %arg1, %c0_i32_8 : i32
    %10 = arith.extui %9 : i1 to i32
    %c0_i32_9 = arith.constant 0 : i32
    %11 = arith.cmpi ne, %10, %c0_i32_9 : i32
    scf.if %11 {
      %c0_10 = arith.constant 0 : index
      %c0_11 = arith.constant 0 : index
      %12 = vector.load %arg6[%c0_10, %c0_11] : memref<384x128xf32, #tpu.memory_space<vmem>>, vector<384x128xf32>
      %c0_12 = arith.constant 0 : index
      %c0_13 = arith.constant 0 : index
      %13 = vector.load %arg4[%c0_12, %c0_13] : memref<1x128xf32, #tpu.memory_space<vmem>>, vector<1x128xf32>
      %14 = vector.broadcast %13 : vector<1x128xf32> to vector<384x128xf32>
      %15 = arith.addf %12, %14 : vector<384x128xf32>
      %c0_14 = arith.constant 0 : index
      %c0_15 = arith.constant 0 : index
      %16 = vector.load %arg5[%c0_14, %c0_15] : memref<384x128xf32, #tpu.memory_space<vmem>>, vector<384x128xf32>
      tpu.vector_store %arg5[%c0_14, %c0_15], %15 {strides = array<i32>} : memref<384x128xf32, #tpu.memory_space<vmem>>, vector<384x128xf32>,
    } else {
    }
    return
  }
  func.func @transform_0(%arg0: i32, %arg1: i32) -> (i32, i32) {
    %c0_i32 = arith.constant 0 : i32
    return %arg0, %arg1 : i32, i32
  }
  func.func @transform_1(%arg0: i32, %arg1: i32) -> (i32, i32) {
    %c0_i32 = arith.constant 0 : i32
    %c0_i32_0 = arith.constant 0 : i32
    return %arg1, %c0_i32 : i32, i32
  }
  func.func @transform_2(%arg0: i32, %arg1: i32) -> (i32, i32) {
    %c0_i32 = arith.constant 0 : i32
    %c0_i32_0 = arith.constant 0 : i32
    %c0_i32_1 = arith.constant 0 : i32
    return %c0_i32, %c0_i32_0 : i32, i32
  }
  func.func @transform_3(%arg0: i32, %arg1: i32) -> (i32, i32) {
    %c0_i32 = arith.constant 0 : i32
    %c0_i32_0 = arith.constant 0 : i32
    return %arg0, %c0_i32 : i32, i32
  }
}

module attributes {stable_mosaic.version = 11 : i64} {
  func.func @_gcn_layer1_kernel(%arg0: i32, %arg1: i32, %arg2: memref<384x384xbf16, #tpu.memory_space<vmem>>, %arg3: memref<384x128xbf16, #tpu.memory_space<vmem>>, %arg4: memref<1x128xf32, #tpu.memory_space<vmem>>, %arg5: memref<128x128xbf16, #tpu.memory_space<vmem>>, %arg6: memref<384x128xbf16, #tpu.memory_space<vmem>>, %arg7: memref<384x128xf32, #tpu.memory_space<vmem>>) attributes {dimension_semantics = [#tpu.dimension_semantics<parallel>, #tpu.dimension_semantics<arbitrary>], iteration_bounds = array<i64: 1, 1>, scalar_prefetch = 0 : i64, scratch_operands = 1 : i64, tpu.core_type = #tpu.core_type<tc>, window_params = [{transform_indices = @transform_0, window_bounds = array<i64: 384, 384>}, {transform_indices = @transform_1, window_bounds = array<i64: 384, 128>}, {pipeline_mode = #tpu.pipeline_mode<synchronous>, transform_indices = @transform_2, window_bounds = array<i64: 1, 128>}, {pipeline_mode = #tpu.pipeline_mode<synchronous>, transform_indices = @transform_3, window_bounds = array<i64: 128, 128>}, {transform_indices = @transform_4, window_bounds = array<i64: 384, 128>}]} {
    %c0_i32 = arith.constant 0 : i32
    %0 = arith.cmpi eq, %arg1, %c0_i32 : i32
    %1 = arith.extui %0 : i1 to i32
    %c0_i32_0 = arith.constant 0 : i32
    %2 = arith.cmpi ne, %1, %c0_i32_0 : i32
    scf.if %2 {
      %cst_10 = arith.constant 0.000000e+00 : f32
      %12 = vector.broadcast %cst_10 : f32 to vector<384x128xf32>
      %c0_11 = arith.constant 0 : index
      %c0_12 = arith.constant 0 : index
      %13 = vector.load %arg7[%c0_11, %c0_12] : memref<384x128xf32, #tpu.memory_space<vmem>>, vector<384x128xf32>
      tpu.vector_store %arg7[%c0_11, %c0_12], %12 {strides = array<i32>} : memref<384x128xf32, #tpu.memory_space<vmem>>, vector<384x128xf32>,
    } else {
    }
    %c0 = arith.constant 0 : index
    %c0_1 = arith.constant 0 : index
    %3 = vector.load %arg7[%c0, %c0_1] : memref<384x128xf32, #tpu.memory_space<vmem>>, vector<384x128xf32>
    %c0_2 = arith.constant 0 : index
    %c0_3 = arith.constant 0 : index
    %4 = vector.load %arg2[%c0_2, %c0_3] : memref<384x384xbf16, #tpu.memory_space<vmem>>, vector<384x384xbf16>
    %c0_4 = arith.constant 0 : index
    %c0_5 = arith.constant 0 : index
    %5 = vector.load %arg3[%c0_4, %c0_5] : memref<384x128xbf16, #tpu.memory_space<vmem>>, vector<384x128xbf16>
    %cst = arith.constant dense<0.000000e+00> : vector<384x128xf32>
    %6 = tpu.matmul %4, %5, %cst {dimension_numbers = #tpu.dot_dimension_numbers<[1], [0], [0], [1], [0, 0, 1, 1], [], []>} : vector<384x384xbf16>, vector<384x128xbf16>, vector<384x128xf32> -> vector<384x128xf32>
    %7 = arith.addf %3, %6 : vector<384x128xf32>
    %c0_6 = arith.constant 0 : index
    %c0_7 = arith.constant 0 : index
    %8 = vector.load %arg7[%c0_6, %c0_7] : memref<384x128xf32, #tpu.memory_space<vmem>>, vector<384x128xf32>
    tpu.vector_store %arg7[%c0_6, %c0_7], %7 {strides = array<i32>} : memref<384x128xf32, #tpu.memory_space<vmem>>, vector<384x128xf32>,
    %c0_i32_8 = arith.constant 0 : i32
    %9 = arith.cmpi eq, %arg1, %c0_i32_8 : i32
    %10 = arith.extui %9 : i1 to i32
    %c0_i32_9 = arith.constant 0 : i32
    %11 = arith.cmpi ne, %10, %c0_i32_9 : i32
    scf.if %11 {
      %c0_10 = arith.constant 0 : index
      %c0_11 = arith.constant 0 : index
      %12 = vector.load %arg7[%c0_10, %c0_11] : memref<384x128xf32, #tpu.memory_space<vmem>>, vector<384x128xf32>
      %c0_12 = arith.constant 0 : index
      %c0_13 = arith.constant 0 : index
      %13 = vector.load %arg4[%c0_12, %c0_13] : memref<1x128xf32, #tpu.memory_space<vmem>>, vector<1x128xf32>
      %14 = vector.broadcast %13 : vector<1x128xf32> to vector<384x128xf32>
      %15 = arith.addf %12, %14 : vector<384x128xf32>
      %cst_14 = arith.constant 0.000000e+00 : f32
      %16 = vector.broadcast %cst_14 : f32 to vector<384x128xf32>
      %17 = arith.maximumf %15, %16 : vector<384x128xf32>
      %18 = arith.truncf %17 : vector<384x128xf32> to vector<384x128xbf16>
      %c0_15 = arith.constant 0 : index
      %c0_16 = arith.constant 0 : index
      %19 = vector.load %arg5[%c0_15, %c0_16] : memref<128x128xbf16, #tpu.memory_space<vmem>>, vector<128x128xbf16>
      %cst_17 = arith.constant dense<0.000000e+00> : vector<384x128xf32>
      %20 = tpu.matmul %18, %19, %cst_17 {dimension_numbers = #tpu.dot_dimension_numbers<[1], [0], [0], [1], [0, 0, 1, 1], [], []>} : vector<384x128xbf16>, vector<128x128xbf16>, vector<384x128xf32> -> vector<384x128xf32>
      %21 = arith.truncf %20 : vector<384x128xf32> to vector<384x128xbf16>
      %c0_18 = arith.constant 0 : index
      %c0_19 = arith.constant 0 : index
      %22 = vector.load %arg6[%c0_18, %c0_19] : memref<384x128xbf16, #tpu.memory_space<vmem>>, vector<384x128xbf16>
      tpu.vector_store %arg6[%c0_18, %c0_19], %21 {strides = array<i32>} : memref<384x128xbf16, #tpu.memory_space<vmem>>, vector<384x128xbf16>,
    } else {
    }
    return
  }
  func.func @transform_0(%arg0: i32, %arg1: i32) -> (i32, i32) {
    %c0_i32 = arith.constant 0 : i32
    return %arg0, %arg1 : i32, i32
  }
  func.func @transform_1(%arg0: i32, %arg1: i32) -> (i32, i32) {
    %c0_i32 = arith.constant 0 : i32
    %c0_i32_0 = arith.constant 0 : i32
    return %arg1, %c0_i32 : i32, i32
  }
  func.func @transform_2(%arg0: i32, %arg1: i32) -> (i32, i32) {
    %c0_i32 = arith.constant 0 : i32
    %c0_i32_0 = arith.constant 0 : i32
    %c0_i32_1 = arith.constant 0 : i32
    return %c0_i32, %c0_i32_0 : i32, i32
  }
  func.func @transform_3(%arg0: i32, %arg1: i32) -> (i32, i32) {
    %c0_i32 = arith.constant 0 : i32
    %c0_i32_0 = arith.constant 0 : i32
    %c0_i32_1 = arith.constant 0 : i32
    return %c0_i32, %c0_i32_0 : i32, i32
  }
  func.func @transform_4(%arg0: i32, %arg1: i32) -> (i32, i32) {
    %c0_i32 = arith.constant 0 : i32
    %c0_i32_0 = arith.constant 0 : i32
    return %arg0, %c0_i32 : i32, i32
  }
}

</mosaic_0001>

<llo_original>
// kernel: mul.1
$region0: #{mul.1}
  #allocation0 [shape = 's32[1]{0}', space=sflag, size = 0x4, scoped, tag = 'scoped memory for mul.1']
  %s0 = inlined_call_operand.vmem [shape: f32[900], index: 0, kind: input, shape index: {}]
  %s1 = inlined_call_operand.vmem [shape: f32[900], index: 1, kind: input, shape index: {}]
  %s2 = inlined_call_operand.vmem [shape: f32[900], index: 2, kind: output, shape index: {}]
  %v3 = vld [vmem:[%s0] sm:$0xff]
  %v4 = vld [vmem:[%s1] sm:$0xff]
  %5 = xla_tuple %v3, %v4
  %6 = xla_tuple %5
  %v7 = vmul.f32 %v3, %v4
  %8 = xla_tuple %v7
  %9 = vst [vmem:[%s2] sm:$0xff] %v7

// kernel: gcn_forward.3
$region0: #{gcn_forward.3}
  #allocation0 [shape = 'u32[]', space=smem, size = 0x4, offset = 0x4, fixed_abs, tag = 'smem constant byte address 0x4 - core index']
  #allocation1 [shape = 'u32[144,128]{1,0:T(1,128)}', space=vmem, size = 0x12000, scoped, tag = 'internal scratch']
  #allocation2 [shape = 'f32[384,128]{1,0:T(8,128)}', space=vmem, size = 0x30000, scoped, tag = 'scratch operand']
  %s0 = inlined_call_operand.vmem [shape: bf16[384,384], index: 0, kind: input, shape index: {}]
  %s1 = inlined_call_operand.vmem [shape: bf16[384,128], index: 1, kind: input, shape index: {}]
  %s2 = inlined_call_operand.vmem [shape: f32[1,128], index: 2, kind: input, shape index: {}]
  %s3 = inlined_call_operand.vmem [shape: f32[384,128], index: 3, kind: output, shape index: {}]
  %s4 = sld [smem:[#allocation0]]
  $region30: #{gcn_forward.3} parent=0
    _
  %s6 = ssub.s32 1, %s4
  %s7 = scalar_select 0, %s6, %s4
  // Predicated region
  $region2: #{gcn_forward.3} parent=0 // pred_check
    _
  $region3: #{gcn_forward.3} parent=0 // pred_check_branch
    %9 = sbr.rel (0) target = $region5
  $region4: #{gcn_forward.3} parent=0 // pred_region
    _
  $region5: #{gcn_forward.3} parent=0 // pred_fallthru
    _
  // Predicated region
  $region6: #{gcn_forward.3} parent=0 // pred_check
    _
  $region7: #{gcn_forward.3} parent=0 // pred_check_branch
    %11 = sbr.rel (0) target = $region9
  $region8: #{gcn_forward.3} parent=0 // pred_region
    _
  $region9: #{gcn_forward.3} parent=0 // pred_fallthru
    _
  // Predicated region
  $region10: #{gcn_forward.3} parent=0 // pred_check
    _
  $region11: #{gcn_forward.3} parent=0 // pred_check_branch
    %13 = sbr.rel (0) target = $region13
  $region12: #{gcn_forward.3} parent=0 // pred_region
    _
  $region13: #{gcn_forward.3} parent=0 // pred_fallthru
    _
  %p15 = scmp.eq.s32.totalorder 0, 0
  // Predicated region
  $region14: #{gcn_forward.3} parent=0 // pred_check
    %p16 = pneg %p15
  $region15: #{gcn_forward.3} parent=0 // pred_check_branch
    %18 = sbr.rel (%p16) target = $region17
  $region16: #{gcn_forward.3} parent=0 // pred_region
    %19 = vst [vmem:[#allocation2] sm:$0xff] 0.0
    %20 = vst [vmem:[#allocation2 + $0x8] sm:$0xff] 0.0
    %21 = vst [vmem:[#allocation2 + $0x10] sm:$0xff] 0.0
    %22 = vst [vmem:[#allocation2 + $0x18] sm:$0xff] 0.0
    %23 = vst [vmem:[#allocation2 + $0x20] sm:$0xff] 0.0
    %24 = vst [vmem:[#allocation2 + $0x28] sm:$0xff] 0.0
    %25 = vst [vmem:[#allocation2 + $0x30] sm:$0xff] 0.0
    %26 = vst [vmem:[#allocation2 + $0x38] sm:$0xff] 0.0
    %27 = vst [vmem:[#allocation2 + $0x40] sm:$0xff] 0.0
    %28 = vst [vmem:[#allocation2 + $0x48] sm:$0xff] 0.0
    %29 = vst [vmem:[#allocation2 + $0x50] sm:$0xff] 0.0
    %30 = vst [vmem:[#allocation2 + $0x58] sm:$0xff] 0.0
    %31 = vst [vmem:[#allocation2 + $0x60] sm:$0xff] 0.0
    %32 = vst [vmem:[#allocation2 + $0x68] sm:$0xff] 0.0
    %33 = vst [vmem:[#allocation2 + $0x70] sm:$0xff] 0.0
    %34 = vst [vmem:[#allocation2 + $0x78] sm:$0xff] 0.0
    %35 = vst [vmem:[#allocation2 + $0x80] sm:$0xff] 0.0
    %36 = vst [vmem:[#allocation2 + $0x88] sm:$0xff] 0.0
    %37 = vst [vmem:[#allocation2 + $0x90] sm:$0xff] 0.0
    %38 = vst [vmem:[#allocation2 + $0x98] sm:$0xff] 0.0
    %39 = vst [vmem:[#allocation2 + $0xa0] sm:$0xff] 0.0
    %40 = vst [vmem:[#allocation2 + $0xa8] sm:$0xff] 0.0
    %41 = vst [vmem:[#allocation2 + $0xb0] sm:$0xff] 0.0
    %42 = vst [vmem:[#allocation2 + $0xb8] sm:$0xff] 0.0
    %43 = vst [vmem:[#allocation2 + $0xc0] sm:$0xff] 0.0
    %44 = vst [vmem:[#allocation2 + $0xc8] sm:$0xff] 0.0
    %45 = vst [vmem:[#allocation2 + $0xd0] sm:$0xff] 0.0
    %46 = vst [vmem:[#allocation2 + $0xd8] sm:$0xff] 0.0
    %47 = vst [vmem:[#allocation2 + $0xe0] sm:$0xff] 0.0
    %48 = vst [vmem:[#allocation2 + $0xe8] sm:$0xff] 0.0
    %49 = vst [vmem:[#allocation2 + $0xf0] sm:$0xff] 0.0
    %50 = vst [vmem:[#allocation2 + $0xf8] sm:$0xff] 0.0
    %51 = vst [vmem:[#allocation2 + $0x100] sm:$0xff] 0.0
    %52 = vst [vmem:[#allocation2 + $0x108] sm:$0xff] 0.0
    %53 = vst [vmem:[#allocation2 + $0x110] sm:$0xff] 0.0
    %54 = vst [vmem:[#allocation2 + $0x118] sm:$0xff] 0.0
    %55 = vst [vmem:[#allocation2 + $0x120] sm:$0xff] 0.0
    %56 = vst [vmem:[#allocation2 + $0x128] sm:$0xff] 0.0
    %57 = vst [vmem:[#allocation2 + $0x130] sm:$0xff] 0.0
    %58 = vst [vmem:[#allocation2 + $0x138] sm:$0xff] 0.0
    %59 = vst [vmem:[#allocation2 + $0x140] sm:$0xff] 0.0
    %60 = vst [vmem:[#allocation2 + $0x148] sm:$0xff] 0.0
    %61 = vst [vmem:[#allocation2 + $0x150] sm:$0xff] 0.0
    %62 = vst [vmem:[#allocation2 + $0x158] sm:$0xff] 0.0
    %63 = vst [vmem:[#allocation2 + $0x160] sm:$0xff] 0.0
    %64 = vst [vmem:[#allocation2 + $0x168] sm:$0xff] 0.0
    %65 = vst [vmem:[#allocation2 + $0x170] sm:$0xff] 0.0
    %66 = vst [vmem:[#allocation2 + $0x178] sm:$0xff] 0.0
  $region17: #{gcn_forward.3} parent=0 // pred_fallthru
    _
  %v67 = vld [vmem:[#allocation2] sm:$0xff]
  %v68 = vld [vmem:[#allocation2 + $0x8] sm:$0xff]
  %v69 = vld [vmem:[#allocation2 + $0x10] sm:$0xff]
  %v70 = vld [vmem:[#allocation2 + $0x18] sm:$0xff]
  %v71 = vld [vmem:[#allocation2 + $0x20] sm:$0xff]
  %v72 = vld [vmem:[#allocation2 + $0x28] sm:$0xff]
  %v73 = vld [vmem:[#allocation2 + $0x30] sm:$0xff]
  %v74 = vld [vmem:[#allocation2 + $0x38] sm:$0xff]
  %v75 = vld [vmem:[#allocation2 + $0x40] sm:$0xff]
  %v76 = vld [vmem:[#allocation2 + $0x48] sm:$0xff]
  %v77 = vld [vmem:[#allocation2 + $0x50] sm:$0xff]
  %v78 = vld [vmem:[#allocation2 + $0x58] sm:$0xff]
  %v79 = vld [vmem:[#allocation2 + $0x60] sm:$0xff]
  %v80 = vld [vmem:[#allocation2 + $0x68] sm:$0xff]
  %v81 = vld [vmem:[#allocation2 + $0x70] sm:$0xff]
  %v82 = vld [vmem:[#allocation2 + $0x78] sm:$0xff]
  %v83 = vld [vmem:[#allocation2 + $0x80] sm:$0xff]
  %v84 = vld [vmem:[#allocation2 + $0x88] sm:$0xff]
  %v85 = vld [vmem:[#allocation2 + $0x90] sm:$0xff]
  %v86 = vld [vmem:[#allocation2 + $0x98] sm:$0xff]
  %v87 = vld [vmem:[#allocation2 + $0xa0] sm:$0xff]
  %v88 = vld [vmem:[#allocation2 + $0xa8] sm:$0xff]
  %v89 = vld [vmem:[#allocation2 + $0xb0] sm:$0xff]
  %v90 = vld [vmem:[#allocation2 + $0xb8] sm:$0xff]
  %v91 = vld [vmem:[#allocation2 + $0xc0] sm:$0xff]
  %v92 = vld [vmem:[#allocation2 + $0xc8] sm:$0xff]
  %v93 = vld [vmem:[#allocation2 + $0xd0] sm:$0xff]
  %v94 = vld [vmem:[#allocation2 + $0xd8] sm:$0xff]
  %v95 = vld [vmem:[#allocation2 + $0xe0] sm:$0xff]
  %v96 = vld [vmem:[#allocation2 + $0xe8] sm:$0xff]
  %v97 = vld [vmem:[#allocation2 + $0xf0] sm:$0xff]
  %v98 = vld [vmem:[#allocation2 + $0xf8] sm:$0xff]
  %v99 = vld [vmem:[#allocation2 + $0x100] sm:$0xff]
  %v100 = vld [vmem:[#allocation2 + $0x108] sm:$0xff]
  %v101 = vld [vmem:[#allocation2 + $0x110] sm:$0xff]
  %v102 = vld [vmem:[#allocation2 + $0x118] sm:$0xff]
  %v103 = vld [vmem:[#allocation2 + $0x120] sm:$0xff]
  %v104 = vld [vmem:[#allocation2 + $0x128] sm:$0xff]
  %v105 = vld [vmem:[#allocation2 + $0x130] sm:$0xff]
  %v106 = vld [vmem:[#allocation2 + $0x138] sm:$0xff]
  %v107 = vld [vmem:[#allocation2 + $0x140] sm:$0xff]
  %v108 = vld [vmem:[#allocation2 + $0x148] sm:$0xff]
  %v109 = vld [vmem:[#allocation2 + $0x150] sm:$0xff]
  %v110 = vld [vmem:[#allocation2 + $0x158] sm:$0xff]
  %v111 = vld [vmem:[#allocation2 + $0x160] sm:$0xff]
  %v112 = vld [vmem:[#allocation2 + $0x168] sm:$0xff]
  %v113 = vld [vmem:[#allocation2 + $0x170] sm:$0xff]
  %v114 = vld [vmem:[#allocation2 + $0x178] sm:$0xff]
  %v115 = vld [vmem:[%s0] sm:$0xff]
  %v116 = vld [vmem:[%s0 + $0x8] sm:$0xf]
  %v117 = vld [vmem:[%s0 + $0xc] sm:$0xff]
  %v118 = vld [vmem:[%s0 + $0x14] sm:$0xf]
  %v119 = vld [vmem:[%s0 + $0x18] sm:$0xff]
  %v120 = vld [vmem:[%s0 + $0x20] sm:$0xf]
  %v121 = vld [vmem:[%s0 + $0x24] sm:$0xff]
  %v122 = vld [vmem:[%s0 + $0x2c] sm:$0xf]
  %v123 = vld [vmem:[%s0 + $0x30] sm:$0xff]
  %v124 = vld [vmem:[%s0 + $0x38] sm:$0xf]
  %v125 = vld [vmem:[%s0 + $0x3c] sm:$0xff]
  %v126 = vld [vmem:[%s0 + $0x44] sm:$0xf]
  %v127 = vld [vmem:[%s0 + $0x48] sm:$0xff]
  %v128 = vld [vmem:[%s0 + $0x50] sm:$0xf]
  %v129 = vld [vmem:[%s0 + $0x54] sm:$0xff]
  %v130 = vld [vmem:[%s0 + $0x5c] sm:$0xf]
  %v131 = vld [vmem:[%s0 + $0x60] sm:$0xff]
  %v132 = vld [vmem:[%s0 + $0x68] sm:$0xf]
  %v133 = vld [vmem:[%s0 + $0x6c] sm:$0xff]
  %v134 = vld [vmem:[%s0 + $0x74] sm:$0xf]
  %v135 = vld [vmem:[%s0 + $0x78] sm:$0xff]
  %v136 = vld [vmem:[%s0 + $0x80] sm:$0xf]
  %v137 = vld [vmem:[%s0 + $0x84] sm:$0xff]
  %v138 = vld [vmem:[%s0 + $0x8c] sm:$0xf]
  %v139 = vld [vmem:[%s0 + $0x90] sm:$0xff]
  %v140 = vld [vmem:[%s0 + $0x98] sm:$0xf]
  %v141 = vld [vmem:[%s0 + $0x9c] sm:$0xff]
  %v142 = vld [vmem:[%s0 + $0xa4] sm:$0xf]
  %v143 = vld [vmem:[%s0 + $0xa8] sm:$0xff]
  %v144 = vld [vmem:[%s0 + $0xb0] sm:$0xf]
  %v145 = vld [vmem:[%s0 + $0xb4] sm:$0xff]
  %v146 = vld [vmem:[%s0 + $0xbc] sm:$0xf]
  %v147 = vld [vmem:[%s0 + $0xc0] sm:$0xff]
  %v148 = vld [vmem:[%s0 + $0xc8] sm:$0xf]
  %v149 = vld [vmem:[%s0 + $0xcc] sm:$0xff]
  %v150 = vld [vmem:[%s0 + $0xd4] sm:$0xf]
  %v151 = vld [vmem:[%s0 + $0xd8] sm:$0xff]
  %v152 = vld [vmem:[%s0 + $0xe0] sm:$0xf]
  %v153 = vld [vmem:[%s0 + $0xe4] sm:$0xff]
  %v154 = vld [vmem:[%s0 + $0xec] sm:$0xf]
  %v155 = vld [vmem:[%s0 + $0xf0] sm:$0xff]
  %v156 = vld [vmem:[%s0 + $0xf8] sm:$0xf]
  %v157 = vld [vmem:[%s0 + $0xfc] sm:$0xff]
  %v158 = vld [vmem:[%s0 + $0x104] sm:$0xf]
  %v159 = vld [vmem:[%s0 + $0x108] sm:$0xff]
  %v160 = vld [vmem:[%s0 + $0x110] sm:$0xf]
  %v161 = vld [vmem:[%s0 + $0x114] sm:$0xff]
  %v162 = vld [vmem:[%s0 + $0x11c] sm:$0xf]
  %v163 = vld [vmem:[%s0 + $0x120] sm:$0xff]
  %v164 = vld [vmem:[%s0 + $0x128] sm:$0xf]
  %v165 = vld [vmem:[%s0 + $0x12c] sm:$0xff]
  %v166 = vld [vmem:[%s0 + $0x134] sm:$0xf]
  %v167 = vld [vmem:[%s0 + $0x138] sm:$0xff]
  %v168 = vld [vmem:[%s0 + $0x140] sm:$0xf]
  %v169 = vld [vmem:[%s0 + $0x144] sm:$0xff]
  %v170 = vld [vmem:[%s0 + $0x14c] sm:$0xf]
  %v171 = vld [vmem:[%s0 + $0x150] sm:$0xff]
  %v172 = vld [vmem:[%s0 + $0x158] sm:$0xf]
  %v173 = vld [vmem:[%s0 + $0x15c] sm:$0xff]
  %v174 = vld [vmem:[%s0 + $0x164] sm:$0xf]
  %v175 = vld [vmem:[%s0 + $0x168] sm:$0xff]
  %v176 = vld [vmem:[%s0 + $0x170] sm:$0xf]
  %v177 = vld [vmem:[%s0 + $0x174] sm:$0xff]
  %v178 = vld [vmem:[%s0 + $0x17c] sm:$0xf]
  %v179 = vld [vmem:[%s0 + $0x180] sm:$0xff]
  %v180 = vld [vmem:[%s0 + $0x188] sm:$0xf]
  %v181 = vld [vmem:[%s0 + $0x18c] sm:$0xff]
  %v182 = vld [vmem:[%s0 + $0x194] sm:$0xf]
  %v183 = vld [vmem:[%s0 + $0x198] sm:$0xff]
  %v184 = vld [vmem:[%s0 + $0x1a0] sm:$0xf]
  %v185 = vld [vmem:[%s0 + $0x1a4] sm:$0xff]
  %v186 = vld [vmem:[%s0 + $0x1ac] sm:$0xf]
  %v187 = vld [vmem:[%s0 + $0x1b0] sm:$0xff]
  %v188 = vld [vmem:[%s0 + $0x1b8] sm:$0xf]
  %v189 = vld [vmem:[%s0 + $0x1bc] sm:$0xff]
  %v190 = vld [vmem:[%s0 + $0x1c4] sm:$0xf]
  %v191 = vld [vmem:[%s0 + $0x1c8] sm:$0xff]
  %v192 = vld [vmem:[%s0 + $0x1d0] sm:$0xf]
  %v193 = vld [vmem:[%s0 + $0x1d4] sm:$0xff]
  %v194 = vld [vmem:[%s0 + $0x1dc] sm:$0xf]
  %v195 = vld [vmem:[%s0 + $0x1e0] sm:$0xff]
  %v196 = vld [vmem:[%s0 + $0x1e8] sm:$0xf]
  %v197 = vld [vmem:[%s0 + $0x1ec] sm:$0xff]
  %v198 = vld [vmem:[%s0 + $0x1f4] sm:$0xf]
  %v199 = vld [vmem:[%s0 + $0x1f8] sm:$0xff]
  %v200 = vld [vmem:[%s0 + $0x200] sm:$0xf]
  %v201 = vld [vmem:[%s0 + $0x204] sm:$0xff]
  %v202 = vld [vmem:[%s0 + $0x20c] sm:$0xf]
  %v203 = vld [vmem:[%s0 + $0x210] sm:$0xff]
  %v204 = vld [vmem:[%s0 + $0x218] sm:$0xf]
  %v205 = vld [vmem:[%s0 + $0x21c] sm:$0xff]
  %v206 = vld [vmem:[%s0 + $0x224] sm:$0xf]
  %v207 = vld [vmem:[%s0 + $0x228] sm:$0xff]
  %v208 = vld [vmem:[%s0 + $0x230] sm:$0xf]
  %v209 = vld [vmem:[%s0 + $0x234] sm:$0xff]
  %v210 = vld [vmem:[%s0 + $0x23c] sm:$0xf]
  %v211 = vld [vmem:[%s1] sm:$0xf]
  %v212 = vld [vmem:[%s1 + $0x4] sm:$0xf]
  %v213 = vld [vmem:[%s1 + $0x8] sm:$0xf]
  %v214 = vld [vmem:[%s1 + $0xc] sm:$0xf]
  %v215 = vld [vmem:[%s1 + $0x10] sm:$0xf]
  %v216 = vld [vmem:[%s1 + $0x14] sm:$0xf]
  %v217 = vld [vmem:[%s1 + $0x18] sm:$0xf]
  %v218 = vld [vmem:[%s1 + $0x1c] sm:$0xf]
  %v219 = vld [vmem:[%s1 + $0x20] sm:$0xf]
  %v220 = vld [vmem:[%s1 + $0x24] sm:$0xf]
  %v221 = vld [vmem:[%s1 + $0x28] sm:$0xf]
  %v222 = vld [vmem:[%s1 + $0x2c] sm:$0xf]
  %v223 = vld [vmem:[%s1 + $0x30] sm:$0xf]
  %v224 = vld [vmem:[%s1 + $0x34] sm:$0xf]
  %v225 = vld [vmem:[%s1 + $0x38] sm:$0xf]
  %v226 = vld [vmem:[%s1 + $0x3c] sm:$0xf]
  %v227 = vld [vmem:[%s1 + $0x40] sm:$0xf]
  %v228 = vld [vmem:[%s1 + $0x44] sm:$0xf]
  %v229 = vld [vmem:[%s1 + $0x48] sm:$0xf]
  %v230 = vld [vmem:[%s1 + $0x4c] sm:$0xf]
  %v231 = vld [vmem:[%s1 + $0x50] sm:$0xf]
  %v232 = vld [vmem:[%s1 + $0x54] sm:$0xf]
  %v233 = vld [vmem:[%s1 + $0x58] sm:$0xf]
  %v234 = vld [vmem:[%s1 + $0x5c] sm:$0xf]
  %v235 = vld [vmem:[%s1 + $0x60] sm:$0xf]
  %v236 = vld [vmem:[%s1 + $0x64] sm:$0xf]
  %v237 = vld [vmem:[%s1 + $0x68] sm:$0xf]
  %v238 = vld [vmem:[%s1 + $0x6c] sm:$0xf]
  %v239 = vld [vmem:[%s1 + $0x70] sm:$0xf]
  %v240 = vld [vmem:[%s1 + $0x74] sm:$0xf]
  %v241 = vld [vmem:[%s1 + $0x78] sm:$0xf]
  %v242 = vld [vmem:[%s1 + $0x7c] sm:$0xf]
  %v243 = vld [vmem:[%s1 + $0x80] sm:$0xf]
  %v244 = vld [vmem:[%s1 + $0x84] sm:$0xf]
  %v245 = vld [vmem:[%s1 + $0x88] sm:$0xf]
  %v246 = vld [vmem:[%s1 + $0x8c] sm:$0xf]
  %v247 = vld [vmem:[%s1 + $0x90] sm:$0xf]
  %v248 = vld [vmem:[%s1 + $0x94] sm:$0xf]
  %v249 = vld [vmem:[%s1 + $0x98] sm:$0xf]
  %v250 = vld [vmem:[%s1 + $0x9c] sm:$0xf]
  %v251 = vld [vmem:[%s1 + $0xa0] sm:$0xf]
  %v252 = vld [vmem:[%s1 + $0xa4] sm:$0xf]
  %v253 = vld [vmem:[%s1 + $0xa8] sm:$0xf]
  %v254 = vld [vmem:[%s1 + $0xac] sm:$0xf]
  %v255 = vld [vmem:[%s1 + $0xb0] sm:$0xf]
  %v256 = vld [vmem:[%s1 + $0xb4] sm:$0xf]
  %v257 = vld [vmem:[%s1 + $0xb8] sm:$0xf]
  %v258 = vld [vmem:[%s1 + $0xbc] sm:$0xf]
  %v355 = vunpack.c.l.b16 %v115
  %v356 = vunpack.c.h.b16 %v115
  %v357 = vunpack.c.l.b16 %v116
  %v358 = vunpack.c.l.b16 %v117
  %v359 = vunpack.c.h.b16 %v117
  %v360 = vunpack.c.l.b16 %v118
  %v361 = vunpack.c.l.b16 %v119
  %v362 = vunpack.c.h.b16 %v119
  %v363 = vunpack.c.l.b16 %v120
  %v364 = vunpack.c.l.b16 %v121
  %v365 = vunpack.c.h.b16 %v121
  %v366 = vunpack.c.l.b16 %v122
  %v367 = vunpack.c.l.b16 %v123
  %v368 = vunpack.c.h.b16 %v123
  %v369 = vunpack.c.l.b16 %v124
  %v370 = vunpack.c.l.b16 %v125
  %v371 = vunpack.c.h.b16 %v125
  %v372 = vunpack.c.l.b16 %v126
  %v373 = vunpack.c.l.b16 %v127
  %v374 = vunpack.c.h.b16 %v127
  %v375 = vunpack.c.l.b16 %v128
  %v376 = vunpack.c.l.b16 %v129
  %v377 = vunpack.c.h.b16 %v129
  %v378 = vunpack.c.l.b16 %v130
  %v379 = vunpack.c.l.b16 %v131
  %v380 = vunpack.c.h.b16 %v131
  %v381 = vunpack.c.l.b16 %v132
  %v382 = vunpack.c.l.b16 %v133
  %v383 = vunpack.c.h.b16 %v133
  %v384 = vunpack.c.l.b16 %v134
  %v385 = vunpack.c.l.b16 %v135
  %v386 = vunpack.c.h.b16 %v135
  %v387 = vunpack.c.l.b16 %v136
  %v388 = vunpack.c.l.b16 %v137
  %v389 = vunpack.c.h.b16 %v137
  %v390 = vunpack.c.l.b16 %v138
  %v391 = vunpack.c.l.b16 %v139
  %v392 = vunpack.c.h.b16 %v139
  %v393 = vunpack.c.l.b16 %v140
  %v394 = vunpack.c.l.b16 %v141
  %v395 = vunpack.c.h.b16 %v141
  %v396 = vunpack.c.l.b16 %v142
  %v397 = vunpack.c.l.b16 %v143
  %v398 = vunpack.c.h.b16 %v143
  %v399 = vunpack.c.l.b16 %v144
  %v400 = vunpack.c.l.b16 %v145
  %v401 = vunpack.c.h.b16 %v145
  %v402 = vunpack.c.l.b16 %v146
  %v403 = vunpack.c.l.b16 %v147
  %v404 = vunpack.c.h.b16 %v147
  %v405 = vunpack.c.l.b16 %v148
  %v406 = vunpack.c.l.b16 %v149
  %v407 = vunpack.c.h.b16 %v149
  %v408 = vunpack.c.l.b16 %v150
  %v409 = vunpack.c.l.b16 %v151
  %v410 = vunpack.c.h.b16 %v151
  %v411 = vunpack.c.l.b16 %v152
  %v412 = vunpack.c.l.b16 %v153
  %v413 = vunpack.c.h.b16 %v153
  %v414 = vunpack.c.l.b16 %v154
  %v415 = vunpack.c.l.b16 %v155
  %v416 = vunpack.c.h.b16 %v155
  %v417 = vunpack.c.l.b16 %v156
  %v418 = vunpack.c.l.b16 %v157
  %v419 = vunpack.c.h.b16 %v157
  %v420 = vunpack.c.l.b16 %v158
  %v421 = vunpack.c.l.b16 %v159
  %v422 = vunpack.c.h.b16 %v159
  %v423 = vunpack.c.l.b16 %v160
  %v424 = vunpack.c.l.b16 %v161
  %v425 = vunpack.c.h.b16 %v161
  %v426 = vunpack.c.l.b16 %v162
  %v427 = vunpack.c.l.b16 %v163
  %v428 = vunpack.c.h.b16 %v163
  %v429 = vunpack.c.l.b16 %v164
  %v430 = vunpack.c.l.b16 %v165
  %v431 = vunpack.c.h.b16 %v165
  %v432 = vunpack.c.l.b16 %v166
  %v433 = vunpack.c.l.b16 %v167
  %v434 = vunpack.c.h.b16 %v167
  %v435 = vunpack.c.l.b16 %v168
  %v436 = vunpack.c.l.b16 %v169
  %v437 = vunpack.c.h.b16 %v169
  %v438 = vunpack.c.l.b16 %v170
  %v439 = vunpack.c.l.b16 %v171
  %v440 = vunpack.c.h.b16 %v171
  %v441 = vunpack.c.l.b16 %v172
  %v442 = vunpack.c.l.b16 %v173
  %v443 = vunpack.c.h.b16 %v173
  %v444 = vunpack.c.l.b16 %v174
  %v445 = vunpack.c.l.b16 %v175
  %v446 = vunpack.c.h.b16 %v175
  %v447 = vunpack.c.l.b16 %v176
  %v448 = vunpack.c.l.b16 %v177
  %v449 = vunpack.c.h.b16 %v177
  %v450 = vunpack.c.l.b16 %v178
  %v451 = vunpack.c.l.b16 %v179
  %v452 = vunpack.c.h.b16 %v179
  %v453 = vunpack.c.l.b16 %v180
  %v454 = vunpack.c.l.b16 %v181
  %v455 = vunpack.c.h.b16 %v181
  %v456 = vunpack.c.l.b16 %v182
  %v457 = vunpack.c.l.b16 %v183
  %v458 = vunpack.c.h.b16 %v183
  %v459 = vunpack.c.l.b16 %v184
  %v460 = vunpack.c.l.b16 %v185
  %v461 = vunpack.c.h.b16 %v185
  %v462 = vunpack.c.l.b16 %v186
  %v463 = vunpack.c.l.b16 %v187
  %v464 = vunpack.c.h.b16 %v187
  %v465 = vunpack.c.l.b16 %v188
  %v466 = vunpack.c.l.b16 %v189
  %v467 = vunpack.c.h.b16 %v189
  %v468 = vunpack.c.l.b16 %v190
  %v469 = vunpack.c.l.b16 %v191
  %v470 = vunpack.c.h.b16 %v191
  %v471 = vunpack.c.l.b16 %v192
  %v472 = vunpack.c.l.b16 %v193
  %v473 = vunpack.c.h.b16 %v193
  %v474 = vunpack.c.l.b16 %v194
  %v475 = vunpack.c.l.b16 %v195
  %v476 = vunpack.c.h.b16 %v195
  %v477 = vunpack.c.l.b16 %v196
  %v478 = vunpack.c.l.b16 %v197
  %v479 = vunpack.c.h.b16 %v197
  %v480 = vunpack.c.l.b16 %v198
  %v481 = vunpack.c.l.b16 %v199
  %v482 = vunpack.c.h.b16 %v199
  %v483 = vunpack.c.l.b16 %v200
  %v484 = vunpack.c.l.b16 %v201
  %v485 = vunpack.c.h.b16 %v201
  %v486 = vunpack.c.l.b16 %v202
  %v487 = vunpack.c.l.b16 %v203
  %v488 = vunpack.c.h.b16 %v203
  %v489 = vunpack.c.l.b16 %v204
  %v490 = vunpack.c.l.b16 %v205
  %v491 = vunpack.c.h.b16 %v205
  %v492 = vunpack.c.l.b16 %v206
  %v493 = vunpack.c.l.b16 %v207
  %v494 = vunpack.c.h.b16 %v207
  %v495 = vunpack.c.l.b16 %v208
  %v496 = vunpack.c.l.b16 %v209
  %v497 = vunpack.c.h.b16 %v209
  %v498 = vunpack.c.l.b16 %v210
  %v499 = vpack.c.b16 %v358, %v355
  %v500 = vpack.c.b16 %v359, %v356
  %v501 = vpack.c.b16 %v360, %v357
  %v502 = vpack.c.b16 %v364, %v361
  %v503 = vpack.c.b16 %v365, %v362
  %v504 = vpack.c.b16 %v366, %v363
  %v505 = vpack.c.b16 %v370, %v367
  %v506 = vpack.c.b16 %v371, %v368
  %v507 = vpack.c.b16 %v372, %v369
  %v508 = vpack.c.b16 %v376, %v373
  %v509 = vpack.c.b16 %v377, %v374
  %v510 = vpack.c.b16 %v378, %v375
  %v511 = vpack.c.b16 %v382, %v379
  %v512 = vpack.c.b16 %v383, %v380
  %v513 = vpack.c.b16 %v384, %v381
  %v514 = vpack.c.b16 %v388, %v385
  %v515 = vpack.c.b16 %v389, %v386
  %v516 = vpack.c.b16 %v390, %v387
  %v517 = vpack.c.b16 %v394, %v391
  %v518 = vpack.c.b16 %v395, %v392
  %v519 = vpack.c.b16 %v396, %v393
  %v520 = vpack.c.b16 %v400, %v397
  %v521 = vpack.c.b16 %v401, %v398
  %v522 = vpack.c.b16 %v402, %v399
  %v523 = vpack.c.b16 %v406, %v403
  %v524 = vpack.c.b16 %v407, %v404
  %v525 = vpack.c.b16 %v408, %v405
  %v526 = vpack.c.b16 %v412, %v409
  %v527 = vpack.c.b16 %v413, %v410
  %v528 = vpack.c.b16 %v414, %v411
  %v529 = vpack.c.b16 %v418, %v415
  %v530 = vpack.c.b16 %v419, %v416
  %v531 = vpack.c.b16 %v420, %v417
  %v532 = vpack.c.b16 %v424, %v421
  %v533 = vpack.c.b16 %v425, %v422
  %v534 = vpack.c.b16 %v426, %v423
  %v535 = vpack.c.b16 %v430, %v427
  %v536 = vpack.c.b16 %v431, %v428
  %v537 = vpack.c.b16 %v432, %v429
  %v538 = vpack.c.b16 %v436, %v433
  %v539 = vpack.c.b16 %v437, %v434
  %v540 = vpack.c.b16 %v438, %v435
  %v541 = vpack.c.b16 %v442, %v439
  %v542 = vpack.c.b16 %v443, %v440
  %v543 = vpack.c.b16 %v444, %v441
  %v544 = vpack.c.b16 %v448, %v445
  %v545 = vpack.c.b16 %v449, %v446
  %v546 = vpack.c.b16 %v450, %v447
  %v547 = vpack.c.b16 %v454, %v451
  %v548 = vpack.c.b16 %v455, %v452
  %v549 = vpack.c.b16 %v456, %v453
  %v550 = vpack.c.b16 %v460, %v457
  %v551 = vpack.c.b16 %v461, %v458
  %v552 = vpack.c.b16 %v462, %v459
  %v553 = vpack.c.b16 %v466, %v463
  %v554 = vpack.c.b16 %v467, %v464
  %v555 = vpack.c.b16 %v468, %v465
  %v556 = vpack.c.b16 %v472, %v469
  %v557 = vpack.c.b16 %v473, %v470
  %v558 = vpack.c.b16 %v474, %v471
  %v559 = vpack.c.b16 %v478, %v475
  %v560 = vpack.c.b16 %v479, %v476
  %v561 = vpack.c.b16 %v480, %v477
  %v562 = vpack.c.b16 %v484, %v481
  %v563 = vpack.c.b16 %v485, %v482
  %v564 = vpack.c.b16 %v486, %v483
  %v565 = vpack.c.b16 %v490, %v487
  %v566 = vpack.c.b16 %v491, %v488
  %v567 = vpack.c.b16 %v492, %v489
  %v568 = vpack.c.b16 %v496, %v493
  %v569 = vpack.c.b16 %v497, %v494
  %v570 = vpack.c.b16 %v498, %v495
  %v691 = vunpack.c.l.b16 %v211
  %v692 = vunpack.c.l.b16 %v212
  %v693 = vunpack.c.l.b16 %v213
  %v694 = vunpack.c.l.b16 %v214
  %v695 = vunpack.c.l.b16 %v215
  %v696 = vunpack.c.l.b16 %v216
  %v697 = vunpack.c.l.b16 %v217
  %v698 = vunpack.c.l.b16 %v218
  %v699 = vunpack.c.l.b16 %v219
  %v700 = vunpack.c.l.b16 %v220
  %v701 = vunpack.c.l.b16 %v221
  %v702 = vunpack.c.l.b16 %v222
  %v703 = vunpack.c.l.b16 %v223
  %v704 = vunpack.c.l.b16 %v224
  %v705 = vunpack.c.l.b16 %v225
  %v706 = vunpack.c.l.b16 %v226
  %v707 = vunpack.c.l.b16 %v227
  %v708 = vunpack.c.l.b16 %v228
  %v709 = vunpack.c.l.b16 %v229
  %v710 = vunpack.c.l.b16 %v230
  %v711 = vunpack.c.l.b16 %v231
  %v712 = vunpack.c.l.b16 %v232
  %v713 = vunpack.c.l.b16 %v233
  %v714 = vunpack.c.l.b16 %v234
  %v715 = vunpack.c.l.b16 %v235
  %v716 = vunpack.c.l.b16 %v236
  %v717 = vunpack.c.l.b16 %v237
  %v718 = vunpack.c.l.b16 %v238
  %v719 = vunpack.c.l.b16 %v239
  %v720 = vunpack.c.l.b16 %v240
  %v721 = vunpack.c.l.b16 %v241
  %v722 = vunpack.c.l.b16 %v242
  %v723 = vunpack.c.l.b16 %v243
  %v724 = vunpack.c.l.b16 %v244
  %v725 = vunpack.c.l.b16 %v245
  %v726 = vunpack.c.l.b16 %v246
  %v727 = vunpack.c.l.b16 %v247
  %v728 = vunpack.c.l.b16 %v248
  %v729 = vunpack.c.l.b16 %v249
  %v730 = vunpack.c.l.b16 %v250
  %v731 = vunpack.c.l.b16 %v251
  %v732 = vunpack.c.l.b16 %v252
  %v733 = vunpack.c.l.b16 %v253
  %v734 = vunpack.c.l.b16 %v254
  %v735 = vunpack.c.l.b16 %v255
  %v736 = vunpack.c.l.b16 %v256
  %v737 = vunpack.c.l.b16 %v257
  %v738 = vunpack.c.l.b16 %v258
  %v739 = vpack.c.b16 %v692, %v691
  %v740 = vpack.c.b16 %v694, %v693
  %v741 = vpack.c.b16 %v696, %v695
  %v742 = vpack.c.b16 %v698, %v697
  %v743 = vpack.c.b16 %v700, %v699
  %v744 = vpack.c.b16 %v702, %v701
  %v745 = vpack.c.b16 %v704, %v703
  %v746 = vpack.c.b16 %v706, %v705
  %v747 = vpack.c.b16 %v708, %v707
  %v748 = vpack.c.b16 %v710, %v709
  %v749 = vpack.c.b16 %v712, %v711
  %v750 = vpack.c.b16 %v714, %v713
  %v751 = vpack.c.b16 %v716, %v715
  %v752 = vpack.c.b16 %v718, %v717
  %v753 = vpack.c.b16 %v720, %v719
  %v754 = vpack.c.b16 %v722, %v721
  %v755 = vpack.c.b16 %v724, %v723
  %v756 = vpack.c.b16 %v726, %v725
  %v757 = vpack.c.b16 %v728, %v727
  %v758 = vpack.c.b16 %v730, %v729
  %v759 = vpack.c.b16 %v732, %v731
  %v760 = vpack.c.b16 %v734, %v733
  %v761 = vpack.c.b16 %v736, %v735
  %v762 = vpack.c.b16 %v738, %v737
  %787 = vmatprep.subr.bf16.mxu0 0
  %788 = vmatpush1.bf16.msra.mxu0 %v746
  %789 = vmatprep.subr.bf16.mxu0 0
  %790 = vmatpush1.bf16.msra.mxu0 %v745
  %791 = vmatprep.subr.bf16.mxu0 0
  %792 = vmatpush1.bf16.msra.mxu0 %v744
  %793 = vmatprep.subr.bf16.mxu0 0
  %794 = vmatpush1.bf16.msra.mxu0 %v743
  %795 = vmatprep.subr.bf16.mxu0 0
  %796 = vmatpush1.bf16.msra.mxu0 %v742
  %797 = vmatprep.subr.bf16.mxu0 0
  %798 = vmatpush1.bf16.msra.mxu0 %v741
  %799 = vmatprep.subr.bf16.mxu0 0
  %800 = vmatpush1.bf16.msra.mxu0 %v740
  %801 = vmatprep.subr.bf16.mxu0 0
  %802 = vmatpush1.bf16.msra.mxu0 %v739
  %803 = vmatprep.subr.bf16.mxu0 0
  %804 = vmatpush2.bf16.msra.mxu0 %v754
  %805 = vmatprep.subr.bf16.mxu0 0
  %806 = vmatpush2.bf16.msra.mxu0 %v753
  %807 = vmatprep.subr.bf16.mxu0 0
  %808 = vmatpush2.bf16.msra.mxu0 %v752
  %809 = vmatprep.subr.bf16.mxu0 0
  %810 = vmatpush2.bf16.msra.mxu0 %v751
  %811 = vmatprep.subr.bf16.mxu0 0
  %812 = vmatpush2.bf16.msra.mxu0 %v750
  %813 = vmatprep.subr.bf16.mxu0 0
  %814 = vmatpush2.bf16.msra.mxu0 %v749
  %815 = vmatprep.subr.bf16.mxu0 0
  %816 = vmatpush2.bf16.msra.mxu0 %v748
  %817 = vmatprep.subr.bf16.mxu0 0
  %818 = vmatpush2.bf16.msra.mxu0 %v747
  %819 = vmatprep.mubr.bf16.mxu0 %v500
  %820 = vmatmul.mubr.bf16.gmra.mxu0 %v499
  %v821 = vpop.f32.mrf.mxu0
  %v822 = vadd.f32 0.0, %v821
  %v823 = vpop.f32.mrf.mxu0
  %v824 = vpop.f32.mrf.mxu0
  %v825 = vadd.f32 0.0, %v824
  %v826 = vpop.f32.mrf.mxu0
  %827 = vmatprep.mubr.bf16.mxu0 %v503
  %828 = vmatmul.mubr.bf16.gmra.mxu0 %v502
  %v829 = vpop.f32.mrf.mxu0
  %v830 = vadd.f32 0.0, %v829
  %v831 = vpop.f32.mrf.mxu0
  %v832 = vpop.f32.mrf.mxu0
  %v833 = vadd.f32 0.0, %v832
  %v834 = vpop.f32.mrf.mxu0
  %835 = vmatprep.mubr.bf16.mxu0 %v506
  %836 = vmatmul.mubr.bf16.gmra.mxu0 %v505
  %v837 = vpop.f32.mrf.mxu0
  %v838 = vadd.f32 0.0, %v837
  %v839 = vpop.f32.mrf.mxu0
  %v840 = vpop.f32.mrf.mxu0
  %v841 = vadd.f32 0.0, %v840
  %v842 = vpop.f32.mrf.mxu0
  %843 = vmatprep.mubr.bf16.mxu0 %v509
  %844 = vmatmul.mubr.bf16.gmra.mxu0 %v508
  %v845 = vpop.f32.mrf.mxu0
  %v846 = vadd.f32 0.0, %v845
  %v847 = vpop.f32.mrf.mxu0
  %v848 = vpop.f32.mrf.mxu0
  %v849 = vadd.f32 0.0, %v848
  %v850 = vpop.f32.mrf.mxu0
  %851 = vmatprep.mubr.bf16.mxu0 %v512
  %852 = vmatmul.mubr.bf16.gmra.mxu0 %v511
  %v853 = vpop.f32.mrf.mxu0
  %v854 = vadd.f32 0.0, %v853
  %v855 = vpop.f32.mrf.mxu0
  %v856 = vpop.f32.mrf.mxu0
  %v857 = vadd.f32 0.0, %v856
  %v858 = vpop.f32.mrf.mxu0
  %859 = vmatprep.mubr.bf16.mxu0 %v515
  %860 = vmatmul.mubr.bf16.gmra.mxu0 %v514
  %v861 = vpop.f32.mrf.mxu0
  %v862 = vadd.f32 0.0, %v861
  %v863 = vpop.f32.mrf.mxu0
  %v864 = vpop.f32.mrf.mxu0
  %v865 = vadd.f32 0.0, %v864
  %v866 = vpop.f32.mrf.mxu0
  %867 = vmatprep.mubr.bf16.mxu0 %v518
  %868 = vmatmul.mubr.bf16.gmra.mxu0 %v517
  %v869 = vpop.f32.mrf.mxu0
  %v870 = vadd.f32 0.0, %v869
  %v871 = vpop.f32.mrf.mxu0
  %v872 = vpop.f32.mrf.mxu0
  %v873 = vadd.f32 0.0, %v872
  %v874 = vpop.f32.mrf.mxu0
  %875 = vmatprep.mubr.bf16.mxu0 %v521
  %876 = vmatmul.mubr.bf16.gmra.mxu0 %v520
  %v877 = vpop.f32.mrf.mxu0
  %v878 = vadd.f32 0.0, %v877
  %v879 = vpop.f32.mrf.mxu0
  %v880 = vpop.f32.mrf.mxu0
  %v881 = vadd.f32 0.0, %v880
  %v882 = vpop.f32.mrf.mxu0
  %883 = vmatprep.mubr.bf16.mxu0 %v524
  %884 = vmatmul.mubr.bf16.gmra.mxu0 %v523
  %v885 = vpop.f32.mrf.mxu0
  %v886 = vadd.f32 0.0, %v885
  %v887 = vpop.f32.mrf.mxu0
  %v888 = vpop.f32.mrf.mxu0
  %v889 = vadd.f32 0.0, %v888
  %v890 = vpop.f32.mrf.mxu0
  %891 = vmatprep.mubr.bf16.mxu0 %v527
  %892 = vmatmul.mubr.bf16.gmra.mxu0 %v526
  %v893 = vpop.f32.mrf.mxu0
  %v894 = vadd.f32 0.0, %v893
  %v895 = vpop.f32.mrf.mxu0
  %v896 = vpop.f32.mrf.mxu0
  %v897 = vadd.f32 0.0, %v896
  %v898 = vpop.f32.mrf.mxu0
  %899 = vmatprep.mubr.bf16.mxu0 %v530
  %900 = vmatmul.mubr.bf16.gmra.mxu0 %v529
  %v901 = vpop.f32.mrf.mxu0
  %v902 = vadd.f32 0.0, %v901
  %v903 = vpop.f32.mrf.mxu0
  %v904 = vpop.f32.mrf.mxu0
  %v905 = vadd.f32 0.0, %v904
  %v906 = vpop.f32.mrf.mxu0
  %907 = vmatprep.mubr.bf16.mxu0 %v533
  %908 = vmatmul.mubr.bf16.gmra.mxu0 %v532
  %v909 = vpop.f32.mrf.mxu0
  %v910 = vadd.f32 0.0, %v909
  %v911 = vpop.f32.mrf.mxu0
  %v912 = vpop.f32.mrf.mxu0
  %v913 = vadd.f32 0.0, %v912
  %v914 = vpop.f32.mrf.mxu0
  %915 = vmatprep.mubr.bf16.mxu0 %v536
  %916 = vmatmul.mubr.bf16.gmra.mxu0 %v535
  %v917 = vpop.f32.mrf.mxu0
  %v918 = vadd.f32 0.0, %v917
  %v919 = vpop.f32.mrf.mxu0
  %v920 = vpop.f32.mrf.mxu0
  %v921 = vadd.f32 0.0, %v920
  %v922 = vpop.f32.mrf.mxu0
  %923 = vmatprep.mubr.bf16.mxu0 %v539
  %924 = vmatmul.mubr.bf16.gmra.mxu0 %v538
  %v925 = vpop.f32.mrf.mxu0
  %v926 = vadd.f32 0.0, %v925
  %v927 = vpop.f32.mrf.mxu0
  %v928 = vpop.f32.mrf.mxu0
  %v929 = vadd.f32 0.0, %v928
  %v930 = vpop.f32.mrf.mxu0
  %931 = vmatprep.mubr.bf16.mxu0 %v542
  %932 = vmatmul.mubr.bf16.gmra.mxu0 %v541
  %v933 = vpop.f32.mrf.mxu0
  %v934 = vadd.f32 0.0, %v933
  %v935 = vpop.f32.mrf.mxu0
  %v936 = vpop.f32.mrf.mxu0
  %v937 = vadd.f32 0.0, %v936
  %v938 = vpop.f32.mrf.mxu0
  %939 = vmatprep.mubr.bf16.mxu0 %v545
  %940 = vmatmul.mubr.bf16.gmra.mxu0 %v544
  %v941 = vpop.f32.mrf.mxu0
  %v942 = vadd.f32 0.0, %v941
  %v943 = vpop.f32.mrf.mxu0
  %v944 = vpop.f32.mrf.mxu0
  %v945 = vadd.f32 0.0, %v944
  %v946 = vpop.f32.mrf.mxu0
  %947 = vmatprep.mubr.bf16.mxu0 %v548
  %948 = vmatmul.mubr.bf16.gmra.mxu0 %v547
  %v949 = vpop.f32.mrf.mxu0
  %v950 = vadd.f32 0.0, %v949
  %v951 = vpop.f32.mrf.mxu0
  %v952 = vpop.f32.mrf.mxu0
  %v953 = vadd.f32 0.0, %v952
  %v954 = vpop.f32.mrf.mxu0
  %955 = vmatprep.mubr.bf16.mxu0 %v551
  %956 = vmatmul.mubr.bf16.gmra.mxu0 %v550
  %v957 = vpop.f32.mrf.mxu0
  %v958 = vadd.f32 0.0, %v957
  %v959 = vpop.f32.mrf.mxu0
  %v960 = vpop.f32.mrf.mxu0
  %v961 = vadd.f32 0.0, %v960
  %v962 = vpop.f32.mrf.mxu0
  %963 = vmatprep.mubr.bf16.mxu0 %v554
  %964 = vmatmul.mubr.bf16.gmra.mxu0 %v553
  %v965 = vpop.f32.mrf.mxu0
  %v966 = vadd.f32 0.0, %v965
  %v967 = vpop.f32.mrf.mxu0
  %v968 = vpop.f32.mrf.mxu0
  %v969 = vadd.f32 0.0, %v968
  %v970 = vpop.f32.mrf.mxu0
  %971 = vmatprep.mubr.bf16.mxu0 %v557
  %972 = vmatmul.mubr.bf16.gmra.mxu0 %v556
  %v973 = vpop.f32.mrf.mxu0
  %v974 = vadd.f32 0.0, %v973
  %v975 = vpop.f32.mrf.mxu0
  %v976 = vpop.f32.mrf.mxu0
  %v977 = vadd.f32 0.0, %v976
  %v978 = vpop.f32.mrf.mxu0
  %979 = vmatprep.mubr.bf16.mxu0 %v560
  %980 = vmatmul.mubr.bf16.gmra.mxu0 %v559
  %v981 = vpop.f32.mrf.mxu0
  %v982 = vadd.f32 0.0, %v981
  %v983 = vpop.f32.mrf.mxu0
  %v984 = vpop.f32.mrf.mxu0
  %v985 = vadd.f32 0.0, %v984
  %v986 = vpop.f32.mrf.mxu0
  %987 = vmatprep.mubr.bf16.mxu0 %v563
  %988 = vmatmul.mubr.bf16.gmra.mxu0 %v562
  %v989 = vpop.f32.mrf.mxu0
  %v990 = vadd.f32 0.0, %v989
  %v991 = vpop.f32.mrf.mxu0
  %v992 = vpop.f32.mrf.mxu0
  %v993 = vadd.f32 0.0, %v992
  %v994 = vpop.f32.mrf.mxu0
  %995 = vmatprep.mubr.bf16.mxu0 %v566
  %996 = vmatmul.mubr.bf16.gmra.mxu0 %v565
  %v997 = vpop.f32.mrf.mxu0
  %v998 = vadd.f32 0.0, %v997
  %v999 = vpop.f32.mrf.mxu0
  %v1000 = vpop.f32.mrf.mxu0
  %v1001 = vadd.f32 0.0, %v1000
  %v1002 = vpop.f32.mrf.mxu0
  %1003 = vmatprep.mubr.bf16.mxu0 %v569
  %1004 = vmatmul.mubr.bf16.gmra.mxu0 %v568
  %v1005 = vpop.f32.mrf.mxu0
  %v1006 = vadd.f32 0.0, %v1005
  %v1007 = vpop.f32.mrf.mxu0
  %v1008 = vpop.f32.mrf.mxu0
  %v1009 = vadd.f32 0.0, %v1008
  %v1010 = vpop.f32.mrf.mxu0
  %1011 = vdwg.mxu0
  %1012 = vmatprep.subr.bf16.mxu0 0
  %1013 = vmatpush1.bf16.msra.mxu0 %v762
  %1014 = vmatprep.subr.bf16.mxu0 0
  %1015 = vmatpush1.bf16.msra.mxu0 %v761
  %1016 = vmatprep.subr.bf16.mxu0 0
  %1017 = vmatpush1.bf16.msra.mxu0 %v760
  %1018 = vmatprep.subr.bf16.mxu0 0
  %1019 = vmatpush1.bf16.msra.mxu0 %v759
  %1020 = vmatprep.subr.bf16.mxu0 0
  %1021 = vmatpush1.bf16.msra.mxu0 %v758
  %1022 = vmatprep.subr.bf16.mxu0 0
  %1023 = vmatpush1.bf16.msra.mxu0 %v757
  %1024 = vmatprep.subr.bf16.mxu0 0
  %1025 = vmatpush1.bf16.msra.mxu0 %v756
  %1026 = vmatprep.subr.bf16.mxu0 0
  %1027 = vmatpush1.bf16.msra.mxu0 %v755
  %1028 = vmatprep.subr.bf16.mxu0 0
  %1029 = vmatpush2.bf16.msra.mxu0 0
  %1030 = vmatprep.subr.bf16.mxu0 0
  %1031 = vmatpush2.bf16.msra.mxu0 0
  %1032 = vmatprep.subr.bf16.mxu0 0
  %1033 = vmatpush2.bf16.msra.mxu0 0
  %1034 = vmatprep.subr.bf16.mxu0 0
  %1035 = vmatpush2.bf16.msra.mxu0 0
  %1036 = vmatprep.subr.bf16.mxu0 0
  %1037 = vmatpush2.bf16.msra.mxu0 0
  %1038 = vmatprep.subr.bf16.mxu0 0
  %1039 = vmatpush2.bf16.msra.mxu0 0
  %1040 = vmatprep.subr.bf16.mxu0 0
  %1041 = vmatpush2.bf16.msra.mxu0 0
  %1042 = vmatprep.subr.bf16.mxu0 0
  %1043 = vmatpush2.bf16.msra.mxu0 0
  %1044 = vmatprep.mubr.bf16.mxu0 0
  %1045 = vmatmul.mubr.bf16.gmra.mxu0 %v501
  %v1046 = vpop.f32.mrf.mxu0
  %v1047 = vadd.f32 %v822, %v1046
  %v1048 = vpop.f32.mrf.mxu0
  %v1049 = vpop.f32.mrf.mxu0
  %v1050 = vadd.f32 %v825, %v1049
  %v1051 = vpop.f32.mrf.mxu0
  %1052 = vmatprep.mubr.bf16.mxu0 0
  %1053 = vmatmul.mubr.bf16.gmra.mxu0 %v504
  %v1054 = vpop.f32.mrf.mxu0
  %v1055 = vadd.f32 %v830, %v1054
  %v1056 = vpop.f32.mrf.mxu0
  %v1057 = vpop.f32.mrf.mxu0
  %v1058 = vadd.f32 %v833, %v1057
  %v1059 = vpop.f32.mrf.mxu0
  %1060 = vmatprep.mubr.bf16.mxu0 0
  %1061 = vmatmul.mubr.bf16.gmra.mxu0 %v507
  %v1062 = vpop.f32.mrf.mxu0
  %v1063 = vadd.f32 %v838, %v1062
  %v1064 = vpop.f32.mrf.mxu0
  %v1065 = vpop.f32.mrf.mxu0
  %v1066 = vadd.f32 %v841, %v1065
  %v1067 = vpop.f32.mrf.mxu0
  %1068 = vmatprep.mubr.bf16.mxu0 0
  %1069 = vmatmul.mubr.bf16.gmra.mxu0 %v510
  %v1070 = vpop.f32.mrf.mxu0
  %v1071 = vadd.f32 %v846, %v1070
  %v1072 = vpop.f32.mrf.mxu0
  %v1073 = vpop.f32.mrf.mxu0
  %v1074 = vadd.f32 %v849, %v1073
  %v1075 = vpop.f32.mrf.mxu0
  %1076 = vmatprep.mubr.bf16.mxu0 0
  %1077 = vmatmul.mubr.bf16.gmra.mxu0 %v513
  %v1078 = vpop.f32.mrf.mxu0
  %v1079 = vadd.f32 %v854, %v1078
  %v1080 = vpop.f32.mrf.mxu0
  %v1081 = vpop.f32.mrf.mxu0
  %v1082 = vadd.f32 %v857, %v1081
  %v1083 = vpop.f32.mrf.mxu0
  %1084 = vmatprep.mubr.bf16.mxu0 0
  %1085 = vmatmul.mubr.bf16.gmra.mxu0 %v516
  %v1086 = vpop.f32.mrf.mxu0
  %v1087 = vadd.f32 %v862, %v1086
  %v1088 = vpop.f32.mrf.mxu0
  %v1089 = vpop.f32.mrf.mxu0
  %v1090 = vadd.f32 %v865, %v1089
  %v1091 = vpop.f32.mrf.mxu0
  %1092 = vmatprep.mubr.bf16.mxu0 0
  %1093 = vmatmul.mubr.bf16.gmra.mxu0 %v519
  %v1094 = vpop.f32.mrf.mxu0
  %v1095 = vadd.f32 %v870, %v1094
  %v1096 = vpop.f32.mrf.mxu0
  %v1097 = vpop.f32.mrf.mxu0
  %v1098 = vadd.f32 %v873, %v1097
  %v1099 = vpop.f32.mrf.mxu0
  %1100 = vmatprep.mubr.bf16.mxu0 0
  %1101 = vmatmul.mubr.bf16.gmra.mxu0 %v522
  %v1102 = vpop.f32.mrf.mxu0
  %v1103 = vadd.f32 %v878, %v1102
  %v1104 = vpop.f32.mrf.mxu0
  %v1105 = vpop.f32.mrf.mxu0
  %v1106 = vadd.f32 %v881, %v1105
  %v1107 = vpop.f32.mrf.mxu0
  %1108 = vmatprep.mubr.bf16.mxu0 0
  %1109 = vmatmul.mubr.bf16.gmra.mxu0 %v525
  %v1110 = vpop.f32.mrf.mxu0
  %v1111 = vadd.f32 %v886, %v1110
  %v1112 = vpop.f32.mrf.mxu0
  %v1113 = vpop.f32.mrf.mxu0
  %v1114 = vadd.f32 %v889, %v1113
  %v1115 = vpop.f32.mrf.mxu0
  %1116 = vmatprep.mubr.bf16.mxu0 0
  %1117 = vmatmul.mubr.bf16.gmra.mxu0 %v528
  %v1118 = vpop.f32.mrf.mxu0
  %v1119 = vadd.f32 %v894, %v1118
  %v1120 = vpop.f32.mrf.mxu0
  %v1121 = vpop.f32.mrf.mxu0
  %v1122 = vadd.f32 %v897, %v1121
  %v1123 = vpop.f32.mrf.mxu0
  %1124 = vmatprep.mubr.bf16.mxu0 0
  %1125 = vmatmul.mubr.bf16.gmra.mxu0 %v531
  %v1126 = vpop.f32.mrf.mxu0
  %v1127 = vadd.f32 %v902, %v1126
  %v1128 = vpop.f32.mrf.mxu0
  %v1129 = vpop.f32.mrf.mxu0
  %v1130 = vadd.f32 %v905, %v1129
  %v1131 = vpop.f32.mrf.mxu0
  %1132 = vmatprep.mubr.bf16.mxu0 0
  %1133 = vmatmul.mubr.bf16.gmra.mxu0 %v534
  %v1134 = vpop.f32.mrf.mxu0
  %v1135 = vadd.f32 %v910, %v1134
  %v1136 = vpop.f32.mrf.mxu0
  %v1137 = vpop.f32.mrf.mxu0
  %v1138 = vadd.f32 %v913, %v1137
  %v1139 = vpop.f32.mrf.mxu0
  %1140 = vmatprep.mubr.bf16.mxu0 0
  %1141 = vmatmul.mubr.bf16.gmra.mxu0 %v537
  %v1142 = vpop.f32.mrf.mxu0
  %v1143 = vadd.f32 %v918, %v1142
  %v1144 = vpop.f32.mrf.mxu0
  %v1145 = vpop.f32.mrf.mxu0
  %v1146 = vadd.f32 %v921, %v1145
  %v1147 = vpop.f32.mrf.mxu0
  %1148 = vmatprep.mubr.bf16.mxu0 0
  %1149 = vmatmul.mubr.bf16.gmra.mxu0 %v540
  %v1150 = vpop.f32.mrf.mxu0
  %v1151 = vadd.f32 %v926, %v1150
  %v1152 = vpop.f32.mrf.mxu0
  %v1153 = vpop.f32.mrf.mxu0
  %v1154 = vadd.f32 %v929, %v1153
  %v1155 = vpop.f32.mrf.mxu0
  %1156 = vmatprep.mubr.bf16.mxu0 0
  %1157 = vmatmul.mubr.bf16.gmra.mxu0 %v543
  %v1158 = vpop.f32.mrf.mxu0
  %v1159 = vadd.f32 %v934, %v1158
  %v1160 = vpop.f32.mrf.mxu0
  %v1161 = vpop.f32.mrf.mxu0
  %v1162 = vadd.f32 %v937, %v1161
  %v1163 = vpop.f32.mrf.mxu0
  %1164 = vmatprep.mubr.bf16.mxu0 0
  %1165 = vmatmul.mubr.bf16.gmra.mxu0 %v546
  %v1166 = vpop.f32.mrf.mxu0
  %v1167 = vadd.f32 %v942, %v1166
  %v1168 = vpop.f32.mrf.mxu0
  %v1169 = vpop.f32.mrf.mxu0
  %v1170 = vadd.f32 %v945, %v1169
  %v1171 = vpop.f32.mrf.mxu0
  %1172 = vmatprep.mubr.bf16.mxu0 0
  %1173 = vmatmul.mubr.bf16.gmra.mxu0 %v549
  %v1174 = vpop.f32.mrf.mxu0
  %v1175 = vadd.f32 %v950, %v1174
  %v1176 = vpop.f32.mrf.mxu0
  %v1177 = vpop.f32.mrf.mxu0
  %v1178 = vadd.f32 %v953, %v1177
  %v1179 = vpop.f32.mrf.mxu0
  %1180 = vmatprep.mubr.bf16.mxu0 0
  %1181 = vmatmul.mubr.bf16.gmra.mxu0 %v552
  %v1182 = vpop.f32.mrf.mxu0
  %v1183 = vadd.f32 %v958, %v1182
  %v1184 = vpop.f32.mrf.mxu0
  %v1185 = vpop.f32.mrf.mxu0
  %v1186 = vadd.f32 %v961, %v1185
  %v1187 = vpop.f32.mrf.mxu0
  %1188 = vmatprep.mubr.bf16.mxu0 0
  %1189 = vmatmul.mubr.bf16.gmra.mxu0 %v555
  %v1190 = vpop.f32.mrf.mxu0
  %v1191 = vadd.f32 %v966, %v1190
  %v1192 = vpop.f32.mrf.mxu0
  %v1193 = vpop.f32.mrf.mxu0
  %v1194 = vadd.f32 %v969, %v1193
  %v1195 = vpop.f32.mrf.mxu0
  %1196 = vmatprep.mubr.bf16.mxu0 0
  %1197 = vmatmul.mubr.bf16.gmra.mxu0 %v558
  %v1198 = vpop.f32.mrf.mxu0
  %v1199 = vadd.f32 %v974, %v1198
  %v1200 = vpop.f32.mrf.mxu0
  %v1201 = vpop.f32.mrf.mxu0
  %v1202 = vadd.f32 %v977, %v1201
  %v1203 = vpop.f32.mrf.mxu0
  %1204 = vmatprep.mubr.bf16.mxu0 0
  %1205 = vmatmul.mubr.bf16.gmra.mxu0 %v561
  %v1206 = vpop.f32.mrf.mxu0
  %v1207 = vadd.f32 %v982, %v1206
  %v1208 = vpop.f32.mrf.mxu0
  %v1209 = vpop.f32.mrf.mxu0
  %v1210 = vadd.f32 %v985, %v1209
  %v1211 = vpop.f32.mrf.mxu0
  %1212 = vmatprep.mubr.bf16.mxu0 0
  %1213 = vmatmul.mubr.bf16.gmra.mxu0 %v564
  %v1214 = vpop.f32.mrf.mxu0
  %v1215 = vadd.f32 %v990, %v1214
  %v1216 = vpop.f32.mrf.mxu0
  %v1217 = vpop.f32.mrf.mxu0
  %v1218 = vadd.f32 %v993, %v1217
  %v1219 = vpop.f32.mrf.mxu0
  %1220 = vmatprep.mubr.bf16.mxu0 0
  %1221 = vmatmul.mubr.bf16.gmra.mxu0 %v567
  %v1222 = vpop.f32.mrf.mxu0
  %v1223 = vadd.f32 %v998, %v1222
  %v1224 = vpop.f32.mrf.mxu0
  %v1225 = vpop.f32.mrf.mxu0
  %v1226 = vadd.f32 %v1001, %v1225
  %v1227 = vpop.f32.mrf.mxu0
  %1228 = vmatprep.mubr.bf16.mxu0 0
  %1229 = vmatmul.mubr.bf16.gmra.mxu0 %v570
  %v1230 = vpop.f32.mrf.mxu0
  %v1231 = vadd.f32 %v1006, %v1230
  %v1232 = vpop.f32.mrf.mxu0
  %v1233 = vpop.f32.mrf.mxu0
  %v1234 = vadd.f32 %v1009, %v1233
  %v1235 = vpop.f32.mrf.mxu0
  %1236 = vdwg.mxu0
  %v1237 = vadd.f32 %v67, %v1047
  %v1238 = vadd.f32 %v68, %v1050
  %v1239 = vadd.f32 %v69, %v1055
  %v1240 = vadd.f32 %v70, %v1058
  %v1241 = vadd.f32 %v71, %v1063
  %v1242 = vadd.f32 %v72, %v1066
  %v1243 = vadd.f32 %v73, %v1071
  %v1244 = vadd.f32 %v74, %v1074
  %v1245 = vadd.f32 %v75, %v1079
  %v1246 = vadd.f32 %v76, %v1082
  %v1247 = vadd.f32 %v77, %v1087
  %v1248 = vadd.f32 %v78, %v1090
  %v1249 = vadd.f32 %v79, %v1095
  %v1250 = vadd.f32 %v80, %v1098
  %v1251 = vadd.f32 %v81, %v1103
  %v1252 = vadd.f32 %v82, %v1106
  %v1253 = vadd.f32 %v83, %v1111
  %v1254 = vadd.f32 %v84, %v1114
  %v1255 = vadd.f32 %v85, %v1119
  %v1256 = vadd.f32 %v86, %v1122
  %v1257 = vadd.f32 %v87, %v1127
  %v1258 = vadd.f32 %v88, %v1130
  %v1259 = vadd.f32 %v89, %v1135
  %v1260 = vadd.f32 %v90, %v1138
  %v1261 = vadd.f32 %v91, %v1143
  %v1262 = vadd.f32 %v92, %v1146
  %v1263 = vadd.f32 %v93, %v1151
  %v1264 = vadd.f32 %v94, %v1154
  %v1265 = vadd.f32 %v95, %v1159
  %v1266 = vadd.f32 %v96, %v1162
  %v1267 = vadd.f32 %v97, %v1167
  %v1268 = vadd.f32 %v98, %v1170
  %v1269 = vadd.f32 %v99, %v1175
  %v1270 = vadd.f32 %v100, %v1178
  %v1271 = vadd.f32 %v101, %v1183
  %v1272 = vadd.f32 %v102, %v1186
  %v1273 = vadd.f32 %v103, %v1191
  %v1274 = vadd.f32 %v104, %v1194
  %v1275 = vadd.f32 %v105, %v1199
  %v1276 = vadd.f32 %v106, %v1202
  %v1277 = vadd.f32 %v107, %v1207
  %v1278 = vadd.f32 %v108, %v1210
  %v1279 = vadd.f32 %v109, %v1215
  %v1280 = vadd.f32 %v110, %v1218
  %v1281 = vadd.f32 %v111, %v1223
  %v1282 = vadd.f32 %v112, %v1226
  %v1283 = vadd.f32 %v113, %v1231
  %v1284 = vadd.f32 %v114, %v1234
  %1285 = vst [vmem:[#allocation2] sm:$0xff] %v1237
  %1286 = vst [vmem:[#allocation2 + $0x8] sm:$0xff] %v1238
  %1287 = vst [vmem:[#allocation2 + $0x10] sm:$0xff] %v1239
  %1288 = vst [vmem:[#allocation2 + $0x18] sm:$0xff] %v1240
  %1289 = vst [vmem:[#allocation2 + $0x20] sm:$0xff] %v1241
  %1290 = vst [vmem:[#allocation2 + $0x28] sm:$0xff] %v1242
  %1291 = vst [vmem:[#allocation2 + $0x30] sm:$0xff] %v1243
  %1292 = vst [vmem:[#allocation2 + $0x38] sm:$0xff] %v1244
  %1293 = vst [vmem:[#allocation2 + $0x40] sm:$0xff] %v1245
  %1294 = vst [vmem:[#allocation2 + $0x48] sm:$0xff] %v1246
  %1295 = vst [vmem:[#allocation2 + $0x50] sm:$0xff] %v1247
  %1296 = vst [vmem:[#allocation2 + $0x58] sm:$0xff] %v1248
  %1297 = vst [vmem:[#allocation2 + $0x60] sm:$0xff] %v1249
  %1298 = vst [vmem:[#allocation2 + $0x68] sm:$0xff] %v1250
  %1299 = vst [vmem:[#allocation2 + $0x70] sm:$0xff] %v1251
  %1300 = vst [vmem:[#allocation2 + $0x78] sm:$0xff] %v1252
  %1301 = vst [vmem:[#allocation2 + $0x80] sm:$0xff] %v1253
  %1302 = vst [vmem:[#allocation2 + $0x88] sm:$0xff] %v1254
  %1303 = vst [vmem:[#allocation2 + $0x90] sm:$0xff] %v1255
  %1304 = vst [vmem:[#allocation2 + $0x98] sm:$0xff] %v1256
  %1305 = vst [vmem:[#allocation2 + $0xa0] sm:$0xff] %v1257
  %1306 = vst [vmem:[#allocation2 + $0xa8] sm:$0xff] %v1258
  %1307 = vst [vmem:[#allocation2 + $0xb0] sm:$0xff] %v1259
  %1308 = vst [vmem:[#allocation2 + $0xb8] sm:$0xff] %v1260
  %1309 = vst [vmem:[#allocation2 + $0xc0] sm:$0xff] %v1261
  %1310 = vst [vmem:[#allocation2 + $0xc8] sm:$0xff] %v1262
  %1311 = vst [vmem:[#allocation2 + $0xd0] sm:$0xff] %v1263
  %1312 = vst [vmem:[#allocation2 + $0xd8] sm:$0xff] %v1264
  %1313 = vst [vmem:[#allocation2 + $0xe0] sm:$0xff] %v1265
  %1314 = vst [vmem:[#allocation2 + $0xe8] sm:$0xff] %v1266
  %1315 = vst [vmem:[#allocation2 + $0xf0] sm:$0xff] %v1267
  %1316 = vst [vmem:[#allocation2 + $0xf8] sm:$0xff] %v1268
  %1317 = vst [vmem:[#allocation2 + $0x100] sm:$0xff] %v1269
  %1318 = vst [vmem:[#allocation2 + $0x108] sm:$0xff] %v1270
  %1319 = vst [vmem:[#allocation2 + $0x110] sm:$0xff] %v1271
  %1320 = vst [vmem:[#allocation2 + $0x118] sm:$0xff] %v1272
  %1321 = vst [vmem:[#allocation2 + $0x120] sm:$0xff] %v1273
  %1322 = vst [vmem:[#allocation2 + $0x128] sm:$0xff] %v1274
  %1323 = vst [vmem:[#allocation2 + $0x130] sm:$0xff] %v1275
  %1324 = vst [vmem:[#allocation2 + $0x138] sm:$0xff] %v1276
  %1325 = vst [vmem:[#allocation2 + $0x140] sm:$0xff] %v1277
  %1326 = vst [vmem:[#allocation2 + $0x148] sm:$0xff] %v1278
  %1327 = vst [vmem:[#allocation2 + $0x150] sm:$0xff] %v1279
  %1328 = vst [vmem:[#allocation2 + $0x158] sm:$0xff] %v1280
  %1329 = vst [vmem:[#allocation2 + $0x160] sm:$0xff] %v1281
  %1330 = vst [vmem:[#allocation2 + $0x168] sm:$0xff] %v1282
  %1331 = vst [vmem:[#allocation2 + $0x170] sm:$0xff] %v1283
  %1332 = vst [vmem:[#allocation2 + $0x178] sm:$0xff] %v1284
  // Predicated region
  $region18: #{gcn_forward.3} parent=0 // pred_check
    %p1333 = pneg %p15
  $region19: #{gcn_forward.3} parent=0 // pred_check_branch
    %1335 = sbr.rel (%p1333) target = $region21
  $region20: #{gcn_forward.3} parent=0 // pred_region
    %v1336 = vld [vmem:[#allocation2] sm:$0xff]
    %v1337 = vld [vmem:[#allocation2 + $0x8] sm:$0xff]
    %v1338 = vld [vmem:[#allocation2 + $0x10] sm:$0xff]
    %v1339 = vld [vmem:[#allocation2 + $0x18] sm:$0xff]
    %v1340 = vld [vmem:[#allocation2 + $0x20] sm:$0xff]
    %v1341 = vld [vmem:[#allocation2 + $0x28] sm:$0xff]
    %v1342 = vld [vmem:[#allocation2 + $0x30] sm:$0xff]
    %v1343 = vld [vmem:[#allocation2 + $0x38] sm:$0xff]
    %v1344 = vld [vmem:[#allocation2 + $0x40] sm:$0xff]
    %v1345 = vld [vmem:[#allocation2 + $0x48] sm:$0xff]
    %v1346 = vld [vmem:[#allocation2 + $0x50] sm:$0xff]
    %v1347 = vld [vmem:[#allocation2 + $0x58] sm:$0xff]
    %v1348 = vld [vmem:[#allocation2 + $0x60] sm:$0xff]
    %v1349 = vld [vmem:[#allocation2 + $0x68] sm:$0xff]
    %v1350 = vld [vmem:[#allocation2 + $0x70] sm:$0xff]
    %v1351 = vld [vmem:[#allocation2 + $0x78] sm:$0xff]
    %v1352 = vld [vmem:[#allocation2 + $0x80] sm:$0xff]
    %v1353 = vld [vmem:[#allocation2 + $0x88] sm:$0xff]
    %v1354 = vld [vmem:[#allocation2 + $0x90] sm:$0xff]
    %v1355 = vld [vmem:[#allocation2 + $0x98] sm:$0xff]
    %v1356 = vld [vmem:[#allocation2 + $0xa0] sm:$0xff]
    %v1357 = vld [vmem:[#allocation2 + $0xa8] sm:$0xff]
    %v1358 = vld [vmem:[#allocation2 + $0xb0] sm:$0xff]
    %v1359 = vld [vmem:[#allocation2 + $0xb8] sm:$0xff]
    %v1360 = vld [vmem:[#allocation2 + $0xc0] sm:$0xff]
    %v1361 = vld [vmem:[#allocation2 + $0xc8] sm:$0xff]
    %v1362 = vld [vmem:[#allocation2 + $0xd0] sm:$0xff]
    %v1363 = vld [vmem:[#allocation2 + $0xd8] sm:$0xff]
    %v1364 = vld [vmem:[#allocation2 + $0xe0] sm:$0xff]
    %v1365 = vld [vmem:[#allocation2 + $0xe8] sm:$0xff]
    %v1366 = vld [vmem:[#allocation2 + $0xf0] sm:$0xff]
    %v1367 = vld [vmem:[#allocation2 + $0xf8] sm:$0xff]
    %v1368 = vld [vmem:[#allocation2 + $0x100] sm:$0xff]
    %v1369 = vld [vmem:[#allocation2 + $0x108] sm:$0xff]
    %v1370 = vld [vmem:[#allocation2 + $0x110] sm:$0xff]
    %v1371 = vld [vmem:[#allocation2 + $0x118] sm:$0xff]
    %v1372 = vld [vmem:[#allocation2 + $0x120] sm:$0xff]
    %v1373 = vld [vmem:[#allocation2 + $0x128] sm:$0xff]
    %v1374 = vld [vmem:[#allocation2 + $0x130] sm:$0xff]
    %v1375 = vld [vmem:[#allocation2 + $0x138] sm:$0xff]
    %v1376 = vld [vmem:[#allocation2 + $0x140] sm:$0xff]
    %v1377 = vld [vmem:[#allocation2 + $0x148] sm:$0xff]
    %v1378 = vld [vmem:[#allocation2 + $0x150] sm:$0xff]
    %v1379 = vld [vmem:[#allocation2 + $0x158] sm:$0xff]
    %v1380 = vld [vmem:[#allocation2 + $0x160] sm:$0xff]
    %v1381 = vld [vmem:[#allocation2 + $0x168] sm:$0xff]
    %v1382 = vld [vmem:[#allocation2 + $0x170] sm:$0xff]
    %v1383 = vld [vmem:[#allocation2 + $0x178] sm:$0xff]
    %v1384 = vld [vmem:[%s2] sm:$0x1]
    %v1386 = vlaneseq
    %v1387 = vshrl.u32 %v1386, 7
    %v1388 = vsub.s32 0, %v1387
    %v1389 = vrot.slane %v1384, %v1388
    %v1391 = vadd.f32 %v1336, %v1389
    %v1392 = vadd.f32 %v1337, %v1389
    %v1393 = vadd.f32 %v1338, %v1389
    %v1394 = vadd.f32 %v1339, %v1389
    %v1395 = vadd.f32 %v1340, %v1389
    %v1396 = vadd.f32 %v1341, %v1389
    %v1397 = vadd.f32 %v1342, %v1389
    %v1398 = vadd.f32 %v1343, %v1389
    %v1399 = vadd.f32 %v1344, %v1389
    %v1400 = vadd.f32 %v1345, %v1389
    %v1401 = vadd.f32 %v1346, %v1389
    %v1402 = vadd.f32 %v1347, %v1389
    %v1403 = vadd.f32 %v1348, %v1389
    %v1404 = vadd.f32 %v1349, %v1389
    %v1405 = vadd.f32 %v1350, %v1389
    %v1406 = vadd.f32 %v1351, %v1389
    %v1407 = vadd.f32 %v1352, %v1389
    %v1408 = vadd.f32 %v1353, %v1389
    %v1409 = vadd.f32 %v1354, %v1389
    %v1410 = vadd.f32 %v1355, %v1389
    %v1411 = vadd.f32 %v1356, %v1389
    %v1412 = vadd.f32 %v1357, %v1389
    %v1413 = vadd.f32 %v1358, %v1389
    %v1414 = vadd.f32 %v1359, %v1389
    %v1415 = vadd.f32 %v1360, %v1389
    %v1416 = vadd.f32 %v1361, %v1389
    %v1417 = vadd.f32 %v1362, %v1389
    %v1418 = vadd.f32 %v1363, %v1389
    %v1419 = vadd.f32 %v1364, %v1389
    %v1420 = vadd.f32 %v1365, %v1389
    %v1421 = vadd.f32 %v1366, %v1389
    %v1422 = vadd.f32 %v1367, %v1389
    %v1423 = vadd.f32 %v1368, %v1389
    %v1424 = vadd.f32 %v1369, %v1389
    %v1425 = vadd.f32 %v1370, %v1389
    %v1426 = vadd.f32 %v1371, %v1389
    %v1427 = vadd.f32 %v1372, %v1389
    %v1428 = vadd.f32 %v1373, %v1389
    %v1429 = vadd.f32 %v1374, %v1389
    %v1430 = vadd.f32 %v1375, %v1389
    %v1431 = vadd.f32 %v1376, %v1389
    %v1432 = vadd.f32 %v1377, %v1389
    %v1433 = vadd.f32 %v1378, %v1389
    %v1434 = vadd.f32 %v1379, %v1389
    %v1435 = vadd.f32 %v1380, %v1389
    %v1436 = vadd.f32 %v1381, %v1389
    %v1437 = vadd.f32 %v1382, %v1389
    %v1438 = vadd.f32 %v1383, %v1389
    %1439 = vst [vmem:[%s3] sm:$0xff] %v1391
    %1440 = vst [vmem:[%s3 + $0x8] sm:$0xff] %v1392
    %1441 = vst [vmem:[%s3 + $0x10] sm:$0xff] %v1393
    %1442 = vst [vmem:[%s3 + $0x18] sm:$0xff] %v1394
    %1443 = vst [vmem:[%s3 + $0x20] sm:$0xff] %v1395
    %1444 = vst [vmem:[%s3 + $0x28] sm:$0xff] %v1396
    %1445 = vst [vmem:[%s3 + $0x30] sm:$0xff] %v1397
    %1446 = vst [vmem:[%s3 + $0x38] sm:$0xff] %v1398
    %1447 = vst [vmem:[%s3 + $0x40] sm:$0xff] %v1399
    %1448 = vst [vmem:[%s3 + $0x48] sm:$0xff] %v1400
    %1449 = vst [vmem:[%s3 + $0x50] sm:$0xff] %v1401
    %1450 = vst [vmem:[%s3 + $0x58] sm:$0xff] %v1402
    %1451 = vst [vmem:[%s3 + $0x60] sm:$0xff] %v1403
    %1452 = vst [vmem:[%s3 + $0x68] sm:$0xff] %v1404
    %1453 = vst [vmem:[%s3 + $0x70] sm:$0xff] %v1405
    %1454 = vst [vmem:[%s3 + $0x78] sm:$0xff] %v1406
    %1455 = vst [vmem:[%s3 + $0x80] sm:$0xff] %v1407
    %1456 = vst [vmem:[%s3 + $0x88] sm:$0xff] %v1408
    %1457 = vst [vmem:[%s3 + $0x90] sm:$0xff] %v1409
    %1458 = vst [vmem:[%s3 + $0x98] sm:$0xff] %v1410
    %1459 = vst [vmem:[%s3 + $0xa0] sm:$0xff] %v1411
    %1460 = vst [vmem:[%s3 + $0xa8] sm:$0xff] %v1412
    %1461 = vst [vmem:[%s3 + $0xb0] sm:$0xff] %v1413
    %1462 = vst [vmem:[%s3 + $0xb8] sm:$0xff] %v1414
    %1463 = vst [vmem:[%s3 + $0xc0] sm:$0xff] %v1415
    %1464 = vst [vmem:[%s3 + $0xc8] sm:$0xff] %v1416
    %1465 = vst [vmem:[%s3 + $0xd0] sm:$0xff] %v1417
    %1466 = vst [vmem:[%s3 + $0xd8] sm:$0xff] %v1418
    %1467 = vst [vmem:[%s3 + $0xe0] sm:$0xff] %v1419
    %1468 = vst [vmem:[%s3 + $0xe8] sm:$0xff] %v1420
    %1469 = vst [vmem:[%s3 + $0xf0] sm:$0xff] %v1421
    %1470 = vst [vmem:[%s3 + $0xf8] sm:$0xff] %v1422
    %1471 = vst [vmem:[%s3 + $0x100] sm:$0xff] %v1423
    %1472 = vst [vmem:[%s3 + $0x108] sm:$0xff] %v1424
    %1473 = vst [vmem:[%s3 + $0x110] sm:$0xff] %v1425
    %1474 = vst [vmem:[%s3 + $0x118] sm:$0xff] %v1426
    %1475 = vst [vmem:[%s3 + $0x120] sm:$0xff] %v1427
    %1476 = vst [vmem:[%s3 + $0x128] sm:$0xff] %v1428
    %1477 = vst [vmem:[%s3 + $0x130] sm:$0xff] %v1429
    %1478 = vst [vmem:[%s3 + $0x138] sm:$0xff] %v1430
    %1479 = vst [vmem:[%s3 + $0x140] sm:$0xff] %v1431
    %1480 = vst [vmem:[%s3 + $0x148] sm:$0xff] %v1432
    %1481 = vst [vmem:[%s3 + $0x150] sm:$0xff] %v1433
    %1482 = vst [vmem:[%s3 + $0x158] sm:$0xff] %v1434
    %1483 = vst [vmem:[%s3 + $0x160] sm:$0xff] %v1435
    %1484 = vst [vmem:[%s3 + $0x168] sm:$0xff] %v1436
    %1485 = vst [vmem:[%s3 + $0x170] sm:$0xff] %v1437
    %1486 = vst [vmem:[%s3 + $0x178] sm:$0xff] %v1438
  $region21: #{gcn_forward.3} parent=0 // pred_fallthru
    _
  // Predicated region
  $region22: #{gcn_forward.3} parent=0 // pred_check
    _
  $region23: #{gcn_forward.3} parent=0 // pred_check_branch
    %1488 = sbr.rel (0) target = $region25
  $region24: #{gcn_forward.3} parent=0 // pred_region
    _
  $region25: #{gcn_forward.3} parent=0 // pred_fallthru
    _
  // Predicated region
  $region26: #{gcn_forward.3} parent=0 // pred_check
    _
  $region27: #{gcn_forward.3} parent=0 // pred_check_branch
    %1490 = sbr.rel (0) target = $region29
  $region28: #{gcn_forward.3} parent=0 // pred_region
    _
  $region29: #{gcn_forward.3} parent=0 // pred_fallthru
    _

// kernel: gcn_forward.2
$region0: #{gcn_forward.2}
  #allocation0 [shape = 'u32[]', space=smem, size = 0x4, offset = 0x4, fixed_abs, tag = 'smem constant byte address 0x4 - core index']
  #allocation1 [shape = 'u32[144,128]{1,0:T(1,128)}', space=vmem, size = 0x12000, scoped, tag = 'internal scratch']
  #allocation2 [shape = 'f32[384,128]{1,0:T(8,128)}', space=vmem, size = 0x30000, scoped, tag = 'scratch operand']
  %s0 = inlined_call_operand.vmem [shape: bf16[384,384], index: 0, kind: input, shape index: {}]
  %s1 = inlined_call_operand.vmem [shape: bf16[384,128], index: 1, kind: input, shape index: {}]
  %s2 = inlined_call_operand.vmem [shape: f32[1,128], index: 2, kind: input, shape index: {}]
  %s3 = inlined_call_operand.vmem [shape: bf16[128,128], index: 3, kind: input, shape index: {}]
  %s4 = inlined_call_operand.vmem [shape: bf16[384,128], index: 4, kind: output, shape index: {}]
  %s5 = sld [smem:[#allocation0]]
  $region34: #{gcn_forward.2} parent=0
    _
  %s7 = ssub.s32 1, %s5
  %s8 = scalar_select 0, %s7, %s5
  // Predicated region
  $region2: #{gcn_forward.2} parent=0 // pred_check
    _
  $region3: #{gcn_forward.2} parent=0 // pred_check_branch
    %10 = sbr.rel (0) target = $region5
  $region4: #{gcn_forward.2} parent=0 // pred_region
    _
  $region5: #{gcn_forward.2} parent=0 // pred_fallthru
    _
  // Predicated region
  $region6: #{gcn_forward.2} parent=0 // pred_check
    _
  $region7: #{gcn_forward.2} parent=0 // pred_check_branch
    %12 = sbr.rel (0) target = $region9
  $region8: #{gcn_forward.2} parent=0 // pred_region
    _
  $region9: #{gcn_forward.2} parent=0 // pred_fallthru
    _
  // Predicated region
  $region10: #{gcn_forward.2} parent=0 // pred_check
    _
  $region11: #{gcn_forward.2} parent=0 // pred_check_branch
    %14 = sbr.rel (0) target = $region13
  $region12: #{gcn_forward.2} parent=0 // pred_region
    _
  $region13: #{gcn_forward.2} parent=0 // pred_fallthru
    _
  // Predicated region
  $region14: #{gcn_forward.2} parent=0 // pred_check
    _
  $region15: #{gcn_forward.2} parent=0 // pred_check_branch
    %16 = sbr.rel (0) target = $region17
  $region16: #{gcn_forward.2} parent=0 // pred_region
    _
  $region17: #{gcn_forward.2} parent=0 // pred_fallthru
    _
  %p18 = scmp.eq.s32.totalorder 0, 0
  // Predicated region
  $region18: #{gcn_forward.2} parent=0 // pred_check
    %p19 = pneg %p18
  $region19: #{gcn_forward.2} parent=0 // pred_check_branch
    %21 = sbr.rel (%p19) target = $region21
  $region20: #{gcn_forward.2} parent=0 // pred_region
    %22 = vst [vmem:[#allocation2] sm:$0xff] 0.0
    %23 = vst [vmem:[#allocation2 + $0x8] sm:$0xff] 0.0
    %24 = vst [vmem:[#allocation2 + $0x10] sm:$0xff] 0.0
    %25 = vst [vmem:[#allocation2 + $0x18] sm:$0xff] 0.0
    %26 = vst [vmem:[#allocation2 + $0x20] sm:$0xff] 0.0
    %27 = vst [vmem:[#allocation2 + $0x28] sm:$0xff] 0.0
    %28 = vst [vmem:[#allocation2 + $0x30] sm:$0xff] 0.0
    %29 = vst [vmem:[#allocation2 + $0x38] sm:$0xff] 0.0
    %30 = vst [vmem:[#allocation2 + $0x40] sm:$0xff] 0.0
    %31 = vst [vmem:[#allocation2 + $0x48] sm:$0xff] 0.0
    %32 = vst [vmem:[#allocation2 + $0x50] sm:$0xff] 0.0
    %33 = vst [vmem:[#allocation2 + $0x58] sm:$0xff] 0.0
    %34 = vst [vmem:[#allocation2 + $0x60] sm:$0xff] 0.0
    %35 = vst [vmem:[#allocation2 + $0x68] sm:$0xff] 0.0
    %36 = vst [vmem:[#allocation2 + $0x70] sm:$0xff] 0.0
    %37 = vst [vmem:[#allocation2 + $0x78] sm:$0xff] 0.0
    %38 = vst [vmem:[#allocation2 + $0x80] sm:$0xff] 0.0
    %39 = vst [vmem:[#allocation2 + $0x88] sm:$0xff] 0.0
    %40 = vst [vmem:[#allocation2 + $0x90] sm:$0xff] 0.0
    %41 = vst [vmem:[#allocation2 + $0x98] sm:$0xff] 0.0
    %42 = vst [vmem:[#allocation2 + $0xa0] sm:$0xff] 0.0
    %43 = vst [vmem:[#allocation2 + $0xa8] sm:$0xff] 0.0
    %44 = vst [vmem:[#allocation2 + $0xb0] sm:$0xff] 0.0
    %45 = vst [vmem:[#allocation2 + $0xb8] sm:$0xff] 0.0
    %46 = vst [vmem:[#allocation2 + $0xc0] sm:$0xff] 0.0
    %47 = vst [vmem:[#allocation2 + $0xc8] sm:$0xff] 0.0
    %48 = vst [vmem:[#allocation2 + $0xd0] sm:$0xff] 0.0
    %49 = vst [vmem:[#allocation2 + $0xd8] sm:$0xff] 0.0
    %50 = vst [vmem:[#allocation2 + $0xe0] sm:$0xff] 0.0
    %51 = vst [vmem:[#allocation2 + $0xe8] sm:$0xff] 0.0
    %52 = vst [vmem:[#allocation2 + $0xf0] sm:$0xff] 0.0
    %53 = vst [vmem:[#allocation2 + $0xf8] sm:$0xff] 0.0
    %54 = vst [vmem:[#allocation2 + $0x100] sm:$0xff] 0.0
    %55 = vst [vmem:[#allocation2 + $0x108] sm:$0xff] 0.0
    %56 = vst [vmem:[#allocation2 + $0x110] sm:$0xff] 0.0
    %57 = vst [vmem:[#allocation2 + $0x118] sm:$0xff] 0.0
    %58 = vst [vmem:[#allocation2 + $0x120] sm:$0xff] 0.0
    %59 = vst [vmem:[#allocation2 + $0x128] sm:$0xff] 0.0
    %60 = vst [vmem:[#allocation2 + $0x130] sm:$0xff] 0.0
    %61 = vst [vmem:[#allocation2 + $0x138] sm:$0xff] 0.0
    %62 = vst [vmem:[#allocation2 + $0x140] sm:$0xff] 0.0
    %63 = vst [vmem:[#allocation2 + $0x148] sm:$0xff] 0.0
    %64 = vst [vmem:[#allocation2 + $0x150] sm:$0xff] 0.0
    %65 = vst [vmem:[#allocation2 + $0x158] sm:$0xff] 0.0
    %66 = vst [vmem:[#allocation2 + $0x160] sm:$0xff] 0.0
    %67 = vst [vmem:[#allocation2 + $0x168] sm:$0xff] 0.0
    %68 = vst [vmem:[#allocation2 + $0x170] sm:$0xff] 0.0
    %69 = vst [vmem:[#allocation2 + $0x178] sm:$0xff] 0.0
  $region21: #{gcn_forward.2} parent=0 // pred_fallthru
    _
  %v70 = vld [vmem:[#allocation2] sm:$0xff]
  %v71 = vld [vmem:[#allocation2 + $0x8] sm:$0xff]
  %v72 = vld [vmem:[#allocation2 + $0x10] sm:$0xff]
  %v73 = vld [vmem:[#allocation2 + $0x18] sm:$0xff]
  %v74 = vld [vmem:[#allocation2 + $0x20] sm:$0xff]
  %v75 = vld [vmem:[#allocation2 + $0x28] sm:$0xff]
  %v76 = vld [vmem:[#allocation2 + $0x30] sm:$0xff]
  %v77 = vld [vmem:[#allocation2 + $0x38] sm:$0xff]
  %v78 = vld [vmem:[#allocation2 + $0x40] sm:$0xff]
  %v79 = vld [vmem:[#allocation2 + $0x48] sm:$0xff]
  %v80 = vld [vmem:[#allocation2 + $0x50] sm:$0xff]
  %v81 = vld [vmem:[#allocation2 + $0x58] sm:$0xff]
  %v82 = vld [vmem:[#allocation2 + $0x60] sm:$0xff]
  %v83 = vld [vmem:[#allocation2 + $0x68] sm:$0xff]
  %v84 = vld [vmem:[#allocation2 + $0x70] sm:$0xff]
  %v85 = vld [vmem:[#allocation2 + $0x78] sm:$0xff]
  %v86 = vld [vmem:[#allocation2 + $0x80] sm:$0xff]
  %v87 = vld [vmem:[#allocation2 + $0x88] sm:$0xff]
  %v88 = vld [vmem:[#allocation2 + $0x90] sm:$0xff]
  %v89 = vld [vmem:[#allocation2 + $0x98] sm:$0xff]
  %v90 = vld [vmem:[#allocation2 + $0xa0] sm:$0xff]
  %v91 = vld [vmem:[#allocation2 + $0xa8] sm:$0xff]
  %v92 = vld [vmem:[#allocation2 + $0xb0] sm:$0xff]
  %v93 = vld [vmem:[#allocation2 + $0xb8] sm:$0xff]
  %v94 = vld [vmem:[#allocation2 + $0xc0] sm:$0xff]
  %v95 = vld [vmem:[#allocation2 + $0xc8] sm:$0xff]
  %v96 = vld [vmem:[#allocation2 + $0xd0] sm:$0xff]
  %v97 = vld [vmem:[#allocation2 + $0xd8] sm:$0xff]
  %v98 = vld [vmem:[#allocation2 + $0xe0] sm:$0xff]
  %v99 = vld [vmem:[#allocation2 + $0xe8] sm:$0xff]
  %v100 = vld [vmem:[#allocation2 + $0xf0] sm:$0xff]
  %v101 = vld [vmem:[#allocation2 + $0xf8] sm:$0xff]
  %v102 = vld [vmem:[#allocation2 + $0x100] sm:$0xff]
  %v103 = vld [vmem:[#allocation2 + $0x108] sm:$0xff]
  %v104 = vld [vmem:[#allocation2 + $0x110] sm:$0xff]
  %v105 = vld [vmem:[#allocation2 + $0x118] sm:$0xff]
  %v106 = vld [vmem:[#allocation2 + $0x120] sm:$0xff]
  %v107 = vld [vmem:[#allocation2 + $0x128] sm:$0xff]
  %v108 = vld [vmem:[#allocation2 + $0x130] sm:$0xff]
  %v109 = vld [vmem:[#allocation2 + $0x138] sm:$0xff]
  %v110 = vld [vmem:[#allocation2 + $0x140] sm:$0xff]
  %v111 = vld [vmem:[#allocation2 + $0x148] sm:$0xff]
  %v112 = vld [vmem:[#allocation2 + $0x150] sm:$0xff]
  %v113 = vld [vmem:[#allocation2 + $0x158] sm:$0xff]
  %v114 = vld [vmem:[#allocation2 + $0x160] sm:$0xff]
  %v115 = vld [vmem:[#allocation2 + $0x168] sm:$0xff]
  %v116 = vld [vmem:[#allocation2 + $0x170] sm:$0xff]
  %v117 = vld [vmem:[#allocation2 + $0x178] sm:$0xff]
  %v118 = vld [vmem:[%s0] sm:$0xff]
  %v119 = vld [vmem:[%s0 + $0x8] sm:$0xf]
  %v120 = vld [vmem:[%s0 + $0xc] sm:$0xff]
  %v121 = vld [vmem:[%s0 + $0x14] sm:$0xf]
  %v122 = vld [vmem:[%s0 + $0x18] sm:$0xff]
  %v123 = vld [vmem:[%s0 + $0x20] sm:$0xf]
  %v124 = vld [vmem:[%s0 + $0x24] sm:$0xff]
  %v125 = vld [vmem:[%s0 + $0x2c] sm:$0xf]
  %v126 = vld [vmem:[%s0 + $0x30] sm:$0xff]
  %v127 = vld [vmem:[%s0 + $0x38] sm:$0xf]
  %v128 = vld [vmem:[%s0 + $0x3c] sm:$0xff]
  %v129 = vld [vmem:[%s0 + $0x44] sm:$0xf]
  %v130 = vld [vmem:[%s0 + $0x48] sm:$0xff]
  %v131 = vld [vmem:[%s0 + $0x50] sm:$0xf]
  %v132 = vld [vmem:[%s0 + $0x54] sm:$0xff]
  %v133 = vld [vmem:[%s0 + $0x5c] sm:$0xf]
  %v134 = vld [vmem:[%s0 + $0x60] sm:$0xff]
  %v135 = vld [vmem:[%s0 + $0x68] sm:$0xf]
  %v136 = vld [vmem:[%s0 + $0x6c] sm:$0xff]
  %v137 = vld [vmem:[%s0 + $0x74] sm:$0xf]
  %v138 = vld [vmem:[%s0 + $0x78] sm:$0xff]
  %v139 = vld [vmem:[%s0 + $0x80] sm:$0xf]
  %v140 = vld [vmem:[%s0 + $0x84] sm:$0xff]
  %v141 = vld [vmem:[%s0 + $0x8c] sm:$0xf]
  %v142 = vld [vmem:[%s0 + $0x90] sm:$0xff]
  %v143 = vld [vmem:[%s0 + $0x98] sm:$0xf]
  %v144 = vld [vmem:[%s0 + $0x9c] sm:$0xff]
  %v145 = vld [vmem:[%s0 + $0xa4] sm:$0xf]
  %v146 = vld [vmem:[%s0 + $0xa8] sm:$0xff]
  %v147 = vld [vmem:[%s0 + $0xb0] sm:$0xf]
  %v148 = vld [vmem:[%s0 + $0xb4] sm:$0xff]
  %v149 = vld [vmem:[%s0 + $0xbc] sm:$0xf]
  %v150 = vld [vmem:[%s0 + $0xc0] sm:$0xff]
  %v151 = vld [vmem:[%s0 + $0xc8] sm:$0xf]
  %v152 = vld [vmem:[%s0 + $0xcc] sm:$0xff]
  %v153 = vld [vmem:[%s0 + $0xd4] sm:$0xf]
  %v154 = vld [vmem:[%s0 + $0xd8] sm:$0xff]
  %v155 = vld [vmem:[%s0 + $0xe0] sm:$0xf]
  %v156 = vld [vmem:[%s0 + $0xe4] sm:$0xff]
  %v157 = vld [vmem:[%s0 + $0xec] sm:$0xf]
  %v158 = vld [vmem:[%s0 + $0xf0] sm:$0xff]
  %v159 = vld [vmem:[%s0 + $0xf8] sm:$0xf]
  %v160 = vld [vmem:[%s0 + $0xfc] sm:$0xff]
  %v161 = vld [vmem:[%s0 + $0x104] sm:$0xf]
  %v162 = vld [vmem:[%s0 + $0x108] sm:$0xff]
  %v163 = vld [vmem:[%s0 + $0x110] sm:$0xf]
  %v164 = vld [vmem:[%s0 + $0x114] sm:$0xff]
  %v165 = vld [vmem:[%s0 + $0x11c] sm:$0xf]
  %v166 = vld [vmem:[%s0 + $0x120] sm:$0xff]
  %v167 = vld [vmem:[%s0 + $0x128] sm:$0xf]
  %v168 = vld [vmem:[%s0 + $0x12c] sm:$0xff]
  %v169 = vld [vmem:[%s0 + $0x134] sm:$0xf]
  %v170 = vld [vmem:[%s0 + $0x138] sm:$0xff]
  %v171 = vld [vmem:[%s0 + $0x140] sm:$0xf]
  %v172 = vld [vmem:[%s0 + $0x144] sm:$0xff]
  %v173 = vld [vmem:[%s0 + $0x14c] sm:$0xf]
  %v174 = vld [vmem:[%s0 + $0x150] sm:$0xff]
  %v175 = vld [vmem:[%s0 + $0x158] sm:$0xf]
  %v176 = vld [vmem:[%s0 + $0x15c] sm:$0xff]
  %v177 = vld [vmem:[%s0 + $0x164] sm:$0xf]
  %v178 = vld [vmem:[%s0 + $0x168] sm:$0xff]
  %v179 = vld [vmem:[%s0 + $0x170] sm:$0xf]
  %v180 = vld [vmem:[%s0 + $0x174] sm:$0xff]
  %v181 = vld [vmem:[%s0 + $0x17c] sm:$0xf]
  %v182 = vld [vmem:[%s0 + $0x180] sm:$0xff]
  %v183 = vld [vmem:[%s0 + $0x188] sm:$0xf]
  %v184 = vld [vmem:[%s0 + $0x18c] sm:$0xff]
  %v185 = vld [vmem:[%s0 + $0x194] sm:$0xf]
  %v186 = vld [vmem:[%s0 + $0x198] sm:$0xff]
  %v187 = vld [vmem:[%s0 + $0x1a0] sm:$0xf]
  %v188 = vld [vmem:[%s0 + $0x1a4] sm:$0xff]
  %v189 = vld [vmem:[%s0 + $0x1ac] sm:$0xf]
  %v190 = vld [vmem:[%s0 + $0x1b0] sm:$0xff]
  %v191 = vld [vmem:[%s0 + $0x1b8] sm:$0xf]
  %v192 = vld [vmem:[%s0 + $0x1bc] sm:$0xff]
  %v193 = vld [vmem:[%s0 + $0x1c4] sm:$0xf]
  %v194 = vld [vmem:[%s0 + $0x1c8] sm:$0xff]
  %v195 = vld [vmem:[%s0 + $0x1d0] sm:$0xf]
  %v196 = vld [vmem:[%s0 + $0x1d4] sm:$0xff]
  %v197 = vld [vmem:[%s0 + $0x1dc] sm:$0xf]
  %v198 = vld [vmem:[%s0 + $0x1e0] sm:$0xff]
  %v199 = vld [vmem:[%s0 + $0x1e8] sm:$0xf]
  %v200 = vld [vmem:[%s0 + $0x1ec] sm:$0xff]
  %v201 = vld [vmem:[%s0 + $0x1f4] sm:$0xf]
  %v202 = vld [vmem:[%s0 + $0x1f8] sm:$0xff]
  %v203 = vld [vmem:[%s0 + $0x200] sm:$0xf]
  %v204 = vld [vmem:[%s0 + $0x204] sm:$0xff]
  %v205 = vld [vmem:[%s0 + $0x20c] sm:$0xf]
  %v206 = vld [vmem:[%s0 + $0x210] sm:$0xff]
  %v207 = vld [vmem:[%s0 + $0x218] sm:$0xf]
  %v208 = vld [vmem:[%s0 + $0x21c] sm:$0xff]
  %v209 = vld [vmem:[%s0 + $0x224] sm:$0xf]
  %v210 = vld [vmem:[%s0 + $0x228] sm:$0xff]
  %v211 = vld [vmem:[%s0 + $0x230] sm:$0xf]
  %v212 = vld [vmem:[%s0 + $0x234] sm:$0xff]
  %v213 = vld [vmem:[%s0 + $0x23c] sm:$0xf]
  %v214 = vld [vmem:[%s1] sm:$0xf]
  %v215 = vld [vmem:[%s1 + $0x4] sm:$0xf]
  %v216 = vld [vmem:[%s1 + $0x8] sm:$0xf]
  %v217 = vld [vmem:[%s1 + $0xc] sm:$0xf]
  %v218 = vld [vmem:[%s1 + $0x10] sm:$0xf]
  %v219 = vld [vmem:[%s1 + $0x14] sm:$0xf]
  %v220 = vld [vmem:[%s1 + $0x18] sm:$0xf]
  %v221 = vld [vmem:[%s1 + $0x1c] sm:$0xf]
  %v222 = vld [vmem:[%s1 + $0x20] sm:$0xf]
  %v223 = vld [vmem:[%s1 + $0x24] sm:$0xf]
  %v224 = vld [vmem:[%s1 + $0x28] sm:$0xf]
  %v225 = vld [vmem:[%s1 + $0x2c] sm:$0xf]
  %v226 = vld [vmem:[%s1 + $0x30] sm:$0xf]
  %v227 = vld [vmem:[%s1 + $0x34] sm:$0xf]
  %v228 = vld [vmem:[%s1 + $0x38] sm:$0xf]
  %v229 = vld [vmem:[%s1 + $0x3c] sm:$0xf]
  %v230 = vld [vmem:[%s1 + $0x40] sm:$0xf]
  %v231 = vld [vmem:[%s1 + $0x44] sm:$0xf]
  %v232 = vld [vmem:[%s1 + $0x48] sm:$0xf]
  %v233 = vld [vmem:[%s1 + $0x4c] sm:$0xf]
  %v234 = vld [vmem:[%s1 + $0x50] sm:$0xf]
  %v235 = vld [vmem:[%s1 + $0x54] sm:$0xf]
  %v236 = vld [vmem:[%s1 + $0x58] sm:$0xf]
  %v237 = vld [vmem:[%s1 + $0x5c] sm:$0xf]
  %v238 = vld [vmem:[%s1 + $0x60] sm:$0xf]
  %v239 = vld [vmem:[%s1 + $0x64] sm:$0xf]
  %v240 = vld [vmem:[%s1 + $0x68] sm:$0xf]
  %v241 = vld [vmem:[%s1 + $0x6c] sm:$0xf]
  %v242 = vld [vmem:[%s1 + $0x70] sm:$0xf]
  %v243 = vld [vmem:[%s1 + $0x74] sm:$0xf]
  %v244 = vld [vmem:[%s1 + $0x78] sm:$0xf]
  %v245 = vld [vmem:[%s1 + $0x7c] sm:$0xf]
  %v246 = vld [vmem:[%s1 + $0x80] sm:$0xf]
  %v247 = vld [vmem:[%s1 + $0x84] sm:$0xf]
  %v248 = vld [vmem:[%s1 + $0x88] sm:$0xf]
  %v249 = vld [vmem:[%s1 + $0x8c] sm:$0xf]
  %v250 = vld [vmem:[%s1 + $0x90] sm:$0xf]
  %v251 = vld [vmem:[%s1 + $0x94] sm:$0xf]
  %v252 = vld [vmem:[%s1 + $0x98] sm:$0xf]
  %v253 = vld [vmem:[%s1 + $0x9c] sm:$0xf]
  %v254 = vld [vmem:[%s1 + $0xa0] sm:$0xf]
  %v255 = vld [vmem:[%s1 + $0xa4] sm:$0xf]
  %v256 = vld [vmem:[%s1 + $0xa8] sm:$0xf]
  %v257 = vld [vmem:[%s1 + $0xac] sm:$0xf]
  %v258 = vld [vmem:[%s1 + $0xb0] sm:$0xf]
  %v259 = vld [vmem:[%s1 + $0xb4] sm:$0xf]
  %v260 = vld [vmem:[%s1 + $0xb8] sm:$0xf]
  %v261 = vld [vmem:[%s1 + $0xbc] sm:$0xf]
  %v358 = vunpack.c.l.b16 %v118
  %v359 = vunpack.c.h.b16 %v118
  %v360 = vunpack.c.l.b16 %v119
  %v361 = vunpack.c.l.b16 %v120
  %v362 = vunpack.c.h.b16 %v120
  %v363 = vunpack.c.l.b16 %v121
  %v364 = vunpack.c.l.b16 %v122
  %v365 = vunpack.c.h.b16 %v122
  %v366 = vunpack.c.l.b16 %v123
  %v367 = vunpack.c.l.b16 %v124
  %v368 = vunpack.c.h.b16 %v124
  %v369 = vunpack.c.l.b16 %v125
  %v370 = vunpack.c.l.b16 %v126
  %v371 = vunpack.c.h.b16 %v126
  %v372 = vunpack.c.l.b16 %v127
  %v373 = vunpack.c.l.b16 %v128
  %v374 = vunpack.c.h.b16 %v128
  %v375 = vunpack.c.l.b16 %v129
  %v376 = vunpack.c.l.b16 %v130
  %v377 = vunpack.c.h.b16 %v130
  %v378 = vunpack.c.l.b16 %v131
  %v379 = vunpack.c.l.b16 %v132
  %v380 = vunpack.c.h.b16 %v132
  %v381 = vunpack.c.l.b16 %v133
  %v382 = vunpack.c.l.b16 %v134
  %v383 = vunpack.c.h.b16 %v134
  %v384 = vunpack.c.l.b16 %v135
  %v385 = vunpack.c.l.b16 %v136
  %v386 = vunpack.c.h.b16 %v136
  %v387 = vunpack.c.l.b16 %v137
  %v388 = vunpack.c.l.b16 %v138
  %v389 = vunpack.c.h.b16 %v138
  %v390 = vunpack.c.l.b16 %v139
  %v391 = vunpack.c.l.b16 %v140
  %v392 = vunpack.c.h.b16 %v140
  %v393 = vunpack.c.l.b16 %v141
  %v394 = vunpack.c.l.b16 %v142
  %v395 = vunpack.c.h.b16 %v142
  %v396 = vunpack.c.l.b16 %v143
  %v397 = vunpack.c.l.b16 %v144
  %v398 = vunpack.c.h.b16 %v144
  %v399 = vunpack.c.l.b16 %v145
  %v400 = vunpack.c.l.b16 %v146
  %v401 = vunpack.c.h.b16 %v146
  %v402 = vunpack.c.l.b16 %v147
  %v403 = vunpack.c.l.b16 %v148
  %v404 = vunpack.c.h.b16 %v148
  %v405 = vunpack.c.l.b16 %v149
  %v406 = vunpack.c.l.b16 %v150
  %v407 = vunpack.c.h.b16 %v150
  %v408 = vunpack.c.l.b16 %v151
  %v409 = vunpack.c.l.b16 %v152
  %v410 = vunpack.c.h.b16 %v152
  %v411 = vunpack.c.l.b16 %v153
  %v412 = vunpack.c.l.b16 %v154
  %v413 = vunpack.c.h.b16 %v154
  %v414 = vunpack.c.l.b16 %v155
  %v415 = vunpack.c.l.b16 %v156
  %v416 = vunpack.c.h.b16 %v156
  %v417 = vunpack.c.l.b16 %v157
  %v418 = vunpack.c.l.b16 %v158
  %v419 = vunpack.c.h.b16 %v158
  %v420 = vunpack.c.l.b16 %v159
  %v421 = vunpack.c.l.b16 %v160
  %v422 = vunpack.c.h.b16 %v160
  %v423 = vunpack.c.l.b16 %v161
  %v424 = vunpack.c.l.b16 %v162
  %v425 = vunpack.c.h.b16 %v162
  %v426 = vunpack.c.l.b16 %v163
  %v427 = vunpack.c.l.b16 %v164
  %v428 = vunpack.c.h.b16 %v164
  %v429 = vunpack.c.l.b16 %v165
  %v430 = vunpack.c.l.b16 %v166
  %v431 = vunpack.c.h.b16 %v166
  %v432 = vunpack.c.l.b16 %v167
  %v433 = vunpack.c.l.b16 %v168
  %v434 = vunpack.c.h.b16 %v168
  %v435 = vunpack.c.l.b16 %v169
  %v436 = vunpack.c.l.b16 %v170
  %v437 = vunpack.c.h.b16 %v170
  %v438 = vunpack.c.l.b16 %v171
  %v439 = vunpack.c.l.b16 %v172
  %v440 = vunpack.c.h.b16 %v172
  %v441 = vunpack.c.l.b16 %v173
  %v442 = vunpack.c.l.b16 %v174
  %v443 = vunpack.c.h.b16 %v174
  %v444 = vunpack.c.l.b16 %v175
  %v445 = vunpack.c.l.b16 %v176
  %v446 = vunpack.c.h.b16 %v176
  %v447 = vunpack.c.l.b16 %v177
  %v448 = vunpack.c.l.b16 %v178
  %v449 = vunpack.c.h.b16 %v178
  %v450 = vunpack.c.l.b16 %v179
  %v451 = vunpack.c.l.b16 %v180
  %v452 = vunpack.c.h.b16 %v180
  %v453 = vunpack.c.l.b16 %v181
  %v454 = vunpack.c.l.b16 %v182
  %v455 = vunpack.c.h.b16 %v182
  %v456 = vunpack.c.l.b16 %v183
  %v457 = vunpack.c.l.b16 %v184
  %v458 = vunpack.c.h.b16 %v184
  %v459 = vunpack.c.l.b16 %v185
  %v460 = vunpack.c.l.b16 %v186
  %v461 = vunpack.c.h.b16 %v186
  %v462 = vunpack.c.l.b16 %v187
  %v463 = vunpack.c.l.b16 %v188
  %v464 = vunpack.c.h.b16 %v188
  %v465 = vunpack.c.l.b16 %v189
  %v466 = vunpack.c.l.b16 %v190
  %v467 = vunpack.c.h.b16 %v190
  %v468 = vunpack.c.l.b16 %v191
  %v469 = vunpack.c.l.b16 %v192
  %v470 = vunpack.c.h.b16 %v192
  %v471 = vunpack.c.l.b16 %v193
  %v472 = vunpack.c.l.b16 %v194
  %v473 = vunpack.c.h.b16 %v194
  %v474 = vunpack.c.l.b16 %v195
  %v475 = vunpack.c.l.b16 %v196
  %v476 = vunpack.c.h.b16 %v196
  %v477 = vunpack.c.l.b16 %v197
  %v478 = vunpack.c.l.b16 %v198
  %v479 = vunpack.c.h.b16 %v198
  %v480 = vunpack.c.l.b16 %v199
  %v481 = vunpack.c.l.b16 %v200
  %v482 = vunpack.c.h.b16 %v200
  %v483 = vunpack.c.l.b16 %v201
  %v484 = vunpack.c.l.b16 %v202
  %v485 = vunpack.c.h.b16 %v202
  %v486 = vunpack.c.l.b16 %v203
  %v487 = vunpack.c.l.b16 %v204
  %v488 = vunpack.c.h.b16 %v204
  %v489 = vunpack.c.l.b16 %v205
  %v490 = vunpack.c.l.b16 %v206
  %v491 = vunpack.c.h.b16 %v206
  %v492 = vunpack.c.l.b16 %v207
  %v493 = vunpack.c.l.b16 %v208
  %v494 = vunpack.c.h.b16 %v208
  %v495 = vunpack.c.l.b16 %v209
  %v496 = vunpack.c.l.b16 %v210
  %v497 = vunpack.c.h.b16 %v210
  %v498 = vunpack.c.l.b16 %v211
  %v499 = vunpack.c.l.b16 %v212
  %v500 = vunpack.c.h.b16 %v212
  %v501 = vunpack.c.l.b16 %v213
  %v502 = vpack.c.b16 %v361, %v358
  %v503 = vpack.c.b16 %v362, %v359
  %v504 = vpack.c.b16 %v363, %v360
  %v505 = vpack.c.b16 %v367, %v364
  %v506 = vpack.c.b16 %v368, %v365
  %v507 = vpack.c.b16 %v369, %v366
  %v508 = vpack.c.b16 %v373, %v370
  %v509 = vpack.c.b16 %v374, %v371
  %v510 = vpack.c.b16 %v375, %v372
  %v511 = vpack.c.b16 %v379, %v376
  %v512 = vpack.c.b16 %v380, %v377
  %v513 = vpack.c.b16 %v381, %v378
  %v514 = vpack.c.b16 %v385, %v382
  %v515 = vpack.c.b16 %v386, %v383
  %v516 = vpack.c.b16 %v387, %v384
  %v517 = vpack.c.b16 %v391, %v388
  %v518 = vpack.c.b16 %v392, %v389
  %v519 = vpack.c.b16 %v393, %v390
  %v520 = vpack.c.b16 %v397, %v394
  %v521 = vpack.c.b16 %v398, %v395
  %v522 = vpack.c.b16 %v399, %v396
  %v523 = vpack.c.b16 %v403, %v400
  %v524 = vpack.c.b16 %v404, %v401
  %v525 = vpack.c.b16 %v405, %v402
  %v526 = vpack.c.b16 %v409, %v406
  %v527 = vpack.c.b16 %v410, %v407
  %v528 = vpack.c.b16 %v411, %v408
  %v529 = vpack.c.b16 %v415, %v412
  %v530 = vpack.c.b16 %v416, %v413
  %v531 = vpack.c.b16 %v417, %v414
  %v532 = vpack.c.b16 %v421, %v418
  %v533 = vpack.c.b16 %v422, %v419
  %v534 = vpack.c.b16 %v423, %v420
  %v535 = vpack.c.b16 %v427, %v424
  %v536 = vpack.c.b16 %v428, %v425
  %v537 = vpack.c.b16 %v429, %v426
  %v538 = vpack.c.b16 %v433, %v430
  %v539 = vpack.c.b16 %v434, %v431
  %v540 = vpack.c.b16 %v435, %v432
  %v541 = vpack.c.b16 %v439, %v436
  %v542 = vpack.c.b16 %v440, %v437
  %v543 = vpack.c.b16 %v441, %v438
  %v544 = vpack.c.b16 %v445, %v442
  %v545 = vpack.c.b16 %v446, %v443
  %v546 = vpack.c.b16 %v447, %v444
  %v547 = vpack.c.b16 %v451, %v448
  %v548 = vpack.c.b16 %v452, %v449
  %v549 = vpack.c.b16 %v453, %v450
  %v550 = vpack.c.b16 %v457, %v454
  %v551 = vpack.c.b16 %v458, %v455
  %v552 = vpack.c.b16 %v459, %v456
  %v553 = vpack.c.b16 %v463, %v460
  %v554 = vpack.c.b16 %v464, %v461
  %v555 = vpack.c.b16 %v465, %v462
  %v556 = vpack.c.b16 %v469, %v466
  %v557 = vpack.c.b16 %v470, %v467
  %v558 = vpack.c.b16 %v471, %v468
  %v559 = vpack.c.b16 %v475, %v472
  %v560 = vpack.c.b16 %v476, %v473
  %v561 = vpack.c.b16 %v477, %v474
  %v562 = vpack.c.b16 %v481, %v478
  %v563 = vpack.c.b16 %v482, %v479
  %v564 = vpack.c.b16 %v483, %v480
  %v565 = vpack.c.b16 %v487, %v484
  %v566 = vpack.c.b16 %v488, %v485
  %v567 = vpack.c.b16 %v489, %v486
  %v568 = vpack.c.b16 %v493, %v490
  %v569 = vpack.c.b16 %v494, %v491
  %v570 = vpack.c.b16 %v495, %v492
  %v571 = vpack.c.b16 %v499, %v496
  %v572 = vpack.c.b16 %v500, %v497
  %v573 = vpack.c.b16 %v501, %v498
  %v694 = vunpack.c.l.b16 %v214
  %v695 = vunpack.c.l.b16 %v215
  %v696 = vunpack.c.l.b16 %v216
  %v697 = vunpack.c.l.b16 %v217
  %v698 = vunpack.c.l.b16 %v218
  %v699 = vunpack.c.l.b16 %v219
  %v700 = vunpack.c.l.b16 %v220
  %v701 = vunpack.c.l.b16 %v221
  %v702 = vunpack.c.l.b16 %v222
  %v703 = vunpack.c.l.b16 %v223
  %v704 = vunpack.c.l.b16 %v224
  %v705 = vunpack.c.l.b16 %v225
  %v706 = vunpack.c.l.b16 %v226
  %v707 = vunpack.c.l.b16 %v227
  %v708 = vunpack.c.l.b16 %v228
  %v709 = vunpack.c.l.b16 %v229
  %v710 = vunpack.c.l.b16 %v230
  %v711 = vunpack.c.l.b16 %v231
  %v712 = vunpack.c.l.b16 %v232
  %v713 = vunpack.c.l.b16 %v233
  %v714 = vunpack.c.l.b16 %v234
  %v715 = vunpack.c.l.b16 %v235
  %v716 = vunpack.c.l.b16 %v236
  %v717 = vunpack.c.l.b16 %v237
  %v718 = vunpack.c.l.b16 %v238
  %v719 = vunpack.c.l.b16 %v239
  %v720 = vunpack.c.l.b16 %v240
  %v721 = vunpack.c.l.b16 %v241
  %v722 = vunpack.c.l.b16 %v242
  %v723 = vunpack.c.l.b16 %v243
  %v724 = vunpack.c.l.b16 %v244
  %v725 = vunpack.c.l.b16 %v245
  %v726 = vunpack.c.l.b16 %v246
  %v727 = vunpack.c.l.b16 %v247
  %v728 = vunpack.c.l.b16 %v248
  %v729 = vunpack.c.l.b16 %v249
  %v730 = vunpack.c.l.b16 %v250
  %v731 = vunpack.c.l.b16 %v251
  %v732 = vunpack.c.l.b16 %v252
  %v733 = vunpack.c.l.b16 %v253
  %v734 = vunpack.c.l.b16 %v254
  %v735 = vunpack.c.l.b16 %v255
  %v736 = vunpack.c.l.b16 %v256
  %v737 = vunpack.c.l.b16 %v257
  %v738 = vunpack.c.l.b16 %v258
  %v739 = vunpack.c.l.b16 %v259
  %v740 = vunpack.c.l.b16 %v260
  %v741 = vunpack.c.l.b16 %v261
  %v742 = vpack.c.b16 %v695, %v694
  %v743 = vpack.c.b16 %v697, %v696
  %v744 = vpack.c.b16 %v699, %v698
  %v745 = vpack.c.b16 %v701, %v700
  %v746 = vpack.c.b16 %v703, %v702
  %v747 = vpack.c.b16 %v705, %v704
  %v748 = vpack.c.b16 %v707, %v706
  %v749 = vpack.c.b16 %v709, %v708
  %v750 = vpack.c.b16 %v711, %v710
  %v751 = vpack.c.b16 %v713, %v712
  %v752 = vpack.c.b16 %v715, %v714
  %v753 = vpack.c.b16 %v717, %v716
  %v754 = vpack.c.b16 %v719, %v718
  %v755 = vpack.c.b16 %v721, %v720
  %v756 = vpack.c.b16 %v723, %v722
  %v757 = vpack.c.b16 %v725, %v724
  %v758 = vpack.c.b16 %v727, %v726
  %v759 = vpack.c.b16 %v729, %v728
  %v760 = vpack.c.b16 %v731, %v730
  %v761 = vpack.c.b16 %v733, %v732
  %v762 = vpack.c.b16 %v735, %v734
  %v763 = vpack.c.b16 %v737, %v736
  %v764 = vpack.c.b16 %v739, %v738
  %v765 = vpack.c.b16 %v741, %v740
  %790 = vmatprep.subr.bf16.mxu0 0
  %791 = vmatpush1.bf16.msra.mxu0 %v749
  %792 = vmatprep.subr.bf16.mxu0 0
  %793 = vmatpush1.bf16.msra.mxu0 %v748
  %794 = vmatprep.subr.bf16.mxu0 0
  %795 = vmatpush1.bf16.msra.mxu0 %v747
  %796 = vmatprep.subr.bf16.mxu0 0
  %797 = vmatpush1.bf16.msra.mxu0 %v746
  %798 = vmatprep.subr.bf16.mxu0 0
  %799 = vmatpush1.bf16.msra.mxu0 %v745
  %800 = vmatprep.subr.bf16.mxu0 0
  %801 = vmatpush1.bf16.msra.mxu0 %v744
  %802 = vmatprep.subr.bf16.mxu0 0
  %803 = vmatpush1.bf16.msra.mxu0 %v743
  %804 = vmatprep.subr.bf16.mxu0 0
  %805 = vmatpush1.bf16.msra.mxu0 %v742
  %806 = vmatprep.subr.bf16.mxu0 0
  %807 = vmatpush2.bf16.msra.mxu0 %v757
  %808 = vmatprep.subr.bf16.mxu0 0
  %809 = vmatpush2.bf16.msra.mxu0 %v756
  %810 = vmatprep.subr.bf16.mxu0 0
  %811 = vmatpush2.bf16.msra.mxu0 %v755
  %812 = vmatprep.subr.bf16.mxu0 0
  %813 = vmatpush2.bf16.msra.mxu0 %v754
  %814 = vmatprep.subr.bf16.mxu0 0
  %815 = vmatpush2.bf16.msra.mxu0 %v753
  %816 = vmatprep.subr.bf16.mxu0 0
  %817 = vmatpush2.bf16.msra.mxu0 %v752
  %818 = vmatprep.subr.bf16.mxu0 0
  %819 = vmatpush2.bf16.msra.mxu0 %v751
  %820 = vmatprep.subr.bf16.mxu0 0
  %821 = vmatpush2.bf16.msra.mxu0 %v750
  %822 = vmatprep.mubr.bf16.mxu0 %v503
  %823 = vmatmul.mubr.bf16.gmra.mxu0 %v502
  %v824 = vpop.f32.mrf.mxu0
  %v825 = vadd.f32 0.0, %v824
  %v826 = vpop.f32.mrf.mxu0
  %v827 = vpop.f32.mrf.mxu0
  %v828 = vadd.f32 0.0, %v827
  %v829 = vpop.f32.mrf.mxu0
  %830 = vmatprep.mubr.bf16.mxu0 %v506
  %831 = vmatmul.mubr.bf16.gmra.mxu0 %v505
  %v832 = vpop.f32.mrf.mxu0
  %v833 = vadd.f32 0.0, %v832
  %v834 = vpop.f32.mrf.mxu0
  %v835 = vpop.f32.mrf.mxu0
  %v836 = vadd.f32 0.0, %v835
  %v837 = vpop.f32.mrf.mxu0
  %838 = vmatprep.mubr.bf16.mxu0 %v509
  %839 = vmatmul.mubr.bf16.gmra.mxu0 %v508
  %v840 = vpop.f32.mrf.mxu0
  %v841 = vadd.f32 0.0, %v840
  %v842 = vpop.f32.mrf.mxu0
  %v843 = vpop.f32.mrf.mxu0
  %v844 = vadd.f32 0.0, %v843
  %v845 = vpop.f32.mrf.mxu0
  %846 = vmatprep.mubr.bf16.mxu0 %v512
  %847 = vmatmul.mubr.bf16.gmra.mxu0 %v511
  %v848 = vpop.f32.mrf.mxu0
  %v849 = vadd.f32 0.0, %v848
  %v850 = vpop.f32.mrf.mxu0
  %v851 = vpop.f32.mrf.mxu0
  %v852 = vadd.f32 0.0, %v851
  %v853 = vpop.f32.mrf.mxu0
  %854 = vmatprep.mubr.bf16.mxu0 %v515
  %855 = vmatmul.mubr.bf16.gmra.mxu0 %v514
  %v856 = vpop.f32.mrf.mxu0
  %v857 = vadd.f32 0.0, %v856
  %v858 = vpop.f32.mrf.mxu0
  %v859 = vpop.f32.mrf.mxu0
  %v860 = vadd.f32 0.0, %v859
  %v861 = vpop.f32.mrf.mxu0
  %862 = vmatprep.mubr.bf16.mxu0 %v518
  %863 = vmatmul.mubr.bf16.gmra.mxu0 %v517
  %v864 = vpop.f32.mrf.mxu0
  %v865 = vadd.f32 0.0, %v864
  %v866 = vpop.f32.mrf.mxu0
  %v867 = vpop.f32.mrf.mxu0
  %v868 = vadd.f32 0.0, %v867
  %v869 = vpop.f32.mrf.mxu0
  %870 = vmatprep.mubr.bf16.mxu0 %v521
  %871 = vmatmul.mubr.bf16.gmra.mxu0 %v520
  %v872 = vpop.f32.mrf.mxu0
  %v873 = vadd.f32 0.0, %v872
  %v874 = vpop.f32.mrf.mxu0
  %v875 = vpop.f32.mrf.mxu0
  %v876 = vadd.f32 0.0, %v875
  %v877 = vpop.f32.mrf.mxu0
  %878 = vmatprep.mubr.bf16.mxu0 %v524
  %879 = vmatmul.mubr.bf16.gmra.mxu0 %v523
  %v880 = vpop.f32.mrf.mxu0
  %v881 = vadd.f32 0.0, %v880
  %v882 = vpop.f32.mrf.mxu0
  %v883 = vpop.f32.mrf.mxu0
  %v884 = vadd.f32 0.0, %v883
  %v885 = vpop.f32.mrf.mxu0
  %886 = vmatprep.mubr.bf16.mxu0 %v527
  %887 = vmatmul.mubr.bf16.gmra.mxu0 %v526
  %v888 = vpop.f32.mrf.mxu0
  %v889 = vadd.f32 0.0, %v888
  %v890 = vpop.f32.mrf.mxu0
  %v891 = vpop.f32.mrf.mxu0
  %v892 = vadd.f32 0.0, %v891
  %v893 = vpop.f32.mrf.mxu0
  %894 = vmatprep.mubr.bf16.mxu0 %v530
  %895 = vmatmul.mubr.bf16.gmra.mxu0 %v529
  %v896 = vpop.f32.mrf.mxu0
  %v897 = vadd.f32 0.0, %v896
  %v898 = vpop.f32.mrf.mxu0
  %v899 = vpop.f32.mrf.mxu0
  %v900 = vadd.f32 0.0, %v899
  %v901 = vpop.f32.mrf.mxu0
  %902 = vmatprep.mubr.bf16.mxu0 %v533
  %903 = vmatmul.mubr.bf16.gmra.mxu0 %v532
  %v904 = vpop.f32.mrf.mxu0
  %v905 = vadd.f32 0.0, %v904
  %v906 = vpop.f32.mrf.mxu0
  %v907 = vpop.f32.mrf.mxu0
  %v908 = vadd.f32 0.0, %v907
  %v909 = vpop.f32.mrf.mxu0
  %910 = vmatprep.mubr.bf16.mxu0 %v536
  %911 = vmatmul.mubr.bf16.gmra.mxu0 %v535
  %v912 = vpop.f32.mrf.mxu0
  %v913 = vadd.f32 0.0, %v912
  %v914 = vpop.f32.mrf.mxu0
  %v915 = vpop.f32.mrf.mxu0
  %v916 = vadd.f32 0.0, %v915
  %v917 = vpop.f32.mrf.mxu0
  %918 = vmatprep.mubr.bf16.mxu0 %v539
  %919 = vmatmul.mubr.bf16.gmra.mxu0 %v538
  %v920 = vpop.f32.mrf.mxu0
  %v921 = vadd.f32 0.0, %v920
  %v922 = vpop.f32.mrf.mxu0
  %v923 = vpop.f32.mrf.mxu0
  %v924 = vadd.f32 0.0, %v923
  %v925 = vpop.f32.mrf.mxu0
  %926 = vmatprep.mubr.bf16.mxu0 %v542
  %927 = vmatmul.mubr.bf16.gmra.mxu0 %v541
  %v928 = vpop.f32.mrf.mxu0
  %v929 = vadd.f32 0.0, %v928
  %v930 = vpop.f32.mrf.mxu0
  %v931 = vpop.f32.mrf.mxu0
  %v932 = vadd.f32 0.0, %v931
  %v933 = vpop.f32.mrf.mxu0
  %934 = vmatprep.mubr.bf16.mxu0 %v545
  %935 = vmatmul.mubr.bf16.gmra.mxu0 %v544
  %v936 = vpop.f32.mrf.mxu0
  %v937 = vadd.f32 0.0, %v936
  %v938 = vpop.f32.mrf.mxu0
  %v939 = vpop.f32.mrf.mxu0
  %v940 = vadd.f32 0.0, %v939
  %v941 = vpop.f32.mrf.mxu0
  %942 = vmatprep.mubr.bf16.mxu0 %v548
  %943 = vmatmul.mubr.bf16.gmra.mxu0 %v547
  %v944 = vpop.f32.mrf.mxu0
  %v945 = vadd.f32 0.0, %v944
  %v946 = vpop.f32.mrf.mxu0
  %v947 = vpop.f32.mrf.mxu0
  %v948 = vadd.f32 0.0, %v947
  %v949 = vpop.f32.mrf.mxu0
  %950 = vmatprep.mubr.bf16.mxu0 %v551
  %951 = vmatmul.mubr.bf16.gmra.mxu0 %v550
  %v952 = vpop.f32.mrf.mxu0
  %v953 = vadd.f32 0.0, %v952
  %v954 = vpop.f32.mrf.mxu0
  %v955 = vpop.f32.mrf.mxu0
  %v956 = vadd.f32 0.0, %v955
  %v957 = vpop.f32.mrf.mxu0
  %958 = vmatprep.mubr.bf16.mxu0 %v554
  %959 = vmatmul.mubr.bf16.gmra.mxu0 %v553
  %v960 = vpop.f32.mrf.mxu0
  %v961 = vadd.f32 0.0, %v960
  %v962 = vpop.f32.mrf.mxu0
  %v963 = vpop.f32.mrf.mxu0
  %v964 = vadd.f32 0.0, %v963
  %v965 = vpop.f32.mrf.mxu0
  %966 = vmatprep.mubr.bf16.mxu0 %v557
  %967 = vmatmul.mubr.bf16.gmra.mxu0 %v556
  %v968 = vpop.f32.mrf.mxu0
  %v969 = vadd.f32 0.0, %v968
  %v970 = vpop.f32.mrf.mxu0
  %v971 = vpop.f32.mrf.mxu0
  %v972 = vadd.f32 0.0, %v971
  %v973 = vpop.f32.mrf.mxu0
  %974 = vmatprep.mubr.bf16.mxu0 %v560
  %975 = vmatmul.mubr.bf16.gmra.mxu0 %v559
  %v976 = vpop.f32.mrf.mxu0
  %v977 = vadd.f32 0.0, %v976
  %v978 = vpop.f32.mrf.mxu0
  %v979 = vpop.f32.mrf.mxu0
  %v980 = vadd.f32 0.0, %v979
  %v981 = vpop.f32.mrf.mxu0
  %982 = vmatprep.mubr.bf16.mxu0 %v563
  %983 = vmatmul.mubr.bf16.gmra.mxu0 %v562
  %v984 = vpop.f32.mrf.mxu0
  %v985 = vadd.f32 0.0, %v984
  %v986 = vpop.f32.mrf.mxu0
  %v987 = vpop.f32.mrf.mxu0
  %v988 = vadd.f32 0.0, %v987
  %v989 = vpop.f32.mrf.mxu0
  %990 = vmatprep.mubr.bf16.mxu0 %v566
  %991 = vmatmul.mubr.bf16.gmra.mxu0 %v565
  %v992 = vpop.f32.mrf.mxu0
  %v993 = vadd.f32 0.0, %v992
  %v994 = vpop.f32.mrf.mxu0
  %v995 = vpop.f32.mrf.mxu0
  %v996 = vadd.f32 0.0, %v995
  %v997 = vpop.f32.mrf.mxu0
  %998 = vmatprep.mubr.bf16.mxu0 %v569
  %999 = vmatmul.mubr.bf16.gmra.mxu0 %v568
  %v1000 = vpop.f32.mrf.mxu0
  %v1001 = vadd.f32 0.0, %v1000
  %v1002 = vpop.f32.mrf.mxu0
  %v1003 = vpop.f32.mrf.mxu0
  %v1004 = vadd.f32 0.0, %v1003
  %v1005 = vpop.f32.mrf.mxu0
  %1006 = vmatprep.mubr.bf16.mxu0 %v572
  %1007 = vmatmul.mubr.bf16.gmra.mxu0 %v571
  %v1008 = vpop.f32.mrf.mxu0
  %v1009 = vadd.f32 0.0, %v1008
  %v1010 = vpop.f32.mrf.mxu0
  %v1011 = vpop.f32.mrf.mxu0
  %v1012 = vadd.f32 0.0, %v1011
  %v1013 = vpop.f32.mrf.mxu0
  %1014 = vdwg.mxu0
  %1015 = vmatprep.subr.bf16.mxu0 0
  %1016 = vmatpush1.bf16.msra.mxu0 %v765
  %1017 = vmatprep.subr.bf16.mxu0 0
  %1018 = vmatpush1.bf16.msra.mxu0 %v764
  %1019 = vmatprep.subr.bf16.mxu0 0
  %1020 = vmatpush1.bf16.msra.mxu0 %v763
  %1021 = vmatprep.subr.bf16.mxu0 0
  %1022 = vmatpush1.bf16.msra.mxu0 %v762
  %1023 = vmatprep.subr.bf16.mxu0 0
  %1024 = vmatpush1.bf16.msra.mxu0 %v761
  %1025 = vmatprep.subr.bf16.mxu0 0
  %1026 = vmatpush1.bf16.msra.mxu0 %v760
  %1027 = vmatprep.subr.bf16.mxu0 0
  %1028 = vmatpush1.bf16.msra.mxu0 %v759
  %1029 = vmatprep.subr.bf16.mxu0 0
  %1030 = vmatpush1.bf16.msra.mxu0 %v758
  %1031 = vmatprep.subr.bf16.mxu0 0
  %1032 = vmatpush2.bf16.msra.mxu0 0
  %1033 = vmatprep.subr.bf16.mxu0 0
  %1034 = vmatpush2.bf16.msra.mxu0 0
  %1035 = vmatprep.subr.bf16.mxu0 0
  %1036 = vmatpush2.bf16.msra.mxu0 0
  %1037 = vmatprep.subr.bf16.mxu0 0
  %1038 = vmatpush2.bf16.msra.mxu0 0
  %1039 = vmatprep.subr.bf16.mxu0 0
  %1040 = vmatpush2.bf16.msra.mxu0 0
  %1041 = vmatprep.subr.bf16.mxu0 0
  %1042 = vmatpush2.bf16.msra.mxu0 0
  %1043 = vmatprep.subr.bf16.mxu0 0
  %1044 = vmatpush2.bf16.msra.mxu0 0
  %1045 = vmatprep.subr.bf16.mxu0 0
  %1046 = vmatpush2.bf16.msra.mxu0 0
  %1047 = vmatprep.mubr.bf16.mxu0 0
  %1048 = vmatmul.mubr.bf16.gmra.mxu0 %v504
  %v1049 = vpop.f32.mrf.mxu0
  %v1050 = vadd.f32 %v825, %v1049
  %v1051 = vpop.f32.mrf.mxu0
  %v1052 = vpop.f32.mrf.mxu0
  %v1053 = vadd.f32 %v828, %v1052
  %v1054 = vpop.f32.mrf.mxu0
  %1055 = vmatprep.mubr.bf16.mxu0 0
  %1056 = vmatmul.mubr.bf16.gmra.mxu0 %v507
  %v1057 = vpop.f32.mrf.mxu0
  %v1058 = vadd.f32 %v833, %v1057
  %v1059 = vpop.f32.mrf.mxu0
  %v1060 = vpop.f32.mrf.mxu0
  %v1061 = vadd.f32 %v836, %v1060
  %v1062 = vpop.f32.mrf.mxu0
  %1063 = vmatprep.mubr.bf16.mxu0 0
  %1064 = vmatmul.mubr.bf16.gmra.mxu0 %v510
  %v1065 = vpop.f32.mrf.mxu0
  %v1066 = vadd.f32 %v841, %v1065
  %v1067 = vpop.f32.mrf.mxu0
  %v1068 = vpop.f32.mrf.mxu0
  %v1069 = vadd.f32 %v844, %v1068
  %v1070 = vpop.f32.mrf.mxu0
  %1071 = vmatprep.mubr.bf16.mxu0 0
  %1072 = vmatmul.mubr.bf16.gmra.mxu0 %v513
  %v1073 = vpop.f32.mrf.mxu0
  %v1074 = vadd.f32 %v849, %v1073
  %v1075 = vpop.f32.mrf.mxu0
  %v1076 = vpop.f32.mrf.mxu0
  %v1077 = vadd.f32 %v852, %v1076
  %v1078 = vpop.f32.mrf.mxu0
  %1079 = vmatprep.mubr.bf16.mxu0 0
  %1080 = vmatmul.mubr.bf16.gmra.mxu0 %v516
  %v1081 = vpop.f32.mrf.mxu0
  %v1082 = vadd.f32 %v857, %v1081
  %v1083 = vpop.f32.mrf.mxu0
  %v1084 = vpop.f32.mrf.mxu0
  %v1085 = vadd.f32 %v860, %v1084
  %v1086 = vpop.f32.mrf.mxu0
  %1087 = vmatprep.mubr.bf16.mxu0 0
  %1088 = vmatmul.mubr.bf16.gmra.mxu0 %v519
  %v1089 = vpop.f32.mrf.mxu0
  %v1090 = vadd.f32 %v865, %v1089
  %v1091 = vpop.f32.mrf.mxu0
  %v1092 = vpop.f32.mrf.mxu0
  %v1093 = vadd.f32 %v868, %v1092
  %v1094 = vpop.f32.mrf.mxu0
  %1095 = vmatprep.mubr.bf16.mxu0 0
  %1096 = vmatmul.mubr.bf16.gmra.mxu0 %v522
  %v1097 = vpop.f32.mrf.mxu0
  %v1098 = vadd.f32 %v873, %v1097
  %v1099 = vpop.f32.mrf.mxu0
  %v1100 = vpop.f32.mrf.mxu0
  %v1101 = vadd.f32 %v876, %v1100
  %v1102 = vpop.f32.mrf.mxu0
  %1103 = vmatprep.mubr.bf16.mxu0 0
  %1104 = vmatmul.mubr.bf16.gmra.mxu0 %v525
  %v1105 = vpop.f32.mrf.mxu0
  %v1106 = vadd.f32 %v881, %v1105
  %v1107 = vpop.f32.mrf.mxu0
  %v1108 = vpop.f32.mrf.mxu0
  %v1109 = vadd.f32 %v884, %v1108
  %v1110 = vpop.f32.mrf.mxu0
  %1111 = vmatprep.mubr.bf16.mxu0 0
  %1112 = vmatmul.mubr.bf16.gmra.mxu0 %v528
  %v1113 = vpop.f32.mrf.mxu0
  %v1114 = vadd.f32 %v889, %v1113
  %v1115 = vpop.f32.mrf.mxu0
  %v1116 = vpop.f32.mrf.mxu0
  %v1117 = vadd.f32 %v892, %v1116
  %v1118 = vpop.f32.mrf.mxu0
  %1119 = vmatprep.mubr.bf16.mxu0 0
  %1120 = vmatmul.mubr.bf16.gmra.mxu0 %v531
  %v1121 = vpop.f32.mrf.mxu0
  %v1122 = vadd.f32 %v897, %v1121
  %v1123 = vpop.f32.mrf.mxu0
  %v1124 = vpop.f32.mrf.mxu0
  %v1125 = vadd.f32 %v900, %v1124
  %v1126 = vpop.f32.mrf.mxu0
  %1127 = vmatprep.mubr.bf16.mxu0 0
  %1128 = vmatmul.mubr.bf16.gmra.mxu0 %v534
  %v1129 = vpop.f32.mrf.mxu0
  %v1130 = vadd.f32 %v905, %v1129
  %v1131 = vpop.f32.mrf.mxu0
  %v1132 = vpop.f32.mrf.mxu0
  %v1133 = vadd.f32 %v908, %v1132
  %v1134 = vpop.f32.mrf.mxu0
  %1135 = vmatprep.mubr.bf16.mxu0 0
  %1136 = vmatmul.mubr.bf16.gmra.mxu0 %v537
  %v1137 = vpop.f32.mrf.mxu0
  %v1138 = vadd.f32 %v913, %v1137
  %v1139 = vpop.f32.mrf.mxu0
  %v1140 = vpop.f32.mrf.mxu0
  %v1141 = vadd.f32 %v916, %v1140
  %v1142 = vpop.f32.mrf.mxu0
  %1143 = vmatprep.mubr.bf16.mxu0 0
  %1144 = vmatmul.mubr.bf16.gmra.mxu0 %v540
  %v1145 = vpop.f32.mrf.mxu0
  %v1146 = vadd.f32 %v921, %v1145
  %v1147 = vpop.f32.mrf.mxu0
  %v1148 = vpop.f32.mrf.mxu0
  %v1149 = vadd.f32 %v924, %v1148
  %v1150 = vpop.f32.mrf.mxu0
  %1151 = vmatprep.mubr.bf16.mxu0 0
  %1152 = vmatmul.mubr.bf16.gmra.mxu0 %v543
  %v1153 = vpop.f32.mrf.mxu0
  %v1154 = vadd.f32 %v929, %v1153
  %v1155 = vpop.f32.mrf.mxu0
  %v1156 = vpop.f32.mrf.mxu0
  %v1157 = vadd.f32 %v932, %v1156
  %v1158 = vpop.f32.mrf.mxu0
  %1159 = vmatprep.mubr.bf16.mxu0 0
  %1160 = vmatmul.mubr.bf16.gmra.mxu0 %v546
  %v1161 = vpop.f32.mrf.mxu0
  %v1162 = vadd.f32 %v937, %v1161
  %v1163 = vpop.f32.mrf.mxu0
  %v1164 = vpop.f32.mrf.mxu0
  %v1165 = vadd.f32 %v940, %v1164
  %v1166 = vpop.f32.mrf.mxu0
  %1167 = vmatprep.mubr.bf16.mxu0 0
  %1168 = vmatmul.mubr.bf16.gmra.mxu0 %v549
  %v1169 = vpop.f32.mrf.mxu0
  %v1170 = vadd.f32 %v945, %v1169
  %v1171 = vpop.f32.mrf.mxu0
  %v1172 = vpop.f32.mrf.mxu0
  %v1173 = vadd.f32 %v948, %v1172
  %v1174 = vpop.f32.mrf.mxu0
  %1175 = vmatprep.mubr.bf16.mxu0 0
  %1176 = vmatmul.mubr.bf16.gmra.mxu0 %v552
  %v1177 = vpop.f32.mrf.mxu0
  %v1178 = vadd.f32 %v953, %v1177
  %v1179 = vpop.f32.mrf.mxu0
  %v1180 = vpop.f32.mrf.mxu0
  %v1181 = vadd.f32 %v956, %v1180
  %v1182 = vpop.f32.mrf.mxu0
  %1183 = vmatprep.mubr.bf16.mxu0 0
  %1184 = vmatmul.mubr.bf16.gmra.mxu0 %v555
  %v1185 = vpop.f32.mrf.mxu0
  %v1186 = vadd.f32 %v961, %v1185
  %v1187 = vpop.f32.mrf.mxu0
  %v1188 = vpop.f32.mrf.mxu0
  %v1189 = vadd.f32 %v964, %v1188
  %v1190 = vpop.f32.mrf.mxu0
  %1191 = vmatprep.mubr.bf16.mxu0 0
  %1192 = vmatmul.mubr.bf16.gmra.mxu0 %v558
  %v1193 = vpop.f32.mrf.mxu0
  %v1194 = vadd.f32 %v969, %v1193
  %v1195 = vpop.f32.mrf.mxu0
  %v1196 = vpop.f32.mrf.mxu0
  %v1197 = vadd.f32 %v972, %v1196
  %v1198 = vpop.f32.mrf.mxu0
  %1199 = vmatprep.mubr.bf16.mxu0 0
  %1200 = vmatmul.mubr.bf16.gmra.mxu0 %v561
  %v1201 = vpop.f32.mrf.mxu0
  %v1202 = vadd.f32 %v977, %v1201
  %v1203 = vpop.f32.mrf.mxu0
  %v1204 = vpop.f32.mrf.mxu0
  %v1205 = vadd.f32 %v980, %v1204
  %v1206 = vpop.f32.mrf.mxu0
  %1207 = vmatprep.mubr.bf16.mxu0 0
  %1208 = vmatmul.mubr.bf16.gmra.mxu0 %v564
  %v1209 = vpop.f32.mrf.mxu0
  %v1210 = vadd.f32 %v985, %v1209
  %v1211 = vpop.f32.mrf.mxu0
  %v1212 = vpop.f32.mrf.mxu0
  %v1213 = vadd.f32 %v988, %v1212
  %v1214 = vpop.f32.mrf.mxu0
  %1215 = vmatprep.mubr.bf16.mxu0 0
  %1216 = vmatmul.mubr.bf16.gmra.mxu0 %v567
  %v1217 = vpop.f32.mrf.mxu0
  %v1218 = vadd.f32 %v993, %v1217
  %v1219 = vpop.f32.mrf.mxu0
  %v1220 = vpop.f32.mrf.mxu0
  %v1221 = vadd.f32 %v996, %v1220
  %v1222 = vpop.f32.mrf.mxu0
  %1223 = vmatprep.mubr.bf16.mxu0 0
  %1224 = vmatmul.mubr.bf16.gmra.mxu0 %v570
  %v1225 = vpop.f32.mrf.mxu0
  %v1226 = vadd.f32 %v1001, %v1225
  %v1227 = vpop.f32.mrf.mxu0
  %v1228 = vpop.f32.mrf.mxu0
  %v1229 = vadd.f32 %v1004, %v1228
  %v1230 = vpop.f32.mrf.mxu0
  %1231 = vmatprep.mubr.bf16.mxu0 0
  %1232 = vmatmul.mubr.bf16.gmra.mxu0 %v573
  %v1233 = vpop.f32.mrf.mxu0
  %v1234 = vadd.f32 %v1009, %v1233
  %v1235 = vpop.f32.mrf.mxu0
  %v1236 = vpop.f32.mrf.mxu0
  %v1237 = vadd.f32 %v1012, %v1236
  %v1238 = vpop.f32.mrf.mxu0
  %1239 = vdwg.mxu0
  %v1240 = vadd.f32 %v70, %v1050
  %v1241 = vadd.f32 %v71, %v1053
  %v1242 = vadd.f32 %v72, %v1058
  %v1243 = vadd.f32 %v73, %v1061
  %v1244 = vadd.f32 %v74, %v1066
  %v1245 = vadd.f32 %v75, %v1069
  %v1246 = vadd.f32 %v76, %v1074
  %v1247 = vadd.f32 %v77, %v1077
  %v1248 = vadd.f32 %v78, %v1082
  %v1249 = vadd.f32 %v79, %v1085
  %v1250 = vadd.f32 %v80, %v1090
  %v1251 = vadd.f32 %v81, %v1093
  %v1252 = vadd.f32 %v82, %v1098
  %v1253 = vadd.f32 %v83, %v1101
  %v1254 = vadd.f32 %v84, %v1106
  %v1255 = vadd.f32 %v85, %v1109
  %v1256 = vadd.f32 %v86, %v1114
  %v1257 = vadd.f32 %v87, %v1117
  %v1258 = vadd.f32 %v88, %v1122
  %v1259 = vadd.f32 %v89, %v1125
  %v1260 = vadd.f32 %v90, %v1130
  %v1261 = vadd.f32 %v91, %v1133
  %v1262 = vadd.f32 %v92, %v1138
  %v1263 = vadd.f32 %v93, %v1141
  %v1264 = vadd.f32 %v94, %v1146
  %v1265 = vadd.f32 %v95, %v1149
  %v1266 = vadd.f32 %v96, %v1154
  %v1267 = vadd.f32 %v97, %v1157
  %v1268 = vadd.f32 %v98, %v1162
  %v1269 = vadd.f32 %v99, %v1165
  %v1270 = vadd.f32 %v100, %v1170
  %v1271 = vadd.f32 %v101, %v1173
  %v1272 = vadd.f32 %v102, %v1178
  %v1273 = vadd.f32 %v103, %v1181
  %v1274 = vadd.f32 %v104, %v1186
  %v1275 = vadd.f32 %v105, %v1189
  %v1276 = vadd.f32 %v106, %v1194
  %v1277 = vadd.f32 %v107, %v1197
  %v1278 = vadd.f32 %v108, %v1202
  %v1279 = vadd.f32 %v109, %v1205
  %v1280 = vadd.f32 %v110, %v1210
  %v1281 = vadd.f32 %v111, %v1213
  %v1282 = vadd.f32 %v112, %v1218
  %v1283 = vadd.f32 %v113, %v1221
  %v1284 = vadd.f32 %v114, %v1226
  %v1285 = vadd.f32 %v115, %v1229
  %v1286 = vadd.f32 %v116, %v1234
  %v1287 = vadd.f32 %v117, %v1237
  %1288 = vst [vmem:[#allocation2] sm:$0xff] %v1240
  %1289 = vst [vmem:[#allocation2 + $0x8] sm:$0xff] %v1241
  %1290 = vst [vmem:[#allocation2 + $0x10] sm:$0xff] %v1242
  %1291 = vst [vmem:[#allocation2 + $0x18] sm:$0xff] %v1243
  %1292 = vst [vmem:[#allocation2 + $0x20] sm:$0xff] %v1244
  %1293 = vst [vmem:[#allocation2 + $0x28] sm:$0xff] %v1245
  %1294 = vst [vmem:[#allocation2 + $0x30] sm:$0xff] %v1246
  %1295 = vst [vmem:[#allocation2 + $0x38] sm:$0xff] %v1247
  %1296 = vst [vmem:[#allocation2 + $0x40] sm:$0xff] %v1248
  %1297 = vst [vmem:[#allocation2 + $0x48] sm:$0xff] %v1249
  %1298 = vst [vmem:[#allocation2 + $0x50] sm:$0xff] %v1250
  %1299 = vst [vmem:[#allocation2 + $0x58] sm:$0xff] %v1251
  %1300 = vst [vmem:[#allocation2 + $0x60] sm:$0xff] %v1252
  %1301 = vst [vmem:[#allocation2 + $0x68] sm:$0xff] %v1253
  %1302 = vst [vmem:[#allocation2 + $0x70] sm:$0xff] %v1254
  %1303 = vst [vmem:[#allocation2 + $0x78] sm:$0xff] %v1255
  %1304 = vst [vmem:[#allocation2 + $0x80] sm:$0xff] %v1256
  %1305 = vst [vmem:[#allocation2 + $0x88] sm:$0xff] %v1257
  %1306 = vst [vmem:[#allocation2 + $0x90] sm:$0xff] %v1258
  %1307 = vst [vmem:[#allocation2 + $0x98] sm:$0xff] %v1259
  %1308 = vst [vmem:[#allocation2 + $0xa0] sm:$0xff] %v1260
  %1309 = vst [vmem:[#allocation2 + $0xa8] sm:$0xff] %v1261
  %1310 = vst [vmem:[#allocation2 + $0xb0] sm:$0xff] %v1262
  %1311 = vst [vmem:[#allocation2 + $0xb8] sm:$0xff] %v1263
  %1312 = vst [vmem:[#allocation2 + $0xc0] sm:$0xff] %v1264
  %1313 = vst [vmem:[#allocation2 + $0xc8] sm:$0xff] %v1265
  %1314 = vst [vmem:[#allocation2 + $0xd0] sm:$0xff] %v1266
  %1315 = vst [vmem:[#allocation2 + $0xd8] sm:$0xff] %v1267
  %1316 = vst [vmem:[#allocation2 + $0xe0] sm:$0xff] %v1268
  %1317 = vst [vmem:[#allocation2 + $0xe8] sm:$0xff] %v1269
  %1318 = vst [vmem:[#allocation2 + $0xf0] sm:$0xff] %v1270
  %1319 = vst [vmem:[#allocation2 + $0xf8] sm:$0xff] %v1271
  %1320 = vst [vmem:[#allocation2 + $0x100] sm:$0xff] %v1272
  %1321 = vst [vmem:[#allocation2 + $0x108] sm:$0xff] %v1273
  %1322 = vst [vmem:[#allocation2 + $0x110] sm:$0xff] %v1274
  %1323 = vst [vmem:[#allocation2 + $0x118] sm:$0xff] %v1275
  %1324 = vst [vmem:[#allocation2 + $0x120] sm:$0xff] %v1276
  %1325 = vst [vmem:[#allocation2 + $0x128] sm:$0xff] %v1277
  %1326 = vst [vmem:[#allocation2 + $0x130] sm:$0xff] %v1278
  %1327 = vst [vmem:[#allocation2 + $0x138] sm:$0xff] %v1279
  %1328 = vst [vmem:[#allocation2 + $0x140] sm:$0xff] %v1280
  %1329 = vst [vmem:[#allocation2 + $0x148] sm:$0xff] %v1281
  %1330 = vst [vmem:[#allocation2 + $0x150] sm:$0xff] %v1282
  %1331 = vst [vmem:[#allocation2 + $0x158] sm:$0xff] %v1283
  %1332 = vst [vmem:[#allocation2 + $0x160] sm:$0xff] %v1284
  %1333 = vst [vmem:[#allocation2 + $0x168] sm:$0xff] %v1285
  %1334 = vst [vmem:[#allocation2 + $0x170] sm:$0xff] %v1286
  %1335 = vst [vmem:[#allocation2 + $0x178] sm:$0xff] %v1287
  // Predicated region
  $region22: #{gcn_forward.2} parent=0 // pred_check
    %p1336 = pneg %p18
  $region23: #{gcn_forward.2} parent=0 // pred_check_branch
    %1338 = sbr.rel (%p1336) target = $region25
  $region24: #{gcn_forward.2} parent=0 // pred_region
    %v1339 = vld [vmem:[#allocation2] sm:$0xff]
    %v1340 = vld [vmem:[#allocation2 + $0x8] sm:$0xff]
    %v1341 = vld [vmem:[#allocation2 + $0x10] sm:$0xff]
    %v1342 = vld [vmem:[#allocation2 + $0x18] sm:$0xff]
    %v1343 = vld [vmem:[#allocation2 + $0x20] sm:$0xff]
    %v1344 = vld [vmem:[#allocation2 + $0x28] sm:$0xff]
    %v1345 = vld [vmem:[#allocation2 + $0x30] sm:$0xff]
    %v1346 = vld [vmem:[#allocation2 + $0x38] sm:$0xff]
    %v1347 = vld [vmem:[#allocation2 + $0x40] sm:$0xff]
    %v1348 = vld [vmem:[#allocation2 + $0x48] sm:$0xff]
    %v1349 = vld [vmem:[#allocation2 + $0x50] sm:$0xff]
    %v1350 = vld [vmem:[#allocation2 + $0x58] sm:$0xff]
    %v1351 = vld [vmem:[#allocation2 + $0x60] sm:$0xff]
    %v1352 = vld [vmem:[#allocation2 + $0x68] sm:$0xff]
    %v1353 = vld [vmem:[#allocation2 + $0x70] sm:$0xff]
    %v1354 = vld [vmem:[#allocation2 + $0x78] sm:$0xff]
    %v1355 = vld [vmem:[#allocation2 + $0x80] sm:$0xff]
    %v1356 = vld [vmem:[#allocation2 + $0x88] sm:$0xff]
    %v1357 = vld [vmem:[#allocation2 + $0x90] sm:$0xff]
    %v1358 = vld [vmem:[#allocation2 + $0x98] sm:$0xff]
    %v1359 = vld [vmem:[#allocation2 + $0xa0] sm:$0xff]
    %v1360 = vld [vmem:[#allocation2 + $0xa8] sm:$0xff]
    %v1361 = vld [vmem:[#allocation2 + $0xb0] sm:$0xff]
    %v1362 = vld [vmem:[#allocation2 + $0xb8] sm:$0xff]
    %v1363 = vld [vmem:[#allocation2 + $0xc0] sm:$0xff]
    %v1364 = vld [vmem:[#allocation2 + $0xc8] sm:$0xff]
    %v1365 = vld [vmem:[#allocation2 + $0xd0] sm:$0xff]
    %v1366 = vld [vmem:[#allocation2 + $0xd8] sm:$0xff]
    %v1367 = vld [vmem:[#allocation2 + $0xe0] sm:$0xff]
    %v1368 = vld [vmem:[#allocation2 + $0xe8] sm:$0xff]
    %v1369 = vld [vmem:[#allocation2 + $0xf0] sm:$0xff]
    %v1370 = vld [vmem:[#allocation2 + $0xf8] sm:$0xff]
    %v1371 = vld [vmem:[#allocation2 + $0x100] sm:$0xff]
    %v1372 = vld [vmem:[#allocation2 + $0x108] sm:$0xff]
    %v1373 = vld [vmem:[#allocation2 + $0x110] sm:$0xff]
    %v1374 = vld [vmem:[#allocation2 + $0x118] sm:$0xff]
    %v1375 = vld [vmem:[#allocation2 + $0x120] sm:$0xff]
    %v1376 = vld [vmem:[#allocation2 + $0x128] sm:$0xff]
    %v1377 = vld [vmem:[#allocation2 + $0x130] sm:$0xff]
    %v1378 = vld [vmem:[#allocation2 + $0x138] sm:$0xff]
    %v1379 = vld [vmem:[#allocation2 + $0x140] sm:$0xff]
    %v1380 = vld [vmem:[#allocation2 + $0x148] sm:$0xff]
    %v1381 = vld [vmem:[#allocation2 + $0x150] sm:$0xff]
    %v1382 = vld [vmem:[#allocation2 + $0x158] sm:$0xff]
    %v1383 = vld [vmem:[#allocation2 + $0x160] sm:$0xff]
    %v1384 = vld [vmem:[#allocation2 + $0x168] sm:$0xff]
    %v1385 = vld [vmem:[#allocation2 + $0x170] sm:$0xff]
    %v1386 = vld [vmem:[#allocation2 + $0x178] sm:$0xff]
    %v1387 = vld [vmem:[%s2] sm:$0x1]
    %v1389 = vlaneseq
    %v1390 = vshrl.u32 %v1389, 7
    %v1391 = vsub.s32 0, %v1390
    %v1392 = vrot.slane %v1387, %v1391
    %v1394 = vadd.f32 %v1339, %v1392
    %v1395 = vadd.f32 %v1340, %v1392
    %v1396 = vadd.f32 %v1341, %v1392
    %v1397 = vadd.f32 %v1342, %v1392
    %v1398 = vadd.f32 %v1343, %v1392
    %v1399 = vadd.f32 %v1344, %v1392
    %v1400 = vadd.f32 %v1345, %v1392
    %v1401 = vadd.f32 %v1346, %v1392
    %v1402 = vadd.f32 %v1347, %v1392
    %v1403 = vadd.f32 %v1348, %v1392
    %v1404 = vadd.f32 %v1349, %v1392
    %v1405 = vadd.f32 %v1350, %v1392
    %v1406 = vadd.f32 %v1351, %v1392
    %v1407 = vadd.f32 %v1352, %v1392
    %v1408 = vadd.f32 %v1353, %v1392
    %v1409 = vadd.f32 %v1354, %v1392
    %v1410 = vadd.f32 %v1355, %v1392
    %v1411 = vadd.f32 %v1356, %v1392
    %v1412 = vadd.f32 %v1357, %v1392
    %v1413 = vadd.f32 %v1358, %v1392
    %v1414 = vadd.f32 %v1359, %v1392
    %v1415 = vadd.f32 %v1360, %v1392
    %v1416 = vadd.f32 %v1361, %v1392
    %v1417 = vadd.f32 %v1362, %v1392
    %v1418 = vadd.f32 %v1363, %v1392
    %v1419 = vadd.f32 %v1364, %v1392
    %v1420 = vadd.f32 %v1365, %v1392
    %v1421 = vadd.f32 %v1366, %v1392
    %v1422 = vadd.f32 %v1367, %v1392
    %v1423 = vadd.f32 %v1368, %v1392
    %v1424 = vadd.f32 %v1369, %v1392
    %v1425 = vadd.f32 %v1370, %v1392
    %v1426 = vadd.f32 %v1371, %v1392
    %v1427 = vadd.f32 %v1372, %v1392
    %v1428 = vadd.f32 %v1373, %v1392
    %v1429 = vadd.f32 %v1374, %v1392
    %v1430 = vadd.f32 %v1375, %v1392
    %v1431 = vadd.f32 %v1376, %v1392
    %v1432 = vadd.f32 %v1377, %v1392
    %v1433 = vadd.f32 %v1378, %v1392
    %v1434 = vadd.f32 %v1379, %v1392
    %v1435 = vadd.f32 %v1380, %v1392
    %v1436 = vadd.f32 %v1381, %v1392
    %v1437 = vadd.f32 %v1382, %v1392
    %v1438 = vadd.f32 %v1383, %v1392
    %v1439 = vadd.f32 %v1384, %v1392
    %v1440 = vadd.f32 %v1385, %v1392
    %v1441 = vadd.f32 %v1386, %v1392
    %v1442 = vmax.f32 %v1394, 0.0
    %v1443 = vmax.f32 %v1395, 0.0
    %v1444 = vmax.f32 %v1396, 0.0
    %v1445 = vmax.f32 %v1397, 0.0
    %v1446 = vmax.f32 %v1398, 0.0
    %v1447 = vmax.f32 %v1399, 0.0
    %v1448 = vmax.f32 %v1400, 0.0
    %v1449 = vmax.f32 %v1401, 0.0
    %v1450 = vmax.f32 %v1402, 0.0
    %v1451 = vmax.f32 %v1403, 0.0
    %v1452 = vmax.f32 %v1404, 0.0
    %v1453 = vmax.f32 %v1405, 0.0
    %v1454 = vmax.f32 %v1406, 0.0
    %v1455 = vmax.f32 %v1407, 0.0
    %v1456 = vmax.f32 %v1408, 0.0
    %v1457 = vmax.f32 %v1409, 0.0
    %v1458 = vmax.f32 %v1410, 0.0
    %v1459 = vmax.f32 %v1411, 0.0
    %v1460 = vmax.f32 %v1412, 0.0
    %v1461 = vmax.f32 %v1413, 0.0
    %v1462 = vmax.f32 %v1414, 0.0
    %v1463 = vmax.f32 %v1415, 0.0
    %v1464 = vmax.f32 %v1416, 0.0
    %v1465 = vmax.f32 %v1417, 0.0
    %v1466 = vmax.f32 %v1418, 0.0
    %v1467 = vmax.f32 %v1419, 0.0
    %v1468 = vmax.f32 %v1420, 0.0
    %v1469 = vmax.f32 %v1421, 0.0
    %v1470 = vmax.f32 %v1422, 0.0
    %v1471 = vmax.f32 %v1423, 0.0
    %v1472 = vmax.f32 %v1424, 0.0
    %v1473 = vmax.f32 %v1425, 0.0
    %v1474 = vmax.f32 %v1426, 0.0
    %v1475 = vmax.f32 %v1427, 0.0
    %v1476 = vmax.f32 %v1428, 0.0
    %v1477 = vmax.f32 %v1429, 0.0
    %v1478 = vmax.f32 %v1430, 0.0
    %v1479 = vmax.f32 %v1431, 0.0
    %v1480 = vmax.f32 %v1432, 0.0
    %v1481 = vmax.f32 %v1433, 0.0
    %v1482 = vmax.f32 %v1434, 0.0
    %v1483 = vmax.f32 %v1435, 0.0
    %v1484 = vmax.f32 %v1436, 0.0
    %v1485 = vmax.f32 %v1437, 0.0
    %v1486 = vmax.f32 %v1438, 0.0
    %v1487 = vmax.f32 %v1439, 0.0
    %v1488 = vmax.f32 %v1440, 0.0
    %v1489 = vmax.f32 %v1441, 0.0
    %v1490 = vpack.c.bf16 %v1443, %v1442
    %v1491 = vpack.c.bf16 %v1445, %v1444
    %v1492 = vpack.c.bf16 %v1447, %v1446
    %v1493 = vpack.c.bf16 %v1449, %v1448
    %v1494 = vpack.c.bf16 %v1451, %v1450
    %v1495 = vpack.c.bf16 %v1453, %v1452
    %v1496 = vpack.c.bf16 %v1455, %v1454
    %v1497 = vpack.c.bf16 %v1457, %v1456
    %v1498 = vpack.c.bf16 %v1459, %v1458
    %v1499 = vpack.c.bf16 %v1461, %v1460
    %v1500 = vpack.c.bf16 %v1463, %v1462
    %v1501 = vpack.c.bf16 %v1465, %v1464
    %v1502 = vpack.c.bf16 %v1467, %v1466
    %v1503 = vpack.c.bf16 %v1469, %v1468
    %v1504 = vpack.c.bf16 %v1471, %v1470
    %v1505 = vpack.c.bf16 %v1473, %v1472
    %v1506 = vpack.c.bf16 %v1475, %v1474
    %v1507 = vpack.c.bf16 %v1477, %v1476
    %v1508 = vpack.c.bf16 %v1479, %v1478
    %v1509 = vpack.c.bf16 %v1481, %v1480
    %v1510 = vpack.c.bf16 %v1483, %v1482
    %v1511 = vpack.c.bf16 %v1485, %v1484
    %v1512 = vpack.c.bf16 %v1487, %v1486
    %v1513 = vpack.c.bf16 %v1489, %v1488
    %v1514 = vld [vmem:[%s3] sm:$0xf]
    %v1515 = vld [vmem:[%s3 + $0x4] sm:$0xf]
    %v1516 = vld [vmem:[%s3 + $0x8] sm:$0xf]
    %v1517 = vld [vmem:[%s3 + $0xc] sm:$0xf]
    %v1518 = vld [vmem:[%s3 + $0x10] sm:$0xf]
    %v1519 = vld [vmem:[%s3 + $0x14] sm:$0xf]
    %v1520 = vld [vmem:[%s3 + $0x18] sm:$0xf]
    %v1521 = vld [vmem:[%s3 + $0x1c] sm:$0xf]
    %v1522 = vld [vmem:[%s3 + $0x20] sm:$0xf]
    %v1523 = vld [vmem:[%s3 + $0x24] sm:$0xf]
    %v1524 = vld [vmem:[%s3 + $0x28] sm:$0xf]
    %v1525 = vld [vmem:[%s3 + $0x2c] sm:$0xf]
    %v1526 = vld [vmem:[%s3 + $0x30] sm:$0xf]
    %v1527 = vld [vmem:[%s3 + $0x34] sm:$0xf]
    %v1528 = vld [vmem:[%s3 + $0x38] sm:$0xf]
    %v1529 = vld [vmem:[%s3 + $0x3c] sm:$0xf]
    %v1546 = vunpack.c.l.b16 %v1514
    %v1547 = vunpack.c.l.b16 %v1515
    %v1548 = vunpack.c.l.b16 %v1516
    %v1549 = vunpack.c.l.b16 %v1517
    %v1550 = vunpack.c.l.b16 %v1518
    %v1551 = vunpack.c.l.b16 %v1519
    %v1552 = vunpack.c.l.b16 %v1520
    %v1553 = vunpack.c.l.b16 %v1521
    %v1554 = vunpack.c.l.b16 %v1522
    %v1555 = vunpack.c.l.b16 %v1523
    %v1556 = vunpack.c.l.b16 %v1524
    %v1557 = vunpack.c.l.b16 %v1525
    %v1558 = vunpack.c.l.b16 %v1526
    %v1559 = vunpack.c.l.b16 %v1527
    %v1560 = vunpack.c.l.b16 %v1528
    %v1561 = vunpack.c.l.b16 %v1529
    %v1562 = vpack.c.b16 %v1547, %v1546
    %v1563 = vpack.c.b16 %v1549, %v1548
    %v1564 = vpack.c.b16 %v1551, %v1550
    %v1565 = vpack.c.b16 %v1553, %v1552
    %v1566 = vpack.c.b16 %v1555, %v1554
    %v1567 = vpack.c.b16 %v1557, %v1556
    %v1568 = vpack.c.b16 %v1559, %v1558
    %v1569 = vpack.c.b16 %v1561, %v1560
    %1578 = vmatprep.subr.bf16.mxu0 0
    %1579 = vmatpush1.bf16.msra.mxu0 %v1569
    %1580 = vmatprep.subr.bf16.mxu0 0
    %1581 = vmatpush1.bf16.msra.mxu0 %v1568
    %1582 = vmatprep.subr.bf16.mxu0 0
    %1583 = vmatpush1.bf16.msra.mxu0 %v1567
    %1584 = vmatprep.subr.bf16.mxu0 0
    %1585 = vmatpush1.bf16.msra.mxu0 %v1566
    %1586 = vmatprep.subr.bf16.mxu0 0
    %1587 = vmatpush1.bf16.msra.mxu0 %v1565
    %1588 = vmatprep.subr.bf16.mxu0 0
    %1589 = vmatpush1.bf16.msra.mxu0 %v1564
    %1590 = vmatprep.subr.bf16.mxu0 0
    %1591 = vmatpush1.bf16.msra.mxu0 %v1563
    %1592 = vmatprep.subr.bf16.mxu0 0
    %1593 = vmatpush1.bf16.msra.mxu0 %v1562
    %1594 = vmatprep.subr.bf16.mxu0 0
    %1595 = vmatpush2.bf16.msra.mxu0 0
    %1596 = vmatprep.subr.bf16.mxu0 0
    %1597 = vmatpush2.bf16.msra.mxu0 0
    %1598 = vmatprep.subr.bf16.mxu0 0
    %1599 = vmatpush2.bf16.msra.mxu0 0
    %1600 = vmatprep.subr.bf16.mxu0 0
    %1601 = vmatpush2.bf16.msra.mxu0 0
    %1602 = vmatprep.subr.bf16.mxu0 0
    %1603 = vmatpush2.bf16.msra.mxu0 0
    %1604 = vmatprep.subr.bf16.mxu0 0
    %1605 = vmatpush2.bf16.msra.mxu0 0
    %1606 = vmatprep.subr.bf16.mxu0 0
    %1607 = vmatpush2.bf16.msra.mxu0 0
    %1608 = vmatprep.subr.bf16.mxu0 0
    %1609 = vmatpush2.bf16.msra.mxu0 0
    %1610 = vmatprep.mubr.bf16.mxu0 0
    %1611 = vmatmul.mubr.bf16.gmra.mxu0 %v1490
    %v1612 = vpop.f32.mrf.mxu0
    %v1613 = vadd.f32 0.0, %v1612
    %v1614 = vpop.f32.mrf.mxu0
    %v1615 = vpop.f32.mrf.mxu0
    %v1616 = vadd.f32 0.0, %v1615
    %v1617 = vpop.f32.mrf.mxu0
    %1618 = vmatprep.mubr.bf16.mxu0 0
    %1619 = vmatmul.mubr.bf16.gmra.mxu0 %v1491
    %v1620 = vpop.f32.mrf.mxu0
    %v1621 = vadd.f32 0.0, %v1620
    %v1622 = vpop.f32.mrf.mxu0
    %v1623 = vpop.f32.mrf.mxu0
    %v1624 = vadd.f32 0.0, %v1623
    %v1625 = vpop.f32.mrf.mxu0
    %1626 = vmatprep.mubr.bf16.mxu0 0
    %1627 = vmatmul.mubr.bf16.gmra.mxu0 %v1492
    %v1628 = vpop.f32.mrf.mxu0
    %v1629 = vadd.f32 0.0, %v1628
    %v1630 = vpop.f32.mrf.mxu0
    %v1631 = vpop.f32.mrf.mxu0
    %v1632 = vadd.f32 0.0, %v1631
    %v1633 = vpop.f32.mrf.mxu0
    %1634 = vmatprep.mubr.bf16.mxu0 0
    %1635 = vmatmul.mubr.bf16.gmra.mxu0 %v1493
    %v1636 = vpop.f32.mrf.mxu0
    %v1637 = vadd.f32 0.0, %v1636
    %v1638 = vpop.f32.mrf.mxu0
    %v1639 = vpop.f32.mrf.mxu0
    %v1640 = vadd.f32 0.0, %v1639
    %v1641 = vpop.f32.mrf.mxu0
    %1642 = vmatprep.mubr.bf16.mxu0 0
    %1643 = vmatmul.mubr.bf16.gmra.mxu0 %v1494
    %v1644 = vpop.f32.mrf.mxu0
    %v1645 = vadd.f32 0.0, %v1644
    %v1646 = vpop.f32.mrf.mxu0
    %v1647 = vpop.f32.mrf.mxu0
    %v1648 = vadd.f32 0.0, %v1647
    %v1649 = vpop.f32.mrf.mxu0
    %1650 = vmatprep.mubr.bf16.mxu0 0
    %1651 = vmatmul.mubr.bf16.gmra.mxu0 %v1495
    %v1652 = vpop.f32.mrf.mxu0
    %v1653 = vadd.f32 0.0, %v1652
    %v1654 = vpop.f32.mrf.mxu0
    %v1655 = vpop.f32.mrf.mxu0
    %v1656 = vadd.f32 0.0, %v1655
    %v1657 = vpop.f32.mrf.mxu0
    %1658 = vmatprep.mubr.bf16.mxu0 0
    %1659 = vmatmul.mubr.bf16.gmra.mxu0 %v1496
    %v1660 = vpop.f32.mrf.mxu0
    %v1661 = vadd.f32 0.0, %v1660
    %v1662 = vpop.f32.mrf.mxu0
    %v1663 = vpop.f32.mrf.mxu0
    %v1664 = vadd.f32 0.0, %v1663
    %v1665 = vpop.f32.mrf.mxu0
    %1666 = vmatprep.mubr.bf16.mxu0 0
    %1667 = vmatmul.mubr.bf16.gmra.mxu0 %v1497
    %v1668 = vpop.f32.mrf.mxu0
    %v1669 = vadd.f32 0.0, %v1668
    %v1670 = vpop.f32.mrf.mxu0
    %v1671 = vpop.f32.mrf.mxu0
    %v1672 = vadd.f32 0.0, %v1671
    %v1673 = vpop.f32.mrf.mxu0
    %1674 = vmatprep.mubr.bf16.mxu0 0
    %1675 = vmatmul.mubr.bf16.gmra.mxu0 %v1498
    %v1676 = vpop.f32.mrf.mxu0
    %v1677 = vadd.f32 0.0, %v1676
    %v1678 = vpop.f32.mrf.mxu0
    %v1679 = vpop.f32.mrf.mxu0
    %v1680 = vadd.f32 0.0, %v1679
    %v1681 = vpop.f32.mrf.mxu0
    %1682 = vmatprep.mubr.bf16.mxu0 0
    %1683 = vmatmul.mubr.bf16.gmra.mxu0 %v1499
    %v1684 = vpop.f32.mrf.mxu0
    %v1685 = vadd.f32 0.0, %v1684
    %v1686 = vpop.f32.mrf.mxu0
    %v1687 = vpop.f32.mrf.mxu0
    %v1688 = vadd.f32 0.0, %v1687
    %v1689 = vpop.f32.mrf.mxu0
    %1690 = vmatprep.mubr.bf16.mxu0 0
    %1691 = vmatmul.mubr.bf16.gmra.mxu0 %v1500
    %v1692 = vpop.f32.mrf.mxu0
    %v1693 = vadd.f32 0.0, %v1692
    %v1694 = vpop.f32.mrf.mxu0
    %v1695 = vpop.f32.mrf.mxu0
    %v1696 = vadd.f32 0.0, %v1695
    %v1697 = vpop.f32.mrf.mxu0
    %1698 = vmatprep.mubr.bf16.mxu0 0
    %1699 = vmatmul.mubr.bf16.gmra.mxu0 %v1501
    %v1700 = vpop.f32.mrf.mxu0
    %v1701 = vadd.f32 0.0, %v1700
    %v1702 = vpop.f32.mrf.mxu0
    %v1703 = vpop.f32.mrf.mxu0
    %v1704 = vadd.f32 0.0, %v1703
    %v1705 = vpop.f32.mrf.mxu0
    %1706 = vmatprep.mubr.bf16.mxu0 0
    %1707 = vmatmul.mubr.bf16.gmra.mxu0 %v1502
    %v1708 = vpop.f32.mrf.mxu0
    %v1709 = vadd.f32 0.0, %v1708
    %v1710 = vpop.f32.mrf.mxu0
    %v1711 = vpop.f32.mrf.mxu0
    %v1712 = vadd.f32 0.0, %v1711
    %v1713 = vpop.f32.mrf.mxu0
    %1714 = vmatprep.mubr.bf16.mxu0 0
    %1715 = vmatmul.mubr.bf16.gmra.mxu0 %v1503
    %v1716 = vpop.f32.mrf.mxu0
    %v1717 = vadd.f32 0.0, %v1716
    %v1718 = vpop.f32.mrf.mxu0
    %v1719 = vpop.f32.mrf.mxu0
    %v1720 = vadd.f32 0.0, %v1719
    %v1721 = vpop.f32.mrf.mxu0
    %1722 = vmatprep.mubr.bf16.mxu0 0
    %1723 = vmatmul.mubr.bf16.gmra.mxu0 %v1504
    %v1724 = vpop.f32.mrf.mxu0
    %v1725 = vadd.f32 0.0, %v1724
    %v1726 = vpop.f32.mrf.mxu0
    %v1727 = vpop.f32.mrf.mxu0
    %v1728 = vadd.f32 0.0, %v1727
    %v1729 = vpop.f32.mrf.mxu0
    %1730 = vmatprep.mubr.bf16.mxu0 0
    %1731 = vmatmul.mubr.bf16.gmra.mxu0 %v1505
    %v1732 = vpop.f32.mrf.mxu0
    %v1733 = vadd.f32 0.0, %v1732
    %v1734 = vpop.f32.mrf.mxu0
    %v1735 = vpop.f32.mrf.mxu0
    %v1736 = vadd.f32 0.0, %v1735
    %v1737 = vpop.f32.mrf.mxu0
    %1738 = vmatprep.mubr.bf16.mxu0 0
    %1739 = vmatmul.mubr.bf16.gmra.mxu0 %v1506
    %v1740 = vpop.f32.mrf.mxu0
    %v1741 = vadd.f32 0.0, %v1740
    %v1742 = vpop.f32.mrf.mxu0
    %v1743 = vpop.f32.mrf.mxu0
    %v1744 = vadd.f32 0.0, %v1743
    %v1745 = vpop.f32.mrf.mxu0
    %1746 = vmatprep.mubr.bf16.mxu0 0
    %1747 = vmatmul.mubr.bf16.gmra.mxu0 %v1507
    %v1748 = vpop.f32.mrf.mxu0
    %v1749 = vadd.f32 0.0, %v1748
    %v1750 = vpop.f32.mrf.mxu0
    %v1751 = vpop.f32.mrf.mxu0
    %v1752 = vadd.f32 0.0, %v1751
    %v1753 = vpop.f32.mrf.mxu0
    %1754 = vmatprep.mubr.bf16.mxu0 0
    %1755 = vmatmul.mubr.bf16.gmra.mxu0 %v1508
    %v1756 = vpop.f32.mrf.mxu0
    %v1757 = vadd.f32 0.0, %v1756
    %v1758 = vpop.f32.mrf.mxu0
    %v1759 = vpop.f32.mrf.mxu0
    %v1760 = vadd.f32 0.0, %v1759
    %v1761 = vpop.f32.mrf.mxu0
    %1762 = vmatprep.mubr.bf16.mxu0 0
    %1763 = vmatmul.mubr.bf16.gmra.mxu0 %v1509
    %v1764 = vpop.f32.mrf.mxu0
    %v1765 = vadd.f32 0.0, %v1764
    %v1766 = vpop.f32.mrf.mxu0
    %v1767 = vpop.f32.mrf.mxu0
    %v1768 = vadd.f32 0.0, %v1767
    %v1769 = vpop.f32.mrf.mxu0
    %1770 = vmatprep.mubr.bf16.mxu0 0
    %1771 = vmatmul.mubr.bf16.gmra.mxu0 %v1510
    %v1772 = vpop.f32.mrf.mxu0
    %v1773 = vadd.f32 0.0, %v1772
    %v1774 = vpop.f32.mrf.mxu0
    %v1775 = vpop.f32.mrf.mxu0
    %v1776 = vadd.f32 0.0, %v1775
    %v1777 = vpop.f32.mrf.mxu0
    %1778 = vmatprep.mubr.bf16.mxu0 0
    %1779 = vmatmul.mubr.bf16.gmra.mxu0 %v1511
    %v1780 = vpop.f32.mrf.mxu0
    %v1781 = vadd.f32 0.0, %v1780
    %v1782 = vpop.f32.mrf.mxu0
    %v1783 = vpop.f32.mrf.mxu0
    %v1784 = vadd.f32 0.0, %v1783
    %v1785 = vpop.f32.mrf.mxu0
    %1786 = vmatprep.mubr.bf16.mxu0 0
    %1787 = vmatmul.mubr.bf16.gmra.mxu0 %v1512
    %v1788 = vpop.f32.mrf.mxu0
    %v1789 = vadd.f32 0.0, %v1788
    %v1790 = vpop.f32.mrf.mxu0
    %v1791 = vpop.f32.mrf.mxu0
    %v1792 = vadd.f32 0.0, %v1791
    %v1793 = vpop.f32.mrf.mxu0
    %1794 = vmatprep.mubr.bf16.mxu0 0
    %1795 = vmatmul.mubr.bf16.gmra.mxu0 %v1513
    %v1796 = vpop.f32.mrf.mxu0
    %v1797 = vadd.f32 0.0, %v1796
    %v1798 = vpop.f32.mrf.mxu0
    %v1799 = vpop.f32.mrf.mxu0
    %v1800 = vadd.f32 0.0, %v1799
    %v1801 = vpop.f32.mrf.mxu0
    %1802 = vdwg.mxu0
    %v1803 = vpack.c.bf16 %v1616, %v1613
    %v1804 = vpack.c.bf16 %v1624, %v1621
    %v1805 = vpack.c.bf16 %v1632, %v1629
    %v1806 = vpack.c.bf16 %v1640, %v1637
    %v1807 = vpack.c.bf16 %v1648, %v1645
    %v1808 = vpack.c.bf16 %v1656, %v1653
    %v1809 = vpack.c.bf16 %v1664, %v1661
    %v1810 = vpack.c.bf16 %v1672, %v1669
    %v1811 = vpack.c.bf16 %v1680, %v1677
    %v1812 = vpack.c.bf16 %v1688, %v1685
    %v1813 = vpack.c.bf16 %v1696, %v1693
    %v1814 = vpack.c.bf16 %v1704, %v1701
    %v1815 = vpack.c.bf16 %v1712, %v1709
    %v1816 = vpack.c.bf16 %v1720, %v1717
    %v1817 = vpack.c.bf16 %v1728, %v1725
    %v1818 = vpack.c.bf16 %v1736, %v1733
    %v1819 = vpack.c.bf16 %v1744, %v1741
    %v1820 = vpack.c.bf16 %v1752, %v1749
    %v1821 = vpack.c.bf16 %v1760, %v1757
    %v1822 = vpack.c.bf16 %v1768, %v1765
    %v1823 = vpack.c.bf16 %v1776, %v1773
    %v1824 = vpack.c.bf16 %v1784, %v1781
    %v1825 = vpack.c.bf16 %v1792, %v1789
    %v1826 = vpack.c.bf16 %v1800, %v1797
    %v1851 = vunpack.c.l.b16 %v1803
    %v1852 = vunpack.c.h.b16 %v1803
    %v1853 = vunpack.c.l.b16 %v1804
    %v1854 = vunpack.c.h.b16 %v1804
    %v1855 = vunpack.c.l.b16 %v1805
    %v1856 = vunpack.c.h.b16 %v1805
    %v1857 = vunpack.c.l.b16 %v1806
    %v1858 = vunpack.c.h.b16 %v1806
    %v1859 = vunpack.c.l.b16 %v1807
    %v1860 = vunpack.c.h.b16 %v1807
    %v1861 = vunpack.c.l.b16 %v1808
    %v1862 = vunpack.c.h.b16 %v1808
    %v1863 = vunpack.c.l.b16 %v1809
    %v1864 = vunpack.c.h.b16 %v1809
    %v1865 = vunpack.c.l.b16 %v1810
    %v1866 = vunpack.c.h.b16 %v1810
    %v1867 = vunpack.c.l.b16 %v1811
    %v1868 = vunpack.c.h.b16 %v1811
    %v1869 = vunpack.c.l.b16 %v1812
    %v1870 = vunpack.c.h.b16 %v1812
    %v1871 = vunpack.c.l.b16 %v1813
    %v1872 = vunpack.c.h.b16 %v1813
    %v1873 = vunpack.c.l.b16 %v1814
    %v1874 = vunpack.c.h.b16 %v1814
    %v1875 = vunpack.c.l.b16 %v1815
    %v1876 = vunpack.c.h.b16 %v1815
    %v1877 = vunpack.c.l.b16 %v1816
    %v1878 = vunpack.c.h.b16 %v1816
    %v1879 = vunpack.c.l.b16 %v1817
    %v1880 = vunpack.c.h.b16 %v1817
    %v1881 = vunpack.c.l.b16 %v1818
    %v1882 = vunpack.c.h.b16 %v1818
    %v1883 = vunpack.c.l.b16 %v1819
    %v1884 = vunpack.c.h.b16 %v1819
    %v1885 = vunpack.c.l.b16 %v1820
    %v1886 = vunpack.c.h.b16 %v1820
    %v1887 = vunpack.c.l.b16 %v1821
    %v1888 = vunpack.c.h.b16 %v1821
    %v1889 = vunpack.c.l.b16 %v1822
    %v1890 = vunpack.c.h.b16 %v1822
    %v1891 = vunpack.c.l.b16 %v1823
    %v1892 = vunpack.c.h.b16 %v1823
    %v1893 = vunpack.c.l.b16 %v1824
    %v1894 = vunpack.c.h.b16 %v1824
    %v1895 = vunpack.c.l.b16 %v1825
    %v1896 = vunpack.c.h.b16 %v1825
    %v1897 = vunpack.c.l.b16 %v1826
    %v1898 = vunpack.c.h.b16 %v1826
    %v1899 = vpack.c.b16 %v1851, %v1851
    %v1900 = vpack.c.b16 %v1852, %v1852
    %v1901 = vpack.c.b16 %v1853, %v1853
    %v1902 = vpack.c.b16 %v1854, %v1854
    %v1903 = vpack.c.b16 %v1855, %v1855
    %v1904 = vpack.c.b16 %v1856, %v1856
    %v1905 = vpack.c.b16 %v1857, %v1857
    %v1906 = vpack.c.b16 %v1858, %v1858
    %v1907 = vpack.c.b16 %v1859, %v1859
    %v1908 = vpack.c.b16 %v1860, %v1860
    %v1909 = vpack.c.b16 %v1861, %v1861
    %v1910 = vpack.c.b16 %v1862, %v1862
    %v1911 = vpack.c.b16 %v1863, %v1863
    %v1912 = vpack.c.b16 %v1864, %v1864
    %v1913 = vpack.c.b16 %v1865, %v1865
    %v1914 = vpack.c.b16 %v1866, %v1866
    %v1915 = vpack.c.b16 %v1867, %v1867
    %v1916 = vpack.c.b16 %v1868, %v1868
    %v1917 = vpack.c.b16 %v1869, %v1869
    %v1918 = vpack.c.b16 %v1870, %v1870
    %v1919 = vpack.c.b16 %v1871, %v1871
    %v1920 = vpack.c.b16 %v1872, %v1872
    %v1921 = vpack.c.b16 %v1873, %v1873
    %v1922 = vpack.c.b16 %v1874, %v1874
    %v1923 = vpack.c.b16 %v1875, %v1875
    %v1924 = vpack.c.b16 %v1876, %v1876
    %v1925 = vpack.c.b16 %v1877, %v1877
    %v1926 = vpack.c.b16 %v1878, %v1878
    %v1927 = vpack.c.b16 %v1879, %v1879
    %v1928 = vpack.c.b16 %v1880, %v1880
    %v1929 = vpack.c.b16 %v1881, %v1881
    %v1930 = vpack.c.b16 %v1882, %v1882
    %v1931 = vpack.c.b16 %v1883, %v1883
    %v1932 = vpack.c.b16 %v1884, %v1884
    %v1933 = vpack.c.b16 %v1885, %v1885
    %v1934 = vpack.c.b16 %v1886, %v1886
    %v1935 = vpack.c.b16 %v1887, %v1887
    %v1936 = vpack.c.b16 %v1888, %v1888
    %v1937 = vpack.c.b16 %v1889, %v1889
    %v1938 = vpack.c.b16 %v1890, %v1890
    %v1939 = vpack.c.b16 %v1891, %v1891
    %v1940 = vpack.c.b16 %v1892, %v1892
    %v1941 = vpack.c.b16 %v1893, %v1893
    %v1942 = vpack.c.b16 %v1894, %v1894
    %v1943 = vpack.c.b16 %v1895, %v1895
    %v1944 = vpack.c.b16 %v1896, %v1896
    %v1945 = vpack.c.b16 %v1897, %v1897
    %v1946 = vpack.c.b16 %v1898, %v1898
    %1995 = vst [vmem:[%s4] sm:$0xf] %v1899
    %1996 = vst [vmem:[%s4 + $0x4] sm:$0xf] %v1900
    %1997 = vst [vmem:[%s4 + $0x8] sm:$0xf] %v1901
    %1998 = vst [vmem:[%s4 + $0xc] sm:$0xf] %v1902
    %1999 = vst [vmem:[%s4 + $0x10] sm:$0xf] %v1903
    %2000 = vst [vmem:[%s4 + $0x14] sm:$0xf] %v1904
    %2001 = vst [vmem:[%s4 + $0x18] sm:$0xf] %v1905
    %2002 = vst [vmem:[%s4 + $0x1c] sm:$0xf] %v1906
    %2003 = vst [vmem:[%s4 + $0x20] sm:$0xf] %v1907
    %2004 = vst [vmem:[%s4 + $0x24] sm:$0xf] %v1908
    %2005 = vst [vmem:[%s4 + $0x28] sm:$0xf] %v1909
    %2006 = vst [vmem:[%s4 + $0x2c] sm:$0xf] %v1910
    %2007 = vst [vmem:[%s4 + $0x30] sm:$0xf] %v1911
    %2008 = vst [vmem:[%s4 + $0x34] sm:$0xf] %v1912
    %2009 = vst [vmem:[%s4 + $0x38] sm:$0xf] %v1913
    %2010 = vst [vmem:[%s4 + $0x3c] sm:$0xf] %v1914
    %2011 = vst [vmem:[%s4 + $0x40] sm:$0xf] %v1915
    %2012 = vst [vmem:[%s4 + $0x44] sm:$0xf] %v1916
    %2013 = vst [vmem:[%s4 + $0x48] sm:$0xf] %v1917
    %2014 = vst [vmem:[%s4 + $0x4c] sm:$0xf] %v1918
    %2015 = vst [vmem:[%s4 + $0x50] sm:$0xf] %v1919
    %2016 = vst [vmem:[%s4 + $0x54] sm:$0xf] %v1920
    %2017 = vst [vmem:[%s4 + $0x58] sm:$0xf] %v1921
    %2018 = vst [vmem:[%s4 + $0x5c] sm:$0xf] %v1922
    %2019 = vst [vmem:[%s4 + $0x60] sm:$0xf] %v1923
    %2020 = vst [vmem:[%s4 + $0x64] sm:$0xf] %v1924
    %2021 = vst [vmem:[%s4 + $0x68] sm:$0xf] %v1925
    %2022 = vst [vmem:[%s4 + $0x6c] sm:$0xf] %v1926
    %2023 = vst [vmem:[%s4 + $0x70] sm:$0xf] %v1927
    %2024 = vst [vmem:[%s4 + $0x74] sm:$0xf] %v1928
    %2025 = vst [vmem:[%s4 + $0x78] sm:$0xf] %v1929
    %2026 = vst [vmem:[%s4 + $0x7c] sm:$0xf] %v1930
    %2027 = vst [vmem:[%s4 + $0x80] sm:$0xf] %v1931
    %2028 = vst [vmem:[%s4 + $0x84] sm:$0xf] %v1932
    %2029 = vst [vmem:[%s4 + $0x88] sm:$0xf] %v1933
    %2030 = vst [vmem:[%s4 + $0x8c] sm:$0xf] %v1934
    %2031 = vst [vmem:[%s4 + $0x90] sm:$0xf] %v1935
    %2032 = vst [vmem:[%s4 + $0x94] sm:$0xf] %v1936
    %2033 = vst [vmem:[%s4 + $0x98] sm:$0xf] %v1937
    %2034 = vst [vmem:[%s4 + $0x9c] sm:$0xf] %v1938
    %2035 = vst [vmem:[%s4 + $0xa0] sm:$0xf] %v1939
    %2036 = vst [vmem:[%s4 + $0xa4] sm:$0xf] %v1940
    %2037 = vst [vmem:[%s4 + $0xa8] sm:$0xf] %v1941
    %2038 = vst [vmem:[%s4 + $0xac] sm:$0xf] %v1942
    %2039 = vst [vmem:[%s4 + $0xb0] sm:$0xf] %v1943
    %2040 = vst [vmem:[%s4 + $0xb4] sm:$0xf] %v1944
    %2041 = vst [vmem:[%s4 + $0xb8] sm:$0xf] %v1945
    %2042 = vst [vmem:[%s4 + $0xbc] sm:$0xf] %v1946
  $region25: #{gcn_forward.2} parent=0 // pred_fallthru
    _
  // Predicated region
  $region26: #{gcn_forward.2} parent=0 // pred_check
    _
  $region27: #{gcn_forward.2} parent=0 // pred_check_branch
    %2044 = sbr.rel (0) target = $region29
  $region28: #{gcn_forward.2} parent=0 // pred_region
    _
  $region29: #{gcn_forward.2} parent=0 // pred_fallthru
    _
  // Predicated region
  $region30: #{gcn_forward.2} parent=0 // pred_check
    _
  $region31: #{gcn_forward.2} parent=0 // pred_check_branch
    %2046 = sbr.rel (0) target = $region33
  $region32: #{gcn_forward.2} parent=0 // pred_region
    _
  $region33: #{gcn_forward.2} parent=0 // pred_fallthru
    _

</llo_original>
